<compile_context>
chip_gen: v7x
topology: tpu7x:2x2x1
jax: 0.10.0
libtpu: 0.0.40
codegen_flags: <defaults>
</compile_context>

<pallas_src>
import functools
import math

import jax
import jax.numpy as jnp
from jax.experimental import pallas as pl
from jax.experimental.pallas import tpu as pltpu


# ----------------------------------------------------------------------------
# Fused encoder-stack kernel: one grid step = one layer on one batch block.
# ----------------------------------------------------------------------------
def _encoder_stack_kernel(x_ref, w_in_ref, b_in_ref, w_o_ref, b_o_ref,
                          g1_ref, be1_ref, w1_ref, bf1_ref, w2_ref, bf2_ref,
                          g2_ref, be2_ref, o_ref, act_ref, *,
                          b_blk, seq, nhead, eps, compute_dtype):
    layer = pl.program_id(1)

    # Load the input slab into the persistent VMEM activation at the first layer.
    @pl.when(layer == 0)
    def _():
        act_ref[...] = x_ref[...].astype(jnp.float32)

    x = act_ref[...]                                   # (M, D) f32 residual stream
    M, D = x.shape
    dh = D // nhead
    scale = 1.0 / math.sqrt(dh)
    cd = compute_dtype

    # --- fused QKV projection over all (batch * seq) rows --------------------
    qkv = jnp.dot(x.astype(cd), w_in_ref[...],
                  preferred_element_type=jnp.float32) + b_in_ref[...]
    q, k, v = qkv[:, :D], qkv[:, D:2 * D], qkv[:, 2 * D:]

    # --- multi-head self-attention: single contraction, (head, batch) merged --
    def split_heads(t):                                # (M, D) -> (nhead*b_blk, S, dh)
        t = jnp.transpose(t.reshape(M, nhead, dh), (1, 0, 2))   # (h, b*S, dh)
        return t.reshape(nhead * b_blk, seq, dh)

    qh, kh, vh = split_heads(q), split_heads(k), split_heads(v)
    s = jnp.einsum("bqd,bkd->bqk", qh.astype(cd), kh.astype(cd),
                   preferred_element_type=jnp.float32) * scale
    s = s - jnp.max(s, axis=-1, keepdims=True)
    p = jnp.exp(s)
    denom = jnp.sum(p, axis=-1, keepdims=True)
    # EUP reciprocal + one Newton step: no VALU divide, still ~f32 accurate.
    r = pl.reciprocal(denom, approx=True)
    r = r * (2.0 - denom * r)
    p = p * r
    ctx = jnp.einsum("bqk,bkd->bqd", p.astype(cd), vh.astype(cd),
                     preferred_element_type=jnp.float32)        # (h*b, S, dh)
    ctx = jnp.transpose(ctx.reshape(nhead, M, dh), (1, 0, 2)).reshape(M, D)

    attn = jnp.dot(ctx.astype(cd), w_o_ref[...],
                   preferred_element_type=jnp.float32) + b_o_ref[...]

    # --- residual + LayerNorm 1 ----------------------------------------------
    y = x + attn
    mu = jnp.mean(y, axis=-1, keepdims=True)
    var = jnp.mean((y - mu) ** 2, axis=-1, keepdims=True)
    y = (y - mu) * jax.lax.rsqrt(var + eps) * g1_ref[...] + be1_ref[...]

    # --- feed forward: Linear -> ReLU -> Linear -------------------------------
    h1 = jnp.dot(y.astype(cd), w1_ref[...],
                 preferred_element_type=jnp.float32) + bf1_ref[...]
    h1 = jnp.maximum(h1, 0.0)
    ff = jnp.dot(h1.astype(cd), w2_ref[...],
                 preferred_element_type=jnp.float32) + bf2_ref[...]

    # --- residual + LayerNorm 2 ----------------------------------------------
    z = y + ff
    mu2 = jnp.mean(z, axis=-1, keepdims=True)
    var2 = jnp.mean((z - mu2) ** 2, axis=-1, keepdims=True)
    z = (z - mu2) * jax.lax.rsqrt(var2 + eps) * g2_ref[...] + be2_ref[...]

    act_ref[...] = z                                   # carry to next layer

    # Lane-/sublane-contiguous one-shot store of the whole (M, D) slab.
    @pl.when(layer == pl.num_programs(1) - 1)
    def _():
        o_ref[...] = z.astype(o_ref.dtype)


# ----------------------------------------------------------------------------
# Wrapper: one pallas_call for the whole encoder stack.
# ----------------------------------------------------------------------------
_PARAM_ORDER = ("w_in", "b_in", "w_o", "b_o", "g1", "be1",
                "w1", "bf1", "w2", "bf2", "g2", "be2")
_MATMUL_PARAMS = {"w_in", "w_o", "w1", "w2"}


def temporal_encoder_forward(src_sbd, stacked_params, *, nhead,
                             compute_dtype=jnp.float32, batch_block=None):
    """TemporalEncoder.forward (mask=None, src_key_padding_mask=None, norm=None).

    compute_dtype=jnp.bfloat16 feeds bf16 operands to the MXU (f32 accumulate)
    for v6e/v7x peak throughput; batch_block < B keeps a >1 "parallel" grid axis
    so v7x's two TensorCores are both used on larger batches.
    """
    S, B, D = src_sbd.shape
    L = stacked_params["w_in"].shape[0]
    b_blk = B if batch_block is None else batch_block
    assert B % b_blk == 0, "batch_block must divide the batch size"
    n_b = B // b_blk

    # (S, B, D) -> (B*S, D): fold batch & sequence into the matmul M dimension.
    x2d = jnp.transpose(src_sbd, (1, 0, 2)).reshape(B * S, D)

    params = []
    in_specs = [pl.BlockSpec((b_blk * S, D), lambda b, l: (b, 0))]
    for name in _PARAM_ORDER:
        arr = stacked_params[name]
        if name in _MATMUL_PARAMS:
            arr = arr.astype(compute_dtype)        # bf16 weights on v6e/v7x
        params.append(arr)
        nrest = arr.ndim - 1
        in_specs.append(
            pl.BlockSpec((None,) + arr.shape[1:],  # leading L axis squeezed out
                         lambda b, l, _n=nrest: (l,) + (0,) * _n))

    kernel = functools.partial(
        _encoder_stack_kernel, b_blk=b_blk, seq=S, nhead=nhead, eps=1e-5,
        compute_dtype=compute_dtype)

    out2d = pl.pallas_call(
        kernel,
        out_shape=jax.ShapeDtypeStruct((B * S, D), src_sbd.dtype),
        grid=(n_b, L),
        in_specs=in_specs,
        out_specs=pl.BlockSpec((b_blk * S, D), lambda b, l: (b, 0)),
        scratch_shapes=[pltpu.VMEM((b_blk * S, D), jnp.float32)],
        compiler_params=pltpu.CompilerParams(
            dimension_semantics=("parallel", "arbitrary")),
    )(x2d, *params)

    return jnp.transpose(out2d.reshape(B, S, D), (1, 0, 2))


# ----------------------------------------------------------------------------
# Pure-JAX reference (correctness check)
# ----------------------------------------------------------------------------
def _layer_ref(x_bsd, p, nhead, eps=1e-5):
    B, S, D = x_bsd.shape
    Dh = D // nhead
    qkv = x_bsd @ p["w_in"] + p["b_in"]
    q, k, v = jnp.split(qkv, 3, axis=-1)

    def heads(t):
        return jnp.transpose(t.reshape(B, S, nhead, Dh), (0, 2, 1, 3))

    qh, kh, vh = heads(q), heads(k), heads(v)
    s = jnp.einsum("bhqd,bhkd->bhqk", qh, kh) / math.sqrt(Dh)
    pmat = jax.nn.softmax(s, axis=-1)
    ctx = jnp.einsum("bhqk,bhkd->bhqd", pmat, vh)
    ctx = jnp.transpose(ctx, (0, 2, 1, 3)).reshape(B, S, D)
    attn = ctx @ p["w_o"] + p["b_o"]
    y = x_bsd + attn
    mu = y.mean(-1, keepdims=True)
    var = ((y - mu) ** 2).mean(-1, keepdims=True)
    y = (y - mu) / jnp.sqrt(var + eps) * p["g1"] + p["be1"]
    ff = jnp.maximum(y @ p["w1"] + p["bf1"], 0.0) @ p["w2"] + p["bf2"]
    z = y + ff
    mu2 = z.mean(-1, keepdims=True)
    var2 = ((z - mu2) ** 2).mean(-1, keepdims=True)
    return (z - mu2) / jnp.sqrt(var2 + eps) * p["g2"] + p["be2"]


def temporal_encoder_ref(src_sbd, layer_params, *, nhead):
    out = jnp.transpose(src_sbd, (1, 0, 2))
    for p in layer_params:
        out = _layer_ref(out, p, nhead)
    return jnp.transpose(out, (1, 0, 2))


# ----------------------------------------------------------------------------
# Deterministic parameter init (shapes as in nn.TransformerEncoderLayer)
# ----------------------------------------------------------------------------
def make_layer_params(key, d_model, dim_ff):
    ks = jax.random.split(key, 6)
    f32 = jnp.float32
    return {
        # in_proj: PyTorch stores (3D, D); we keep it pre-transposed as (D, 3D).
        "w_in": jax.random.normal(ks[0], (d_model, 3 * d_model), f32) * 0.05,
        "b_in": jax.random.normal(ks[1], (1, 3 * d_model), f32) * 0.02,
        "w_o":  jax.random.normal(ks[2], (d_model, d_model), f32) * 0.05,
        "b_o":  jax.random.normal(ks[3], (1, d_model), f32) * 0.02,
        "g1":   jnp.ones((1, d_model), f32),
        "be1":  jnp.zeros((1, d_model), f32),
        "w1":   jax.random.normal(ks[4], (d_model, dim_ff), f32) * 0.05,
        "bf1":  jnp.zeros((1, dim_ff), f32),
        "w2":   jax.random.normal(ks[5], (dim_ff, d_model), f32) * 0.05,
        "bf2":  jnp.zeros((1, d_model), f32),
        "g2":   jnp.ones((1, d_model), f32),
        "be2":  jnp.zeros((1, d_model), f32),
    }


def stack_layer_params(layer_params):
    """Stack per-layer dicts into leading-L arrays for the fused kernel."""
    return {k: jnp.stack([p[k] for p in layer_params], axis=0)
            for k in layer_params[0]}


if __name__ == "__main__":
    S, B, D = 8, 2, 32          # seq, batch, d_model
    NHEAD, DIM_FF, NUM_LAYERS = 4, 64, 2

    root = jax.random.PRNGKey(0)
    k_src, *k_layers = jax.random.split(root, NUM_LAYERS + 1)
    src = jax.random.normal(k_src, (S, B, D), jnp.float32)
    layer_params = [make_layer_params(k, D, DIM_FF) for k in k_layers]
    stacked = stack_layer_params(layer_params)

    ref = temporal_encoder_ref(src, layer_params, nhead=NHEAD)

    # f32 MXU operands (tight check against the f32 reference).
    out = jax.block_until_ready(temporal_encoder_forward(src, stacked, nhead=NHEAD))
    assert out.shape == (S, B, D)
    assert jnp.allclose(out, ref, rtol=1e-3, atol=1e-3), "kernel (f32) != reference"

    # bf16 MXU operands / f32 accumulate (v6e / v7x peak-throughput path).
    out_bf16 = jax.block_until_ready(
        temporal_encoder_forward(src, stacked, nhead=NHEAD,
                                 compute_dtype=jnp.bfloat16))
    assert jnp.allclose(out_bf16, ref, rtol=5e-2, atol=5e-2), "kernel (bf16) != reference"

    print("KERNEL_OK")
</pallas_src>

<mosaic_0001>
module attributes {stable_mosaic.version = 11 : i64} {
  func.func @_encoder_stack_kernel(%arg0: i32, %arg1: i32, %arg2: memref<16x32xf32, #tpu.memory_space<vmem>>, %arg3: memref<1x32x96xf32, #tpu.memory_space<vmem>>, %arg4: memref<1x1x96xf32, #tpu.memory_space<vmem>>, %arg5: memref<1x32x32xf32, #tpu.memory_space<vmem>>, %arg6: memref<1x1x32xf32, #tpu.memory_space<vmem>>, %arg7: memref<1x1x32xf32, #tpu.memory_space<vmem>>, %arg8: memref<1x1x32xf32, #tpu.memory_space<vmem>>, %arg9: memref<1x32x64xf32, #tpu.memory_space<vmem>>, %arg10: memref<1x1x64xf32, #tpu.memory_space<vmem>>, %arg11: memref<1x64x32xf32, #tpu.memory_space<vmem>>, %arg12: memref<1x1x32xf32, #tpu.memory_space<vmem>>, %arg13: memref<1x1x32xf32, #tpu.memory_space<vmem>>, %arg14: memref<1x1x32xf32, #tpu.memory_space<vmem>>, %arg15: memref<16x32xf32, #tpu.memory_space<vmem>>, %arg16: memref<16x32xf32, #tpu.memory_space<vmem>>) attributes {dimension_semantics = [#tpu.dimension_semantics<parallel>, #tpu.dimension_semantics<arbitrary>], iteration_bounds = array<i64: 1, 2>, scalar_prefetch = 0 : i64, scratch_operands = 1 : i64, tpu.core_type = #tpu.core_type<tc>, window_params = [{transform_indices = @transform_0, window_bounds = array<i64: 16, 32>}, {transform_indices = @transform_1, window_bounds = array<i64: 1, 32, 96>}, {transform_indices = @transform_2, window_bounds = array<i64: 1, 1, 96>}, {transform_indices = @transform_3, window_bounds = array<i64: 1, 32, 32>}, {transform_indices = @transform_4, window_bounds = array<i64: 1, 1, 32>}, {transform_indices = @transform_5, window_bounds = array<i64: 1, 1, 32>}, {transform_indices = @transform_6, window_bounds = array<i64: 1, 1, 32>}, {transform_indices = @transform_7, window_bounds = array<i64: 1, 32, 64>}, {transform_indices = @transform_8, window_bounds = array<i64: 1, 1, 64>}, {transform_indices = @transform_9, window_bounds = array<i64: 1, 64, 32>}, {transform_indices = @transform_10, window_bounds = array<i64: 1, 1, 32>}, {transform_indices = @transform_11, window_bounds = array<i64: 1, 1, 32>}, {transform_indices = @transform_12, window_bounds = array<i64: 1, 1, 32>}, {transform_indices = @transform_13, window_bounds = array<i64: 16, 32>}]} {
    %c0_i32 = arith.constant 0 : i32
    %0 = arith.cmpi eq, %arg1, %c0_i32 : i32
    %1 = arith.extui %0 : i1 to i32
    %c0_i32_0 = arith.constant 0 : i32
    %2 = arith.cmpi ne, %1, %c0_i32_0 : i32
    scf.if %2 {
      %c0_61 = arith.constant 0 : index
      %c0_62 = arith.constant 0 : index
      %125 = vector.load %arg2[%c0_61, %c0_62] : memref<16x32xf32, #tpu.memory_space<vmem>>, vector<16x32xf32>
      %c0_63 = arith.constant 0 : index
      %c0_64 = arith.constant 0 : index
      %126 = vector.load %arg16[%c0_63, %c0_64] : memref<16x32xf32, #tpu.memory_space<vmem>>, vector<16x32xf32>
      tpu.vector_store %arg16[%c0_63, %c0_64], %125 {strides = array<i32>} : memref<16x32xf32, #tpu.memory_space<vmem>>, vector<16x32xf32>,
    } else {
    }
    %c0 = arith.constant 0 : index
    %c0_1 = arith.constant 0 : index
    %3 = vector.load %arg16[%c0, %c0_1] : memref<16x32xf32, #tpu.memory_space<vmem>>, vector<16x32xf32>
    %c0_2 = arith.constant 0 : index
    %c0_3 = arith.constant 0 : index
    %c0_4 = arith.constant 0 : index
    %4 = vector.load %arg3[%c0_2, %c0_3, %c0_4] : memref<1x32x96xf32, #tpu.memory_space<vmem>>, vector<1x32x96xf32>
    %5 = vector.shape_cast %4 : vector<1x32x96xf32> to vector<32x96xf32>
    %cst = arith.constant dense<0.000000e+00> : vector<16x96xf32>
    %6 = tpu.matmul %3, %5, %cst {dimension_numbers = #tpu.dot_dimension_numbers<[1], [0], [0], [1], [0, 0, 1, 1], [], []>} : vector<16x32xf32>, vector<32x96xf32>, vector<16x96xf32> -> vector<16x96xf32>
    %c0_5 = arith.constant 0 : index
    %c0_6 = arith.constant 0 : index
    %c0_7 = arith.constant 0 : index
    %7 = vector.load %arg4[%c0_5, %c0_6, %c0_7] : memref<1x1x96xf32, #tpu.memory_space<vmem>>, vector<1x1x96xf32>
    %8 = vector.shape_cast %7 : vector<1x1x96xf32> to vector<1x96xf32>
    %9 = vector.broadcast %8 : vector<1x96xf32> to vector<16x96xf32>
    %10 = arith.addf %6, %9 : vector<16x96xf32>
    %11 = vector.extract_strided_slice %10 {offsets = [0, 0], sizes = [16, 32], strides = [1, 1]} : vector<16x96xf32> to vector<16x32xf32>
    %12 = vector.extract_strided_slice %10 {offsets = [0, 32], sizes = [16, 32], strides = [1, 1]} : vector<16x96xf32> to vector<16x32xf32>
    %13 = vector.extract_strided_slice %10 {offsets = [0, 64], sizes = [16, 32], strides = [1, 1]} : vector<16x96xf32> to vector<16x32xf32>
    %14 = vector.shape_cast %11 : vector<16x32xf32> to vector<16x4x8xf32>
    %15 = tpu.transpose %14, [1, 0, 2] : vector<16x4x8xf32> -> vector<4x16x8xf32>
    %16 = vector.shape_cast %15 : vector<4x16x8xf32> to vector<8x8x8xf32>
    %17 = vector.shape_cast %12 : vector<16x32xf32> to vector<16x4x8xf32>
    %18 = tpu.transpose %17, [1, 0, 2] : vector<16x4x8xf32> -> vector<4x16x8xf32>
    %19 = vector.shape_cast %18 : vector<4x16x8xf32> to vector<8x8x8xf32>
    %20 = vector.shape_cast %13 : vector<16x32xf32> to vector<16x4x8xf32>
    %21 = tpu.transpose %20, [1, 0, 2] : vector<16x4x8xf32> -> vector<4x16x8xf32>
    %22 = vector.shape_cast %21 : vector<4x16x8xf32> to vector<8x8x8xf32>
    "tpu.trace_start"() <{level = 10 : i32, message = "bqd,bkd->bqk"}> : () -> ()
    %cst_8 = arith.constant dense<0.000000e+00> : vector<8x8x8xf32>
    %23 = tpu.matmul %16, %19, %cst_8 {dimension_numbers = #tpu.dot_dimension_numbers<[2], [2], [1], [1], [0, 0, 0, 1, 1, 1], [0], [0]>} : vector<8x8x8xf32>, vector<8x8x8xf32>, vector<8x8x8xf32> -> vector<8x8x8xf32>
    "tpu.trace_stop"() : () -> ()
    %cst_9 = arith.constant 0.353553385 : f32
    %24 = vector.broadcast %cst_9 : f32 to vector<8x8x8xf32>
    %25 = arith.mulf %23, %24 : vector<8x8x8xf32>
    %cst_10 = arith.constant dense<0xFF800000> : vector<8x8xf32>
    %26 = vector.multi_reduction <maximumf>, %25, %cst_10 [2] : vector<8x8x8xf32> to vector<8x8xf32>
    %27 = vector.shape_cast %26 : vector<8x8xf32> to vector<8x8x1xf32>
    %28 = vector.broadcast %27 : vector<8x8x1xf32> to vector<8x8x8xf32>
    %29 = arith.subf %25, %28 : vector<8x8x8xf32>
    %30 = math.exp %29 : vector<8x8x8xf32>
    %cst_11 = arith.constant dense<0.000000e+00> : vector<8x8xf32>
    %31 = vector.multi_reduction <add>, %30, %cst_11 [2] : vector<8x8x8xf32> to vector<8x8xf32>
    %32 = vector.shape_cast %31 : vector<8x8xf32> to vector<8x8x1xf32>
    %33 = tpu.reciprocal %32 {approx = true} : vector<8x8x1xf32> -> vector<8x8x1xf32>
    %34 = arith.mulf %32, %33 : vector<8x8x1xf32>
    %cst_12 = arith.constant 2.000000e+00 : f32
    %35 = vector.broadcast %cst_12 : f32 to vector<8x8x1xf32>
    %36 = arith.subf %35, %34 : vector<8x8x1xf32>
    %37 = arith.mulf %33, %36 : vector<8x8x1xf32>
    %38 = vector.broadcast %37 : vector<8x8x1xf32> to vector<8x8x8xf32>
    %39 = arith.mulf %30, %38 : vector<8x8x8xf32>
    "tpu.trace_start"() <{level = 10 : i32, message = "bqk,bkd->bqd"}> : () -> ()
    %cst_13 = arith.constant dense<0.000000e+00> : vector<8x8x8xf32>
    %40 = tpu.matmul %39, %22, %cst_13 {dimension_numbers = #tpu.dot_dimension_numbers<[2], [1], [1], [2], [0, 0, 0, 1, 1, 2], [0], [0]>} : vector<8x8x8xf32>, vector<8x8x8xf32>, vector<8x8x8xf32> -> vector<8x8x8xf32>
    "tpu.trace_stop"() : () -> ()
    %41 = vector.shape_cast %40 : vector<8x8x8xf32> to vector<4x16x8xf32>
    %42 = tpu.transpose %41, [1, 0, 2] : vector<4x16x8xf32> -> vector<16x4x8xf32>
    %43 = vector.shape_cast %42 : vector<16x4x8xf32> to vector<16x32xf32>
    %c0_14 = arith.constant 0 : index
    %c0_15 = arith.constant 0 : index
    %c0_16 = arith.constant 0 : index
    %44 = vector.load %arg5[%c0_14, %c0_15, %c0_16] : memref<1x32x32xf32, #tpu.memory_space<vmem>>, vector<1x32x32xf32>
    %45 = vector.shape_cast %44 : vector<1x32x32xf32> to vector<32x32xf32>
    %cst_17 = arith.constant dense<0.000000e+00> : vector<16x32xf32>
    %46 = tpu.matmul %43, %45, %cst_17 {dimension_numbers = #tpu.dot_dimension_numbers<[1], [0], [0], [1], [0, 0, 1, 1], [], []>} : vector<16x32xf32>, vector<32x32xf32>, vector<16x32xf32> -> vector<16x32xf32>
    %c0_18 = arith.constant 0 : index
    %c0_19 = arith.constant 0 : index
    %c0_20 = arith.constant 0 : index
    %47 = vector.load %arg6[%c0_18, %c0_19, %c0_20] : memref<1x1x32xf32, #tpu.memory_space<vmem>>, vector<1x1x32xf32>
    %48 = vector.shape_cast %47 : vector<1x1x32xf32> to vector<1x32xf32>
    %49 = vector.broadcast %48 : vector<1x32xf32> to vector<16x32xf32>
    %50 = arith.addf %46, %49 : vector<16x32xf32>
    %51 = arith.addf %3, %50 : vector<16x32xf32>
    %cst_21 = arith.constant dense<0.000000e+00> : vector<16xf32>
    %52 = vector.multi_reduction <add>, %51, %cst_21 [1] : vector<16x32xf32> to vector<16xf32>
    %53 = vector.shape_cast %52 : vector<16xf32> to vector<16x1xf32>
    %cst_22 = arith.constant 3.200000e+01 : f32
    %54 = vector.broadcast %cst_22 : f32 to vector<16x1xf32>
    %55 = arith.divf %53, %54 : vector<16x1xf32>
    %56 = vector.broadcast %55 : vector<16x1xf32> to vector<16x32xf32>
    %57 = arith.subf %51, %56 : vector<16x32xf32>
    %58 = arith.mulf %57, %57 : vector<16x32xf32>
    %cst_23 = arith.constant dense<0.000000e+00> : vector<16xf32>
    %59 = vector.multi_reduction <add>, %58, %cst_23 [1] : vector<16x32xf32> to vector<16xf32>
    %60 = vector.shape_cast %59 : vector<16xf32> to vector<16x1xf32>
    %cst_24 = arith.constant 3.200000e+01 : f32
    %61 = vector.broadcast %cst_24 : f32 to vector<16x1xf32>
    %62 = arith.divf %60, %61 : vector<16x1xf32>
    %63 = vector.broadcast %55 : vector<16x1xf32> to vector<16x32xf32>
    %64 = arith.subf %51, %63 : vector<16x32xf32>
    %cst_25 = arith.constant 9.99999974E-6 : f32
    %65 = vector.broadcast %cst_25 : f32 to vector<16x1xf32>
    %66 = arith.addf %62, %65 : vector<16x1xf32>
    %67 = math.rsqrt %66 : vector<16x1xf32>
    %68 = vector.broadcast %67 : vector<16x1xf32> to vector<16x32xf32>
    %69 = arith.mulf %64, %68 : vector<16x32xf32>
    %c0_26 = arith.constant 0 : index
    %c0_27 = arith.constant 0 : index
    %c0_28 = arith.constant 0 : index
    %70 = vector.load %arg7[%c0_26, %c0_27, %c0_28] : memref<1x1x32xf32, #tpu.memory_space<vmem>>, vector<1x1x32xf32>
    %71 = vector.shape_cast %70 : vector<1x1x32xf32> to vector<1x32xf32>
    %72 = vector.broadcast %71 : vector<1x32xf32> to vector<16x32xf32>
    %73 = arith.mulf %69, %72 : vector<16x32xf32>
    %c0_29 = arith.constant 0 : index
    %c0_30 = arith.constant 0 : index
    %c0_31 = arith.constant 0 : index
    %74 = vector.load %arg8[%c0_29, %c0_30, %c0_31] : memref<1x1x32xf32, #tpu.memory_space<vmem>>, vector<1x1x32xf32>
    %75 = vector.shape_cast %74 : vector<1x1x32xf32> to vector<1x32xf32>
    %76 = vector.broadcast %75 : vector<1x32xf32> to vector<16x32xf32>
    %77 = arith.addf %73, %76 : vector<16x32xf32>
    %c0_32 = arith.constant 0 : index
    %c0_33 = arith.constant 0 : index
    %c0_34 = arith.constant 0 : index
    %78 = vector.load %arg9[%c0_32, %c0_33, %c0_34] : memref<1x32x64xf32, #tpu.memory_space<vmem>>, vector<1x32x64xf32>
    %79 = vector.shape_cast %78 : vector<1x32x64xf32> to vector<32x64xf32>
    %cst_35 = arith.constant dense<0.000000e+00> : vector<16x64xf32>
    %80 = tpu.matmul %77, %79, %cst_35 {dimension_numbers = #tpu.dot_dimension_numbers<[1], [0], [0], [1], [0, 0, 1, 1], [], []>} : vector<16x32xf32>, vector<32x64xf32>, vector<16x64xf32> -> vector<16x64xf32>
    %c0_36 = arith.constant 0 : index
    %c0_37 = arith.constant 0 : index
    %c0_38 = arith.constant 0 : index
    %81 = vector.load %arg10[%c0_36, %c0_37, %c0_38] : memref<1x1x64xf32, #tpu.memory_space<vmem>>, vector<1x1x64xf32>
    %82 = vector.shape_cast %81 : vector<1x1x64xf32> to vector<1x64xf32>
    %83 = vector.broadcast %82 : vector<1x64xf32> to vector<16x64xf32>
    %84 = arith.addf %80, %83 : vector<16x64xf32>
    %cst_39 = arith.constant 0.000000e+00 : f32
    %85 = vector.broadcast %cst_39 : f32 to vector<16x64xf32>
    %86 = arith.maximumf %84, %85 : vector<16x64xf32>
    %c0_40 = arith.constant 0 : index
    %c0_41 = arith.constant 0 : index
    %c0_42 = arith.constant 0 : index
    %87 = vector.load %arg11[%c0_40, %c0_41, %c0_42] : memref<1x64x32xf32, #tpu.memory_space<vmem>>, vector<1x64x32xf32>
    %88 = vector.shape_cast %87 : vector<1x64x32xf32> to vector<64x32xf32>
    %cst_43 = arith.constant dense<0.000000e+00> : vector<16x32xf32>
    %89 = tpu.matmul %86, %88, %cst_43 {dimension_numbers = #tpu.dot_dimension_numbers<[1], [0], [0], [1], [0, 0, 1, 1], [], []>} : vector<16x64xf32>, vector<64x32xf32>, vector<16x32xf32> -> vector<16x32xf32>
    %c0_44 = arith.constant 0 : index
    %c0_45 = arith.constant 0 : index
    %c0_46 = arith.constant 0 : index
    %90 = vector.load %arg12[%c0_44, %c0_45, %c0_46] : memref<1x1x32xf32, #tpu.memory_space<vmem>>, vector<1x1x32xf32>
    %91 = vector.shape_cast %90 : vector<1x1x32xf32> to vector<1x32xf32>
    %92 = vector.broadcast %91 : vector<1x32xf32> to vector<16x32xf32>
    %93 = arith.addf %89, %92 : vector<16x32xf32>
    %94 = arith.addf %77, %93 : vector<16x32xf32>
    %cst_47 = arith.constant dense<0.000000e+00> : vector<16xf32>
    %95 = vector.multi_reduction <add>, %94, %cst_47 [1] : vector<16x32xf32> to vector<16xf32>
    %96 = vector.shape_cast %95 : vector<16xf32> to vector<16x1xf32>
    %cst_48 = arith.constant 3.200000e+01 : f32
    %97 = vector.broadcast %cst_48 : f32 to vector<16x1xf32>
    %98 = arith.divf %96, %97 : vector<16x1xf32>
    %99 = vector.broadcast %98 : vector<16x1xf32> to vector<16x32xf32>
    %100 = arith.subf %94, %99 : vector<16x32xf32>
    %101 = arith.mulf %100, %100 : vector<16x32xf32>
    %cst_49 = arith.constant dense<0.000000e+00> : vector<16xf32>
    %102 = vector.multi_reduction <add>, %101, %cst_49 [1] : vector<16x32xf32> to vector<16xf32>
    %103 = vector.shape_cast %102 : vector<16xf32> to vector<16x1xf32>
    %cst_50 = arith.constant 3.200000e+01 : f32
    %104 = vector.broadcast %cst_50 : f32 to vector<16x1xf32>
    %105 = arith.divf %103, %104 : vector<16x1xf32>
    %106 = vector.broadcast %98 : vector<16x1xf32> to vector<16x32xf32>
    %107 = arith.subf %94, %106 : vector<16x32xf32>
    %cst_51 = arith.constant 9.99999974E-6 : f32
    %108 = vector.broadcast %cst_51 : f32 to vector<16x1xf32>
    %109 = arith.addf %105, %108 : vector<16x1xf32>
    %110 = math.rsqrt %109 : vector<16x1xf32>
    %111 = vector.broadcast %110 : vector<16x1xf32> to vector<16x32xf32>
    %112 = arith.mulf %107, %111 : vector<16x32xf32>
    %c0_52 = arith.constant 0 : index
    %c0_53 = arith.constant 0 : index
    %c0_54 = arith.constant 0 : index
    %113 = vector.load %arg13[%c0_52, %c0_53, %c0_54] : memref<1x1x32xf32, #tpu.memory_space<vmem>>, vector<1x1x32xf32>
    %114 = vector.shape_cast %113 : vector<1x1x32xf32> to vector<1x32xf32>
    %115 = vector.broadcast %114 : vector<1x32xf32> to vector<16x32xf32>
    %116 = arith.mulf %112, %115 : vector<16x32xf32>
    %c0_55 = arith.constant 0 : index
    %c0_56 = arith.constant 0 : index
    %c0_57 = arith.constant 0 : index
    %117 = vector.load %arg14[%c0_55, %c0_56, %c0_57] : memref<1x1x32xf32, #tpu.memory_space<vmem>>, vector<1x1x32xf32>
    %118 = vector.shape_cast %117 : vector<1x1x32xf32> to vector<1x32xf32>
    %119 = vector.broadcast %118 : vector<1x32xf32> to vector<16x32xf32>
    %120 = arith.addf %116, %119 : vector<16x32xf32>
    %c0_58 = arith.constant 0 : index
    %c0_59 = arith.constant 0 : index
    %121 = vector.load %arg16[%c0_58, %c0_59] : memref<16x32xf32, #tpu.memory_space<vmem>>, vector<16x32xf32>
    tpu.vector_store %arg16[%c0_58, %c0_59], %120 {strides = array<i32>} : memref<16x32xf32, #tpu.memory_space<vmem>>, vector<16x32xf32>,
    %c1_i32 = arith.constant 1 : i32
    %122 = arith.cmpi eq, %arg1, %c1_i32 : i32
    %123 = arith.extui %122 : i1 to i32
    %c0_i32_60 = arith.constant 0 : i32
    %124 = arith.cmpi ne, %123, %c0_i32_60 : i32
    scf.if %124 {
      %c0_61 = arith.constant 0 : index
      %c0_62 = arith.constant 0 : index
      %125 = vector.load %arg15[%c0_61, %c0_62] : memref<16x32xf32, #tpu.memory_space<vmem>>, vector<16x32xf32>
      tpu.vector_store %arg15[%c0_61, %c0_62], %120 {strides = array<i32>} : memref<16x32xf32, #tpu.memory_space<vmem>>, vector<16x32xf32>,
    } else {
    }
    return
  }
  func.func @transform_0(%arg0: i32, %arg1: i32) -> (i32, i32) {
    %c0_i32 = arith.constant 0 : i32
    %c0_i32_0 = arith.constant 0 : i32
    return %arg0, %c0_i32 : i32, i32
  }
  func.func @transform_1(%arg0: i32, %arg1: i32) -> (i32, i32, i32) {
    %c0_i32 = arith.constant 0 : i32
    %c0_i32_0 = arith.constant 0 : i32
    %c0_i32_1 = arith.constant 0 : i32
    return %arg1, %c0_i32, %c0_i32_0 : i32, i32, i32
  }
  func.func @transform_2(%arg0: i32, %arg1: i32) -> (i32, i32, i32) {
    %c0_i32 = arith.constant 0 : i32
    %c0_i32_0 = arith.constant 0 : i32
    %c0_i32_1 = arith.constant 0 : i32
    return %arg1, %c0_i32, %c0_i32_0 : i32, i32, i32
  }
  func.func @transform_3(%arg0: i32, %arg1: i32) -> (i32, i32, i32) {
    %c0_i32 = arith.constant 0 : i32
    %c0_i32_0 = arith.constant 0 : i32
    %c0_i32_1 = arith.constant 0 : i32
    return %arg1, %c0_i32, %c0_i32_0 : i32, i32, i32
  }
  func.func @transform_4(%arg0: i32, %arg1: i32) -> (i32, i32, i32) {
    %c0_i32 = arith.constant 0 : i32
    %c0_i32_0 = arith.constant 0 : i32
    %c0_i32_1 = arith.constant 0 : i32
    return %arg1, %c0_i32, %c0_i32_0 : i32, i32, i32
  }
  func.func @transform_5(%arg0: i32, %arg1: i32) -> (i32, i32, i32) {
    %c0_i32 = arith.constant 0 : i32
    %c0_i32_0 = arith.constant 0 : i32
    %c0_i32_1 = arith.constant 0 : i32
    return %arg1, %c0_i32, %c0_i32_0 : i32, i32, i32
  }
  func.func @transform_6(%arg0: i32, %arg1: i32) -> (i32, i32, i32) {
    %c0_i32 = arith.constant 0 : i32
    %c0_i32_0 = arith.constant 0 : i32
    %c0_i32_1 = arith.constant 0 : i32
    return %arg1, %c0_i32, %c0_i32_0 : i32, i32, i32
  }
  func.func @transform_7(%arg0: i32, %arg1: i32) -> (i32, i32, i32) {
    %c0_i32 = arith.constant 0 : i32
    %c0_i32_0 = arith.constant 0 : i32
    %c0_i32_1 = arith.constant 0 : i32
    return %arg1, %c0_i32, %c0_i32_0 : i32, i32, i32
  }
  func.func @transform_8(%arg0: i32, %arg1: i32) -> (i32, i32, i32) {
    %c0_i32 = arith.constant 0 : i32
    %c0_i32_0 = arith.constant 0 : i32
    %c0_i32_1 = arith.constant 0 : i32
    return %arg1, %c0_i32, %c0_i32_0 : i32, i32, i32
  }
  func.func @transform_9(%arg0: i32, %arg1: i32) -> (i32, i32, i32) {
    %c0_i32 = arith.constant 0 : i32
    %c0_i32_0 = arith.constant 0 : i32
    %c0_i32_1 = arith.constant 0 : i32
    return %arg1, %c0_i32, %c0_i32_0 : i32, i32, i32
  }
  func.func @transform_10(%arg0: i32, %arg1: i32) -> (i32, i32, i32) {
    %c0_i32 = arith.constant 0 : i32
    %c0_i32_0 = arith.constant 0 : i32
    %c0_i32_1 = arith.constant 0 : i32
    return %arg1, %c0_i32, %c0_i32_0 : i32, i32, i32
  }
  func.func @transform_11(%arg0: i32, %arg1: i32) -> (i32, i32, i32) {
    %c0_i32 = arith.constant 0 : i32
    %c0_i32_0 = arith.constant 0 : i32
    %c0_i32_1 = arith.constant 0 : i32
    return %arg1, %c0_i32, %c0_i32_0 : i32, i32, i32
  }
  func.func @transform_12(%arg0: i32, %arg1: i32) -> (i32, i32, i32) {
    %c0_i32 = arith.constant 0 : i32
    %c0_i32_0 = arith.constant 0 : i32
    %c0_i32_1 = arith.constant 0 : i32
    return %arg1, %c0_i32, %c0_i32_0 : i32, i32, i32
  }
  func.func @transform_13(%arg0: i32, %arg1: i32) -> (i32, i32) {
    %c0_i32 = arith.constant 0 : i32
    %c0_i32_0 = arith.constant 0 : i32
    return %arg0, %c0_i32 : i32, i32
  }
}

</mosaic_0001>

<llo_original>
// kernel: tpu_custom_call.1
$region0: #{tpu_custom_call.1}
  #allocation0 [shape = 'u32[]', space=smem, size = 0x4, offset = 0x4, fixed_abs, tag = 'smem constant byte address 0x4 - core index']
  #allocation1 [shape = 'u32[144,128]{1,0:T(1,128)}', space=vmem, size = 0x12000, scoped, tag = 'internal scratch']
  #allocation2 [shape = 'f32[16,32]{1,0:T(8,128)}', space=vmem, size = 0x2000, scoped, tag = 'scratch operand']
  %s0 = inlined_call_operand.hbm [shape: f32[16,32], index: 0, kind: input, shape index: {}]
  %s1 = inlined_call_operand.vmem [shape: f32[2,32,96], index: 1, kind: input, shape index: {}]
  %s2 = inlined_call_operand.vmem [shape: f32[2,1,96], index: 2, kind: input, shape index: {}]
  %s3 = inlined_call_operand.vmem [shape: f32[2,32,32], index: 3, kind: input, shape index: {}]
  %s4 = inlined_call_operand.vmem [shape: f32[2,1,32], index: 4, kind: input, shape index: {}]
  %s5 = inlined_call_operand.vmem [shape: f32[2,1,32], index: 5, kind: input, shape index: {}]
  %s6 = inlined_call_operand.vmem [shape: f32[2,1,32], index: 6, kind: input, shape index: {}]
  %s7 = inlined_call_operand.vmem [shape: f32[2,32,64], index: 7, kind: input, shape index: {}]
  %s8 = inlined_call_operand.vmem [shape: f32[2,1,64], index: 8, kind: input, shape index: {}]
  %s9 = inlined_call_operand.vmem [shape: f32[2,64,32], index: 9, kind: input, shape index: {}]
  %s10 = inlined_call_operand.vmem [shape: f32[2,1,32], index: 10, kind: input, shape index: {}]
  %s11 = inlined_call_operand.vmem [shape: f32[2,1,32], index: 11, kind: input, shape index: {}]
  %s12 = inlined_call_operand.vmem [shape: f32[2,1,32], index: 12, kind: input, shape index: {}]
  %s13 = inlined_call_operand.hbm [shape: f32[16,32], index: 13, kind: output, shape index: {}]
  %s14 = sld [smem:[#allocation0]]
  $region97: #{tpu_custom_call.1} parent=0
    _
  %s16 = ssub.s32 1, %s14
  %s17 = scalar_select 0, %s16, %s14
  $region1: #{tpu_custom_call.1} parent=0
    #allocation3 [shape = 'u8[8192]{0}', space=vmem, size = 0x2000, scoped, tag = 'input window, operand 0, single buffered']
    #allocation4 [shape = 's32[2]{0}', space=sflag, size = 0x8, scoped, tag = 'scoped memory for tpu_custom_call.1']
    #allocation5 [shape = 's32[2]{0}', space=sflag, size = 0x8, scoped, tag = 'scoped memory for tpu_custom_call.1']
    #allocation6 [shape = 'u8[8192]{0}', space=vmem, size = 0x2000, scoped, tag = 'output window, operand 0, single buffered']
    %18 = vsyncpa [#allocation4], 0
    %19 = vsyncpa [#allocation5], 0
    loop: start=0, step=1, limit=4
    $region2: #{tpu_custom_call.1} parent=1 // loop_pre_header
      _
    $region3: #{tpu_custom_call.1} parent=1 // loop_header
      %s21 = sphi 0, %s25
      %p22 = scmp.ge.s32.totalorder %s21, 4
      %s28 = sphi 0, %s40
      %s29 = sphi 0, %s36
      %s30 = sphi 0, %s28
      %s31 = sphi 0, %s29
      %s32 = sphi 0, %s30
      %s33 = sphi 0, %s31
      %s43 = sphi 0, %s45
      %s46 = sphi 0, %s43
      %s47 = sphi 0, %s46
      %s63 = sphi 0, %s47
      %s69 = sphi 0, %s71
      %s72 = sphi 0, %s69
      %s73 = sphi 0, %s72
      %s89 = sphi 0, %s73
      %s95 = sphi 0, %s97
      %s98 = sphi 0, %s95
      %s99 = sphi 0, %s98
      %s115 = sphi 0, %s99
      %s121 = sphi 0, %s123
      %s124 = sphi 0, %s121
      %s125 = sphi 0, %s124
      %s141 = sphi 0, %s125
      %s147 = sphi 0, %s149
      %s150 = sphi 0, %s147
      %s151 = sphi 0, %s150
      %s167 = sphi 0, %s151
      %s173 = sphi 0, %s175
      %s176 = sphi 0, %s173
      %s177 = sphi 0, %s176
      %s193 = sphi 0, %s177
      %s199 = sphi 0, %s201
      %s202 = sphi 0, %s199
      %s203 = sphi 0, %s202
      %s219 = sphi 0, %s203
      %s225 = sphi 0, %s227
      %s228 = sphi 0, %s225
      %s229 = sphi 0, %s228
      %s245 = sphi 0, %s229
      %s251 = sphi 0, %s253
      %s254 = sphi 0, %s251
      %s255 = sphi 0, %s254
      %s271 = sphi 0, %s255
      %s277 = sphi 0, %s279
      %s280 = sphi 0, %s277
      %s281 = sphi 0, %s280
      %s297 = sphi 0, %s281
      %s303 = sphi 0, %s305
      %s306 = sphi 0, %s303
      %s307 = sphi 0, %s306
      %s323 = sphi 0, %s307
      %s329 = sphi 0, %s331
      %s332 = sphi 0, %s329
      %s333 = sphi 0, %s332
      %s349 = sphi 0, %s333
      %s355 = sphi 0, %s357
      %s358 = sphi 0, %s355
      %s359 = sphi 0, %s358
      %s375 = sphi 0, %s359
      %s381 = sphi 0, %s383
      %s384 = sphi 0, %s381
      %s385 = sphi 0, %s384
      %s401 = sphi 0, %s385
    $region4: #{tpu_custom_call.1} parent=1 // loop_header_branch
      %24 = sbr.rel (%p22) target = $region8
    $region5: #{tpu_custom_call.1} parent=1 // loop_body
      %s26 = ssub.s32 %s21, 1
      %s27 = ssub.s32 %s21, 2
      %s34 = sadd.s32 1, %s29
      %p35 = scmp.ge.s32.totalorder %s34, 2
      %s36 = scalar_select %p35, 0, %s34
      %s37 = sadd.s32 1, %s28
      %s38 = scalar_select %p35, %s37, %s28
      %p39 = scmp.ge.s32.totalorder %s38, 1
      %s40 = scalar_select %p39, 0, %s38
      %s41 = ssub.s32 %s28, %s40
      %p42 = scmp.eq.s32.totalorder %s41, 0
      %s44 = sadd.s32 %s43, 1
      %s45 = scalar_select %p42, %s43, %s44
      %p48 = pneg %p42
      %p49 = scmp.eq.s32.totalorder %s21, 1
      %p50 = por %p48, %p49
      %p51 = scmp.ne.s32.totalorder %s43, %s46
      %p52 = scmp.eq.s32.totalorder %s21, 0
      %p53 = por %p51, %p52
      %p54 = scmp.ne.s32.totalorder %s43, %s46
      %p55 = scmp.eq.s32.totalorder %s26, 1
      %p56 = por %p54, %p55
      %p57 = scmp.ne.s32.totalorder %s46, %s47
      %p58 = scmp.eq.s32.totalorder %s26, 0
      %p59 = por %p57, %p58
      %p60 = scmp.ne.s32.totalorder %s46, %s47
      %p61 = scmp.eq.s32.totalorder %s27, 1
      %p62 = por %p60, %p61
      %p64 = scmp.ne.s32.totalorder %s47, %s63
      %p65 = scmp.eq.s32.totalorder %s27, 0
      %p66 = por %p64, %p65
      %s67 = ssub.s32 %s29, %s36
      %p68 = scmp.eq.s32.totalorder %s67, 0
      %s70 = sadd.s32 %s69, 1
      %s71 = scalar_select %p68, %s69, %s70
      %p74 = pneg %p68
      %p75 = scmp.eq.s32.totalorder %s21, 1
      %p76 = por %p74, %p75
      %p77 = scmp.ne.s32.totalorder %s69, %s72
      %p78 = scmp.eq.s32.totalorder %s21, 0
      %p79 = por %p77, %p78
      %p80 = scmp.ne.s32.totalorder %s69, %s72
      %p81 = scmp.eq.s32.totalorder %s26, 1
      %p82 = por %p80, %p81
      %p83 = scmp.ne.s32.totalorder %s72, %s73
      %p84 = scmp.eq.s32.totalorder %s26, 0
      %p85 = por %p83, %p84
      %p86 = scmp.ne.s32.totalorder %s72, %s73
      %p87 = scmp.eq.s32.totalorder %s27, 1
      %p88 = por %p86, %p87
      %p90 = scmp.ne.s32.totalorder %s73, %s89
      %p91 = scmp.eq.s32.totalorder %s27, 0
      %p92 = por %p90, %p91
      %s93 = ssub.s32 %s29, %s36
      %p94 = scmp.eq.s32.totalorder %s93, 0
      %s96 = sadd.s32 %s95, 1
      %s97 = scalar_select %p94, %s95, %s96
      %p100 = pneg %p94
      %p101 = scmp.eq.s32.totalorder %s21, 1
      %p102 = por %p100, %p101
      %p103 = scmp.ne.s32.totalorder %s95, %s98
      %p104 = scmp.eq.s32.totalorder %s21, 0
      %p105 = por %p103, %p104
      %p106 = scmp.ne.s32.totalorder %s95, %s98
      %p107 = scmp.eq.s32.totalorder %s26, 1
      %p108 = por %p106, %p107
      %p109 = scmp.ne.s32.totalorder %s98, %s99
      %p110 = scmp.eq.s32.totalorder %s26, 0
      %p111 = por %p109, %p110
      %p112 = scmp.ne.s32.totalorder %s98, %s99
      %p113 = scmp.eq.s32.totalorder %s27, 1
      %p114 = por %p112, %p113
      %p116 = scmp.ne.s32.totalorder %s99, %s115
      %p117 = scmp.eq.s32.totalorder %s27, 0
      %p118 = por %p116, %p117
      %s119 = ssub.s32 %s29, %s36
      %p120 = scmp.eq.s32.totalorder %s119, 0
      %s122 = sadd.s32 %s121, 1
      %s123 = scalar_select %p120, %s121, %s122
      %p126 = pneg %p120
      %p127 = scmp.eq.s32.totalorder %s21, 1
      %p128 = por %p126, %p127
      %p129 = scmp.ne.s32.totalorder %s121, %s124
      %p130 = scmp.eq.s32.totalorder %s21, 0
      %p131 = por %p129, %p130
      %p132 = scmp.ne.s32.totalorder %s121, %s124
      %p133 = scmp.eq.s32.totalorder %s26, 1
      %p134 = por %p132, %p133
      %p135 = scmp.ne.s32.totalorder %s124, %s125
      %p136 = scmp.eq.s32.totalorder %s26, 0
      %p137 = por %p135, %p136
      %p138 = scmp.ne.s32.totalorder %s124, %s125
      %p139 = scmp.eq.s32.totalorder %s27, 1
      %p140 = por %p138, %p139
      %p142 = scmp.ne.s32.totalorder %s125, %s141
      %p143 = scmp.eq.s32.totalorder %s27, 0
      %p144 = por %p142, %p143
      %s145 = ssub.s32 %s29, %s36
      %p146 = scmp.eq.s32.totalorder %s145, 0
      %s148 = sadd.s32 %s147, 1
      %s149 = scalar_select %p146, %s147, %s148
      %p152 = pneg %p146
      %p153 = scmp.eq.s32.totalorder %s21, 1
      %p154 = por %p152, %p153
      %p155 = scmp.ne.s32.totalorder %s147, %s150
      %p156 = scmp.eq.s32.totalorder %s21, 0
      %p157 = por %p155, %p156
      %p158 = scmp.ne.s32.totalorder %s147, %s150
      %p159 = scmp.eq.s32.totalorder %s26, 1
      %p160 = por %p158, %p159
      %p161 = scmp.ne.s32.totalorder %s150, %s151
      %p162 = scmp.eq.s32.totalorder %s26, 0
      %p163 = por %p161, %p162
      %p164 = scmp.ne.s32.totalorder %s150, %s151
      %p165 = scmp.eq.s32.totalorder %s27, 1
      %p166 = por %p164, %p165
      %p168 = scmp.ne.s32.totalorder %s151, %s167
      %p169 = scmp.eq.s32.totalorder %s27, 0
      %p170 = por %p168, %p169
      %s171 = ssub.s32 %s29, %s36
      %p172 = scmp.eq.s32.totalorder %s171, 0
      %s174 = sadd.s32 %s173, 1
      %s175 = scalar_select %p172, %s173, %s174
      %p178 = pneg %p172
      %p179 = scmp.eq.s32.totalorder %s21, 1
      %p180 = por %p178, %p179
      %p181 = scmp.ne.s32.totalorder %s173, %s176
      %p182 = scmp.eq.s32.totalorder %s21, 0
      %p183 = por %p181, %p182
      %p184 = scmp.ne.s32.totalorder %s173, %s176
      %p185 = scmp.eq.s32.totalorder %s26, 1
      %p186 = por %p184, %p185
      %p187 = scmp.ne.s32.totalorder %s176, %s177
      %p188 = scmp.eq.s32.totalorder %s26, 0
      %p189 = por %p187, %p188
      %p190 = scmp.ne.s32.totalorder %s176, %s177
      %p191 = scmp.eq.s32.totalorder %s27, 1
      %p192 = por %p190, %p191
      %p194 = scmp.ne.s32.totalorder %s177, %s193
      %p195 = scmp.eq.s32.totalorder %s27, 0
      %p196 = por %p194, %p195
      %s197 = ssub.s32 %s29, %s36
      %p198 = scmp.eq.s32.totalorder %s197, 0
      %s200 = sadd.s32 %s199, 1
      %s201 = scalar_select %p198, %s199, %s200
      %p204 = pneg %p198
      %p205 = scmp.eq.s32.totalorder %s21, 1
      %p206 = por %p204, %p205
      %p207 = scmp.ne.s32.totalorder %s199, %s202
      %p208 = scmp.eq.s32.totalorder %s21, 0
      %p209 = por %p207, %p208
      %p210 = scmp.ne.s32.totalorder %s199, %s202
      %p211 = scmp.eq.s32.totalorder %s26, 1
      %p212 = por %p210, %p211
      %p213 = scmp.ne.s32.totalorder %s202, %s203
      %p214 = scmp.eq.s32.totalorder %s26, 0
      %p215 = por %p213, %p214
      %p216 = scmp.ne.s32.totalorder %s202, %s203
      %p217 = scmp.eq.s32.totalorder %s27, 1
      %p218 = por %p216, %p217
      %p220 = scmp.ne.s32.totalorder %s203, %s219
      %p221 = scmp.eq.s32.totalorder %s27, 0
      %p222 = por %p220, %p221
      %s223 = ssub.s32 %s29, %s36
      %p224 = scmp.eq.s32.totalorder %s223, 0
      %s226 = sadd.s32 %s225, 1
      %s227 = scalar_select %p224, %s225, %s226
      %p230 = pneg %p224
      %p231 = scmp.eq.s32.totalorder %s21, 1
      %p232 = por %p230, %p231
      %p233 = scmp.ne.s32.totalorder %s225, %s228
      %p234 = scmp.eq.s32.totalorder %s21, 0
      %p235 = por %p233, %p234
      %p236 = scmp.ne.s32.totalorder %s225, %s228
      %p237 = scmp.eq.s32.totalorder %s26, 1
      %p238 = por %p236, %p237
      %p239 = scmp.ne.s32.totalorder %s228, %s229
      %p240 = scmp.eq.s32.totalorder %s26, 0
      %p241 = por %p239, %p240
      %p242 = scmp.ne.s32.totalorder %s228, %s229
      %p243 = scmp.eq.s32.totalorder %s27, 1
      %p244 = por %p242, %p243
      %p246 = scmp.ne.s32.totalorder %s229, %s245
      %p247 = scmp.eq.s32.totalorder %s27, 0
      %p248 = por %p246, %p247
      %s249 = ssub.s32 %s29, %s36
      %p250 = scmp.eq.s32.totalorder %s249, 0
      %s252 = sadd.s32 %s251, 1
      %s253 = scalar_select %p250, %s251, %s252
      %p256 = pneg %p250
      %p257 = scmp.eq.s32.totalorder %s21, 1
      %p258 = por %p256, %p257
      %p259 = scmp.ne.s32.totalorder %s251, %s254
      %p260 = scmp.eq.s32.totalorder %s21, 0
      %p261 = por %p259, %p260
      %p262 = scmp.ne.s32.totalorder %s251, %s254
      %p263 = scmp.eq.s32.totalorder %s26, 1
      %p264 = por %p262, %p263
      %p265 = scmp.ne.s32.totalorder %s254, %s255
      %p266 = scmp.eq.s32.totalorder %s26, 0
      %p267 = por %p265, %p266
      %p268 = scmp.ne.s32.totalorder %s254, %s255
      %p269 = scmp.eq.s32.totalorder %s27, 1
      %p270 = por %p268, %p269
      %p272 = scmp.ne.s32.totalorder %s255, %s271
      %p273 = scmp.eq.s32.totalorder %s27, 0
      %p274 = por %p272, %p273
      %s275 = ssub.s32 %s29, %s36
      %p276 = scmp.eq.s32.totalorder %s275, 0
      %s278 = sadd.s32 %s277, 1
      %s279 = scalar_select %p276, %s277, %s278
      %p282 = pneg %p276
      %p283 = scmp.eq.s32.totalorder %s21, 1
      %p284 = por %p282, %p283
      %p285 = scmp.ne.s32.totalorder %s277, %s280
      %p286 = scmp.eq.s32.totalorder %s21, 0
      %p287 = por %p285, %p286
      %p288 = scmp.ne.s32.totalorder %s277, %s280
      %p289 = scmp.eq.s32.totalorder %s26, 1
      %p290 = por %p288, %p289
      %p291 = scmp.ne.s32.totalorder %s280, %s281
      %p292 = scmp.eq.s32.totalorder %s26, 0
      %p293 = por %p291, %p292
      %p294 = scmp.ne.s32.totalorder %s280, %s281
      %p295 = scmp.eq.s32.totalorder %s27, 1
      %p296 = por %p294, %p295
      %p298 = scmp.ne.s32.totalorder %s281, %s297
      %p299 = scmp.eq.s32.totalorder %s27, 0
      %p300 = por %p298, %p299
      %s301 = ssub.s32 %s29, %s36
      %p302 = scmp.eq.s32.totalorder %s301, 0
      %s304 = sadd.s32 %s303, 1
      %s305 = scalar_select %p302, %s303, %s304
      %p308 = pneg %p302
      %p309 = scmp.eq.s32.totalorder %s21, 1
      %p310 = por %p308, %p309
      %p311 = scmp.ne.s32.totalorder %s303, %s306
      %p312 = scmp.eq.s32.totalorder %s21, 0
      %p313 = por %p311, %p312
      %p314 = scmp.ne.s32.totalorder %s303, %s306
      %p315 = scmp.eq.s32.totalorder %s26, 1
      %p316 = por %p314, %p315
      %p317 = scmp.ne.s32.totalorder %s306, %s307
      %p318 = scmp.eq.s32.totalorder %s26, 0
      %p319 = por %p317, %p318
      %p320 = scmp.ne.s32.totalorder %s306, %s307
      %p321 = scmp.eq.s32.totalorder %s27, 1
      %p322 = por %p320, %p321
      %p324 = scmp.ne.s32.totalorder %s307, %s323
      %p325 = scmp.eq.s32.totalorder %s27, 0
      %p326 = por %p324, %p325
      %s327 = ssub.s32 %s29, %s36
      %p328 = scmp.eq.s32.totalorder %s327, 0
      %s330 = sadd.s32 %s329, 1
      %s331 = scalar_select %p328, %s329, %s330
      %p334 = pneg %p328
      %p335 = scmp.eq.s32.totalorder %s21, 1
      %p336 = por %p334, %p335
      %p337 = scmp.ne.s32.totalorder %s329, %s332
      %p338 = scmp.eq.s32.totalorder %s21, 0
      %p339 = por %p337, %p338
      %p340 = scmp.ne.s32.totalorder %s329, %s332
      %p341 = scmp.eq.s32.totalorder %s26, 1
      %p342 = por %p340, %p341
      %p343 = scmp.ne.s32.totalorder %s332, %s333
      %p344 = scmp.eq.s32.totalorder %s26, 0
      %p345 = por %p343, %p344
      %p346 = scmp.ne.s32.totalorder %s332, %s333
      %p347 = scmp.eq.s32.totalorder %s27, 1
      %p348 = por %p346, %p347
      %p350 = scmp.ne.s32.totalorder %s333, %s349
      %p351 = scmp.eq.s32.totalorder %s27, 0
      %p352 = por %p350, %p351
      %s353 = ssub.s32 %s29, %s36
      %p354 = scmp.eq.s32.totalorder %s353, 0
      %s356 = sadd.s32 %s355, 1
      %s357 = scalar_select %p354, %s355, %s356
      %p360 = pneg %p354
      %p361 = scmp.eq.s32.totalorder %s21, 1
      %p362 = por %p360, %p361
      %p363 = scmp.ne.s32.totalorder %s355, %s358
      %p364 = scmp.eq.s32.totalorder %s21, 0
      %p365 = por %p363, %p364
      %p366 = scmp.ne.s32.totalorder %s355, %s358
      %p367 = scmp.eq.s32.totalorder %s26, 1
      %p368 = por %p366, %p367
      %p369 = scmp.ne.s32.totalorder %s358, %s359
      %p370 = scmp.eq.s32.totalorder %s26, 0
      %p371 = por %p369, %p370
      %p372 = scmp.ne.s32.totalorder %s358, %s359
      %p373 = scmp.eq.s32.totalorder %s27, 1
      %p374 = por %p372, %p373
      %p376 = scmp.ne.s32.totalorder %s359, %s375
      %p377 = scmp.eq.s32.totalorder %s27, 0
      %p378 = por %p376, %p377
      %s379 = ssub.s32 %s28, %s40
      %p380 = scmp.eq.s32.totalorder %s379, 0
      %s382 = sadd.s32 %s381, 1
      %s383 = scalar_select %p380, %s381, %s382
      %p386 = pneg %p380
      %p387 = scmp.eq.s32.totalorder %s21, 1
      %p388 = por %p386, %p387
      %p389 = scmp.ne.s32.totalorder %s381, %s384
      %p390 = scmp.eq.s32.totalorder %s21, 0
      %p391 = por %p389, %p390
      %p392 = scmp.ne.s32.totalorder %s381, %s384
      %p393 = scmp.eq.s32.totalorder %s26, 1
      %p394 = por %p392, %p393
      %p395 = scmp.ne.s32.totalorder %s384, %s385
      %p396 = scmp.eq.s32.totalorder %s26, 0
      %p397 = por %p395, %p396
      %p398 = scmp.ne.s32.totalorder %s384, %s385
      %p399 = scmp.eq.s32.totalorder %s27, 1
      %p400 = por %p398, %p399
      %p402 = scmp.ne.s32.totalorder %s385, %s401
      %p403 = scmp.eq.s32.totalorder %s27, 0
      %p404 = por %p402, %p403
      %p405 = scmp.le.s32.totalorder 1, %s21
      %p406 = scmp.lt.s32.totalorder %s21, 3
      %p407 = pnand %p405, %p406
      %p408 = pneg %p407
      // Predicated region
      $region9: #{tpu_custom_call.1} parent=5 // pred_check
        _
      $region10: #{tpu_custom_call.1} parent=5 // pred_check_branch
        %410 = sbr.rel (%p407) target = $region12
      $region11: #{tpu_custom_call.1} parent=5 // pred_region
        %s411 = ssub.s32 %s21, 1
        // Predicated region
        $region13: #{tpu_custom_call.1} parent=11 // pred_check
          %p412 = pneg %p59
        $region14: #{tpu_custom_call.1} parent=11 // pred_check_branch
          %414 = sbr.rel (%p412) target = $region16
        $region15: #{tpu_custom_call.1} parent=11 // pred_region
          %s415 = smul.u32 2, %s30
          %s417 = ssub.s32 256, 256
          %418 = vsyncadd [#allocation4], %s417
          %s419 = smul.addr %s415, 128
          %s420 = scalar_lea.hbm %s0, %s419
          %s421 = sshll.u32 [#allocation3], 4
          %s422 = int_to_ptr.vmem [resolvable:$true] %s421
          %427 = dma.hbm_to_vmem [thread:$0]  %s420, 256, %s422, [#allocation4], 128, 128, 8
        $region16: #{tpu_custom_call.1} parent=11 // pred_fallthru
          _
      $region12: #{tpu_custom_call.1} parent=5 // pred_fallthru
        _
      %p428 = scmp.lt.s32.totalorder %s21, 2
      // Predicated region
      $region17: #{tpu_custom_call.1} parent=5 // pred_check
        %p429 = pneg %p428
      $region18: #{tpu_custom_call.1} parent=5 // pred_check_branch
        %431 = sbr.rel (%p429) target = $region20
      $region19: #{tpu_custom_call.1} parent=5 // pred_region
        // Predicated region
        $region21: #{tpu_custom_call.1} parent=19 // pred_check
          %p432 = pneg %p79
        $region22: #{tpu_custom_call.1} parent=19 // pred_check_branch
          %434 = sbr.rel (%p432) target = $region24
        $region23: #{tpu_custom_call.1} parent=19 // pred_region
          %p435 = scmp.lt.s32.totalorder %s29, 1
          %s436 = scalar_select %p435, %s29, 1
          %s437 = smul.addr %s436, 4
          %s438 = smul.addr %s437, 8
          %s439 = scalar_lea.vmem %s1, %s438
        $region24: #{tpu_custom_call.1} parent=19 // pred_fallthru
          _
        // Predicated region
        $region25: #{tpu_custom_call.1} parent=19 // pred_check
          %p440 = pneg %p105
        $region26: #{tpu_custom_call.1} parent=19 // pred_check_branch
          %442 = sbr.rel (%p440) target = $region28
        $region27: #{tpu_custom_call.1} parent=19 // pred_region
          %p443 = scmp.lt.s32.totalorder %s29, 1
          %s444 = scalar_select %p443, %s29, 1
          %s445 = scalar_lea.vmem %s2, %s444
        $region28: #{tpu_custom_call.1} parent=19 // pred_fallthru
          _
        // Predicated region
        $region29: #{tpu_custom_call.1} parent=19 // pred_check
          %p446 = pneg %p131
        $region30: #{tpu_custom_call.1} parent=19 // pred_check_branch
          %448 = sbr.rel (%p446) target = $region32
        $region31: #{tpu_custom_call.1} parent=19 // pred_region
          %p449 = scmp.lt.s32.totalorder %s29, 1
          %s450 = scalar_select %p449, %s29, 1
          %s451 = smul.addr %s450, 4
          %s452 = smul.addr %s451, 8
          %s453 = scalar_lea.vmem %s3, %s452
        $region32: #{tpu_custom_call.1} parent=19 // pred_fallthru
          _
        // Predicated region
        $region33: #{tpu_custom_call.1} parent=19 // pred_check
          %p454 = pneg %p157
        $region34: #{tpu_custom_call.1} parent=19 // pred_check_branch
          %456 = sbr.rel (%p454) target = $region36
        $region35: #{tpu_custom_call.1} parent=19 // pred_region
          %p457 = scmp.lt.s32.totalorder %s29, 1
          %s458 = scalar_select %p457, %s29, 1
          %s459 = scalar_lea.vmem %s4, %s458
        $region36: #{tpu_custom_call.1} parent=19 // pred_fallthru
          _
        // Predicated region
        $region37: #{tpu_custom_call.1} parent=19 // pred_check
          %p460 = pneg %p183
        $region38: #{tpu_custom_call.1} parent=19 // pred_check_branch
          %462 = sbr.rel (%p460) target = $region40
        $region39: #{tpu_custom_call.1} parent=19 // pred_region
          %p463 = scmp.lt.s32.totalorder %s29, 1
          %s464 = scalar_select %p463, %s29, 1
          %s465 = scalar_lea.vmem %s5, %s464
        $region40: #{tpu_custom_call.1} parent=19 // pred_fallthru
          _
        // Predicated region
        $region41: #{tpu_custom_call.1} parent=19 // pred_check
          %p466 = pneg %p209
        $region42: #{tpu_custom_call.1} parent=19 // pred_check_branch
          %468 = sbr.rel (%p466) target = $region44
        $region43: #{tpu_custom_call.1} parent=19 // pred_region
          %p469 = scmp.lt.s32.totalorder %s29, 1
          %s470 = scalar_select %p469, %s29, 1
          %s471 = scalar_lea.vmem %s6, %s470
        $region44: #{tpu_custom_call.1} parent=19 // pred_fallthru
          _
        // Predicated region
        $region45: #{tpu_custom_call.1} parent=19 // pred_check
          %p472 = pneg %p235
        $region46: #{tpu_custom_call.1} parent=19 // pred_check_branch
          %474 = sbr.rel (%p472) target = $region48
        $region47: #{tpu_custom_call.1} parent=19 // pred_region
          %p475 = scmp.lt.s32.totalorder %s29, 1
          %s476 = scalar_select %p475, %s29, 1
          %s477 = smul.addr %s476, 4
          %s478 = smul.addr %s477, 8
          %s479 = scalar_lea.vmem %s7, %s478
        $region48: #{tpu_custom_call.1} parent=19 // pred_fallthru
          _
        // Predicated region
        $region49: #{tpu_custom_call.1} parent=19 // pred_check
          %p480 = pneg %p261
        $region50: #{tpu_custom_call.1} parent=19 // pred_check_branch
          %482 = sbr.rel (%p480) target = $region52
        $region51: #{tpu_custom_call.1} parent=19 // pred_region
          %p483 = scmp.lt.s32.totalorder %s29, 1
          %s484 = scalar_select %p483, %s29, 1
          %s485 = scalar_lea.vmem %s8, %s484
        $region52: #{tpu_custom_call.1} parent=19 // pred_fallthru
          _
        // Predicated region
        $region53: #{tpu_custom_call.1} parent=19 // pred_check
          %p486 = pneg %p287
        $region54: #{tpu_custom_call.1} parent=19 // pred_check_branch
          %488 = sbr.rel (%p486) target = $region56
        $region55: #{tpu_custom_call.1} parent=19 // pred_region
          %p489 = scmp.lt.s32.totalorder %s29, 1
          %s490 = scalar_select %p489, %s29, 1
          %s491 = smul.addr %s490, 8
          %s492 = smul.addr %s491, 8
          %s493 = scalar_lea.vmem %s9, %s492
        $region56: #{tpu_custom_call.1} parent=19 // pred_fallthru
          _
        // Predicated region
        $region57: #{tpu_custom_call.1} parent=19 // pred_check
          %p494 = pneg %p313
        $region58: #{tpu_custom_call.1} parent=19 // pred_check_branch
          %496 = sbr.rel (%p494) target = $region60
        $region59: #{tpu_custom_call.1} parent=19 // pred_region
          %p497 = scmp.lt.s32.totalorder %s29, 1
          %s498 = scalar_select %p497, %s29, 1
          %s499 = scalar_lea.vmem %s10, %s498
        $region60: #{tpu_custom_call.1} parent=19 // pred_fallthru
          _
        // Predicated region
        $region61: #{tpu_custom_call.1} parent=19 // pred_check
          %p500 = pneg %p339
        $region62: #{tpu_custom_call.1} parent=19 // pred_check_branch
          %502 = sbr.rel (%p500) target = $region64
        $region63: #{tpu_custom_call.1} parent=19 // pred_region
          %p503 = scmp.lt.s32.totalorder %s29, 1
          %s504 = scalar_select %p503, %s29, 1
          %s505 = scalar_lea.vmem %s11, %s504
        $region64: #{tpu_custom_call.1} parent=19 // pred_fallthru
          _
        // Predicated region
        $region65: #{tpu_custom_call.1} parent=19 // pred_check
          %p506 = pneg %p365
        $region66: #{tpu_custom_call.1} parent=19 // pred_check_branch
          %508 = sbr.rel (%p506) target = $region68
        $region67: #{tpu_custom_call.1} parent=19 // pred_region
          %p509 = scmp.lt.s32.totalorder %s29, 1
          %s510 = scalar_select %p509, %s29, 1
          %s511 = scalar_lea.vmem %s12, %s510
        $region68: #{tpu_custom_call.1} parent=19 // pred_fallthru
          _
      $region20: #{tpu_custom_call.1} parent=5 // pred_fallthru
        _
      %p512 = scmp.le.s32.totalorder 1, %s21
      %p513 = scmp.lt.s32.totalorder %s21, 3
      %p514 = pnand %p512, %p513
      %p515 = pneg %p514
      // Predicated region
      $region69: #{tpu_custom_call.1} parent=5 // pred_check
        _
      $region70: #{tpu_custom_call.1} parent=5 // pred_check_branch
        %517 = sbr.rel (%p514) target = $region72
      $region71: #{tpu_custom_call.1} parent=5 // pred_region
        %s518 = ssub.s32 %s21, 1
        // Predicated region
        $region73: #{tpu_custom_call.1} parent=71 // pred_check
          %p519 = pneg %p59
        $region74: #{tpu_custom_call.1} parent=71 // pred_check_branch
          %521 = sbr.rel (%p519) target = $region76
        $region75: #{tpu_custom_call.1} parent=71 // pred_region
          %522 = dma.done [#allocation4], 256
        $region76: #{tpu_custom_call.1} parent=71 // pred_fallthru
          _
        %p523 = pneg %p59
        %p524 = pneg %p56
        %p525 = scmp.lt.s32.totalorder %s31, 1
        %s526 = scalar_select %p525, %s31, 1
        %s527 = smul.addr %s526, 4
        %s528 = smul.addr %s527, 8
        %s529 = scalar_lea.vmem %s1, %s528
        %p530 = pneg %p85
        %p531 = pneg %p82
        %p532 = scmp.lt.s32.totalorder %s31, 1
        %s533 = scalar_select %p532, %s31, 1
        %s534 = scalar_lea.vmem %s2, %s533
        %p535 = pneg %p111
        %p536 = pneg %p108
        %p537 = scmp.lt.s32.totalorder %s31, 1
        %s538 = scalar_select %p537, %s31, 1
        %s539 = smul.addr %s538, 4
        %s540 = smul.addr %s539, 8
        %s541 = scalar_lea.vmem %s3, %s540
        %p542 = pneg %p137
        %p543 = pneg %p134
        %p544 = scmp.lt.s32.totalorder %s31, 1
        %s545 = scalar_select %p544, %s31, 1
        %s546 = scalar_lea.vmem %s4, %s545
        %p547 = pneg %p163
        %p548 = pneg %p160
        %p549 = scmp.lt.s32.totalorder %s31, 1
        %s550 = scalar_select %p549, %s31, 1
        %s551 = scalar_lea.vmem %s5, %s550
        %p552 = pneg %p189
        %p553 = pneg %p186
        %p554 = scmp.lt.s32.totalorder %s31, 1
        %s555 = scalar_select %p554, %s31, 1
        %s556 = scalar_lea.vmem %s6, %s555
        %p557 = pneg %p215
        %p558 = pneg %p212
        %p559 = scmp.lt.s32.totalorder %s31, 1
        %s560 = scalar_select %p559, %s31, 1
        %s561 = smul.addr %s560, 4
        %s562 = smul.addr %s561, 8
        %s563 = scalar_lea.vmem %s7, %s562
        %p564 = pneg %p241
        %p565 = pneg %p238
        %p566 = scmp.lt.s32.totalorder %s31, 1
        %s567 = scalar_select %p566, %s31, 1
        %s568 = scalar_lea.vmem %s8, %s567
        %p569 = pneg %p267
        %p570 = pneg %p264
        %p571 = scmp.lt.s32.totalorder %s31, 1
        %s572 = scalar_select %p571, %s31, 1
        %s573 = smul.addr %s572, 8
        %s574 = smul.addr %s573, 8
        %s575 = scalar_lea.vmem %s9, %s574
        %p576 = pneg %p293
        %p577 = pneg %p290
        %p578 = scmp.lt.s32.totalorder %s31, 1
        %s579 = scalar_select %p578, %s31, 1
        %s580 = scalar_lea.vmem %s10, %s579
        %p581 = pneg %p319
        %p582 = pneg %p316
        %p583 = scmp.lt.s32.totalorder %s31, 1
        %s584 = scalar_select %p583, %s31, 1
        %s585 = scalar_lea.vmem %s11, %s584
        %p586 = pneg %p345
        %p587 = pneg %p342
        %p588 = scmp.lt.s32.totalorder %s31, 1
        %s589 = scalar_select %p588, %s31, 1
        %s590 = scalar_lea.vmem %s12, %s589
        %p591 = pneg %p371
        %p592 = pneg %p368
        %p593 = pneg %p397
        %p594 = pneg %p394
        %s595 = smul.u32 2, %s30
        %p596 = scmp.lt.s32.totalorder %s31, 1
        %s597 = scalar_select %p596, %s31, 1
        %s598 = smul.addr %s597, 4
        %s599 = smul.addr %s598, 8
        %s600 = scalar_lea.vmem %s1, %s599
        %p601 = scmp.lt.s32.totalorder %s31, 1
        %s602 = scalar_select %p601, %s31, 1
        %s603 = scalar_lea.vmem %s2, %s602
        %p604 = scmp.lt.s32.totalorder %s31, 1
        %s605 = scalar_select %p604, %s31, 1
        %s606 = smul.addr %s605, 4
        %s607 = smul.addr %s606, 8
        %s608 = scalar_lea.vmem %s3, %s607
        %p609 = scmp.lt.s32.totalorder %s31, 1
        %s610 = scalar_select %p609, %s31, 1
        %s611 = scalar_lea.vmem %s4, %s610
        %p612 = scmp.lt.s32.totalorder %s31, 1
        %s613 = scalar_select %p612, %s31, 1
        %s614 = scalar_lea.vmem %s5, %s613
        %p615 = scmp.lt.s32.totalorder %s31, 1
        %s616 = scalar_select %p615, %s31, 1
        %s617 = scalar_lea.vmem %s6, %s616
        %p618 = scmp.lt.s32.totalorder %s31, 1
        %s619 = scalar_select %p618, %s31, 1
        %s620 = smul.addr %s619, 4
        %s621 = smul.addr %s620, 8
        %s622 = scalar_lea.vmem %s7, %s621
        %p623 = scmp.lt.s32.totalorder %s31, 1
        %s624 = scalar_select %p623, %s31, 1
        %s625 = scalar_lea.vmem %s8, %s624
        %p626 = scmp.lt.s32.totalorder %s31, 1
        %s627 = scalar_select %p626, %s31, 1
        %s628 = smul.addr %s627, 8
        %s629 = smul.addr %s628, 8
        %s630 = scalar_lea.vmem %s9, %s629
        %p631 = scmp.lt.s32.totalorder %s31, 1
        %s632 = scalar_select %p631, %s31, 1
        %s633 = scalar_lea.vmem %s10, %s632
        %p634 = scmp.lt.s32.totalorder %s31, 1
        %s635 = scalar_select %p634, %s31, 1
        %s636 = scalar_lea.vmem %s11, %s635
        %p637 = scmp.lt.s32.totalorder %s31, 1
        %s638 = scalar_select %p637, %s31, 1
        %s639 = scalar_lea.vmem %s12, %s638
        %s640 = smul.u32 2, %s30
        %p641 = scmp.eq.s32.totalorder %s31, 0
        // Predicated region
        $region77: #{tpu_custom_call.1} parent=71 // pred_check
          %p642 = pneg %p641
        $region78: #{tpu_custom_call.1} parent=71 // pred_check_branch
          %644 = sbr.rel (%p642) target = $region80
        $region79: #{tpu_custom_call.1} parent=71 // pred_region
          %v645 = vld [vmem:[#allocation3] sm:$0xff]
          %v646 = vld [vmem:[#allocation3 + $0x8] sm:$0xff]
          %vm647 = vcmask 261120
          %648 = vst.msk [vmem:[#allocation2] sm:$0xff] %vm647, %v645
          %649 = vst.msk [vmem:[#allocation2 + $0x8] sm:$0xff] %vm647, %v646
        $region80: #{tpu_custom_call.1} parent=71 // pred_fallthru
          _
        %v650 = vld [vmem:[#allocation2] sm:$0xff]
        %v651 = vld [vmem:[#allocation2 + $0x8] sm:$0xff]
        %v652 = vld [vmem:[%s600] sm:$0xff]
        %v653 = vld [vmem:[%s600 + $0x8] sm:$0xff]
        %v654 = vld [vmem:[%s600 + $0x10] sm:$0xff]
        %v655 = vld [vmem:[%s600 + $0x18] sm:$0xff]
        %v656 = vld [vmem:[%s603] sm:$0x1]
        %v658 = vlaneseq
        %v659 = vshrl.u32 %v658, 7
        %v660 = vsub.s32 0, %v659
        %v661 = vrot.slane %v656, %v660
        %vm663 = vcmask 261120
        %v665 = vsel %vm663, %v650, 0
        %v668 = vsel %vm663, %v651, 0
        %670 = vmatprep.subr.mxu0 0.0
        %671 = vmatpush1.msra.mxu0 %v652
        %672 = vmatprep.subr.mxu0 0.0
        %673 = vmatpush1.msra.mxu0 %v653
        %674 = vmatprep.subr.mxu0 0.0
        %675 = vmatpush1.msra.mxu0 %v654
        %676 = vmatprep.subr.mxu0 0.0
        %677 = vmatpush1.msra.mxu0 %v655
        %678 = vmatprep.subr.mxu0 0.0
        %679 = vmatpush1.msra.mxu0 0.0
        %680 = vmatprep.subr.mxu0 0.0
        %681 = vmatpush1.msra.mxu0 0.0
        %682 = vmatprep.subr.mxu0 0.0
        %683 = vmatpush1.msra.mxu0 0.0
        %684 = vmatprep.subr.mxu0 0.0
        %685 = vmatpush1.msra.mxu0 0.0
        %686 = vmatprep.subr.mxu0 0.0
        %687 = vmatpush1.msra.mxu0 0.0
        %688 = vmatprep.subr.mxu0 0.0
        %689 = vmatpush1.msra.mxu0 0.0
        %690 = vmatprep.subr.mxu0 0.0
        %691 = vmatpush1.msra.mxu0 0.0
        %692 = vmatprep.subr.mxu0 0.0
        %693 = vmatpush1.msra.mxu0 0.0
        %694 = vmatprep.subr.mxu0 0.0
        %695 = vmatpush1.msra.mxu0 0.0
        %696 = vmatprep.subr.mxu0 0.0
        %697 = vmatpush1.msra.mxu0 0.0
        %698 = vmatprep.subr.mxu0 0.0
        %699 = vmatpush1.msra.mxu0 0.0
        %700 = vmatprep.subr.mxu0 0.0
        %701 = vmatpush1.msra.mxu0 0.0
        %702 = vmatprep.subr.mxu0 0.0
        %703 = vmatpush1.msra.mxu0 0.0
        %704 = vmatprep.subr.mxu0 0.0
        %705 = vmatpush1.msra.mxu0 0.0
        %706 = vmatprep.subr.mxu0 0.0
        %707 = vmatpush1.msra.mxu0 0.0
        %708 = vmatprep.subr.mxu0 0.0
        %709 = vmatpush1.msra.mxu0 0.0
        %710 = vmatprep.subr.mxu0 0.0
        %711 = vmatpush1.msra.mxu0 0.0
        %712 = vmatprep.subr.mxu0 0.0
        %713 = vmatpush1.msra.mxu0 0.0
        %714 = vmatprep.subr.mxu0 0.0
        %715 = vmatpush1.msra.mxu0 0.0
        %716 = vmatprep.subr.mxu0 0.0
        %717 = vmatpush1.msra.mxu0 0.0
        %718 = vmatprep.subr.mxu0 0.0
        %719 = vmatpush1.msra.mxu0 0.0
        %720 = vmatprep.subr.mxu0 0.0
        %721 = vmatpush1.msra.mxu0 0.0
        %722 = vmatprep.subr.mxu0 0.0
        %723 = vmatpush1.msra.mxu0 0.0
        %724 = vmatprep.subr.mxu0 0.0
        %725 = vmatpush1.msra.mxu0 0.0
        %726 = vmatprep.subr.mxu0 0.0
        %727 = vmatpush1.msra.mxu0 0.0
        %728 = vmatprep.subr.mxu0 0.0
        %729 = vmatpush1.msra.mxu0 0.0
        %730 = vmatprep.subr.mxu0 0.0
        %731 = vmatpush1.msra.mxu0 0.0
        %732 = vmatprep.subr.mxu0 0.0
        %733 = vmatpush1.msra.mxu0 0.0
        %734 = vmatprep.mubr.f32.mxu0 0.0
        %735 = vmatmul.mubr.f32.gmra.mrb[0].mxu0 %v665
        %v736 = vpop.f32.mrb[0].mxu0
        %v737 = vadd.f32 %v661, %v736
        %v738 = vpop.f32.mrb[0].mxu0
        %739 = vmatprep.mubr.f32.mxu0 0.0
        %740 = vmatmul.mubr.f32.gmra.mrb[0].mxu0 %v668
        %v741 = vpop.f32.mrb[0].mxu0
        %v742 = vadd.f32 %v661, %v741
        %v743 = vpop.f32.mrb[0].mxu0
        %744 = vdwg.mxu0
        %747 = vrot.lane.b32.xlu0 %v737, 120
        %v748 = vpop.permute.xlu0 %747
        %749 = vrot.lane.b32.xlu0 %v742, 120
        %v750 = vpop.permute.xlu0 %749
        %753 = vrot.lane.b32.xlu0 %v737, 112
        %v754 = vpop.permute.xlu0 %753
        %755 = vrot.lane.b32.xlu0 %v742, 112
        %v756 = vpop.permute.xlu0 %755
        %759 = vrot.lane.b32.xlu0 %v737, 104
        %v760 = vpop.permute.xlu0 %759
        %761 = vrot.lane.b32.xlu0 %v742, 104
        %v762 = vpop.permute.xlu0 %761
        %v765 = vcombine.low %v737, %v754
        %v766 = vcombine.high %v737, %v754
        %v768 = vunpack.c.l.s4 1983009808
        %v769 = vunpack.c.0.s8 %v768
        %v770 = vlaneseq
        %v771 = vshrl.u32 %v770, 7
        %v772 = vsub.s32 %v769, %v771
        %v773 = vrot.slane %v765, %v772
        %v775 = vunpack.c.l.s4 1983009808
        %v776 = vunpack.c.0.s8 %v775
        %v777 = vlaneseq
        %v778 = vshrl.u32 %v777, 7
        %v779 = vsub.s32 %v776, %v778
        %v780 = vrot.slane %v766, %v779
        %v781 = vcombine.low %v748, %v760
        %v782 = vcombine.high %v748, %v760
        %v784 = vunpack.c.l.s4 1983009808
        %v785 = vunpack.c.0.s8 %v784
        %v786 = vlaneseq
        %v787 = vshrl.u32 %v786, 7
        %v788 = vsub.s32 %v785, %v787
        %v789 = vrot.slane %v781, %v788
        %v791 = vunpack.c.l.s4 1983009808
        %v792 = vunpack.c.0.s8 %v791
        %v793 = vlaneseq
        %v794 = vshrl.u32 %v793, 7
        %v795 = vsub.s32 %v792, %v794
        %v796 = vrot.slane %v782, %v795
        %v797 = vcombine.low %v773, %v789
        %v798 = vcombine.high %v773, %v789
        %v800 = vunpack.c.l.s4 1934713408
        %v801 = vunpack.c.0.s8 %v800
        %v802 = vlaneseq
        %v803 = vshrl.u32 %v802, 7
        %v804 = vsub.s32 %v801, %v803
        %v805 = vrot.slane %v797, %v804
        %v807 = vunpack.c.l.s4 1934713408
        %v808 = vunpack.c.0.s8 %v807
        %v809 = vlaneseq
        %v810 = vshrl.u32 %v809, 7
        %v811 = vsub.s32 %v808, %v810
        %v812 = vrot.slane %v798, %v811
        %v813 = vcombine.low %v780, %v796
        %v814 = vcombine.high %v780, %v796
        %v816 = vunpack.c.l.s4 1934713408
        %v817 = vunpack.c.0.s8 %v816
        %v818 = vlaneseq
        %v819 = vshrl.u32 %v818, 7
        %v820 = vsub.s32 %v817, %v819
        %v821 = vrot.slane %v813, %v820
        %v823 = vunpack.c.l.s4 1934713408
        %v824 = vunpack.c.0.s8 %v823
        %v825 = vlaneseq
        %v826 = vshrl.u32 %v825, 7
        %v827 = vsub.s32 %v824, %v826
        %v828 = vrot.slane %v814, %v827
        %v829 = vcombine.high %v805, 0.0
        %v830 = vcombine.high %v812, 0.0
        %v831 = vcombine.high %v821, 0.0
        %v832 = vcombine.high %v828, 0.0
        %v833 = vcombine.low %v742, %v756
        %v834 = vcombine.high %v742, %v756
        %v836 = vunpack.c.l.s4 1983009808
        %v837 = vunpack.c.0.s8 %v836
        %v838 = vlaneseq
        %v839 = vshrl.u32 %v838, 7
        %v840 = vsub.s32 %v837, %v839
        %v841 = vrot.slane %v833, %v840
        %v843 = vunpack.c.l.s4 1983009808
        %v844 = vunpack.c.0.s8 %v843
        %v845 = vlaneseq
        %v846 = vshrl.u32 %v845, 7
        %v847 = vsub.s32 %v844, %v846
        %v848 = vrot.slane %v834, %v847
        %v849 = vcombine.low %v750, %v762
        %v850 = vcombine.high %v750, %v762
        %v852 = vunpack.c.l.s4 1983009808
        %v853 = vunpack.c.0.s8 %v852
        %v854 = vlaneseq
        %v855 = vshrl.u32 %v854, 7
        %v856 = vsub.s32 %v853, %v855
        %v857 = vrot.slane %v849, %v856
        %v859 = vunpack.c.l.s4 1983009808
        %v860 = vunpack.c.0.s8 %v859
        %v861 = vlaneseq
        %v862 = vshrl.u32 %v861, 7
        %v863 = vsub.s32 %v860, %v862
        %v864 = vrot.slane %v850, %v863
        %v865 = vcombine.low %v841, %v857
        %v866 = vcombine.high %v841, %v857
        %v868 = vunpack.c.l.s4 1934713408
        %v869 = vunpack.c.0.s8 %v868
        %v870 = vlaneseq
        %v871 = vshrl.u32 %v870, 7
        %v872 = vsub.s32 %v869, %v871
        %v873 = vrot.slane %v865, %v872
        %v875 = vunpack.c.l.s4 1934713408
        %v876 = vunpack.c.0.s8 %v875
        %v877 = vlaneseq
        %v878 = vshrl.u32 %v877, 7
        %v879 = vsub.s32 %v876, %v878
        %v880 = vrot.slane %v866, %v879
        %v881 = vcombine.low %v848, %v864
        %v882 = vcombine.high %v848, %v864
        %v884 = vunpack.c.l.s4 1934713408
        %v885 = vunpack.c.0.s8 %v884
        %v886 = vlaneseq
        %v887 = vshrl.u32 %v886, 7
        %v888 = vsub.s32 %v885, %v887
        %v889 = vrot.slane %v881, %v888
        %v891 = vunpack.c.l.s4 1934713408
        %v892 = vunpack.c.0.s8 %v891
        %v893 = vlaneseq
        %v894 = vshrl.u32 %v893, 7
        %v895 = vsub.s32 %v892, %v894
        %v896 = vrot.slane %v882, %v895
        %v897 = vcombine.high %v873, 0.0
        %v898 = vcombine.high %v880, 0.0
        %v899 = vcombine.high %v889, 0.0
        %v900 = vcombine.high %v896, 0.0
        %v901 = vcombine.low %v805, %v812
        %v903 = vunpack.c.l.s4 1983009808
        %v904 = vunpack.c.0.s8 %v903
        %v905 = vlaneseq
        %v906 = vshrl.u32 %v905, 7
        %v907 = vsub.s32 %v904, %v906
        %v908 = vrot.slane %v901, %v907
        %v909 = vcombine.low %v829, %v830
        %v911 = vunpack.c.l.s4 1983009808
        %v912 = vunpack.c.0.s8 %v911
        %v913 = vlaneseq
        %v914 = vshrl.u32 %v913, 7
        %v915 = vsub.s32 %v912, %v914
        %v916 = vrot.slane %v909, %v915
        %v917 = vcombine.low %v821, %v828
        %v919 = vunpack.c.l.s4 1983009808
        %v920 = vunpack.c.0.s8 %v919
        %v921 = vlaneseq
        %v922 = vshrl.u32 %v921, 7
        %v923 = vsub.s32 %v920, %v922
        %v924 = vrot.slane %v917, %v923
        %v925 = vcombine.low %v831, %v832
        %v927 = vunpack.c.l.s4 1983009808
        %v928 = vunpack.c.0.s8 %v927
        %v929 = vlaneseq
        %v930 = vshrl.u32 %v929, 7
        %v931 = vsub.s32 %v928, %v930
        %v932 = vrot.slane %v925, %v931
        %v933 = vcombine.low %v908, %v916
        %v934 = vcombine.high %v908, %v916
        %v936 = vunpack.c.l.s4 1934713408
        %v937 = vunpack.c.0.s8 %v936
        %v938 = vlaneseq
        %v939 = vshrl.u32 %v938, 7
        %v940 = vsub.s32 %v937, %v939
        %v941 = vrot.slane %v933, %v940
        %v943 = vunpack.c.l.s4 1934713408
        %v944 = vunpack.c.0.s8 %v943
        %v945 = vlaneseq
        %v946 = vshrl.u32 %v945, 7
        %v947 = vsub.s32 %v944, %v946
        %v948 = vrot.slane %v934, %v947
        %v949 = vcombine.low %v924, %v932
        %v950 = vcombine.high %v924, %v932
        %v952 = vunpack.c.l.s4 1934713408
        %v953 = vunpack.c.0.s8 %v952
        %v954 = vlaneseq
        %v955 = vshrl.u32 %v954, 7
        %v956 = vsub.s32 %v953, %v955
        %v957 = vrot.slane %v949, %v956
        %v959 = vunpack.c.l.s4 1934713408
        %v960 = vunpack.c.0.s8 %v959
        %v961 = vlaneseq
        %v962 = vshrl.u32 %v961, 7
        %v963 = vsub.s32 %v960, %v962
        %v964 = vrot.slane %v950, %v963
        %v965 = vcombine.low %v941, %v957
        %v966 = vcombine.high %v941, %v957
        %v967 = vcombine.low %v948, %v964
        %v968 = vcombine.high %v948, %v964
        %v969 = vcombine.low %v873, %v880
        %v971 = vunpack.c.l.s4 1983009808
        %v972 = vunpack.c.0.s8 %v971
        %v973 = vlaneseq
        %v974 = vshrl.u32 %v973, 7
        %v975 = vsub.s32 %v972, %v974
        %v976 = vrot.slane %v969, %v975
        %v977 = vcombine.low %v897, %v898
        %v979 = vunpack.c.l.s4 1983009808
        %v980 = vunpack.c.0.s8 %v979
        %v981 = vlaneseq
        %v982 = vshrl.u32 %v981, 7
        %v983 = vsub.s32 %v980, %v982
        %v984 = vrot.slane %v977, %v983
        %v985 = vcombine.low %v889, %v896
        %v987 = vunpack.c.l.s4 1983009808
        %v988 = vunpack.c.0.s8 %v987
        %v989 = vlaneseq
        %v990 = vshrl.u32 %v989, 7
        %v991 = vsub.s32 %v988, %v990
        %v992 = vrot.slane %v985, %v991
        %v993 = vcombine.low %v899, %v900
        %v995 = vunpack.c.l.s4 1983009808
        %v996 = vunpack.c.0.s8 %v995
        %v997 = vlaneseq
        %v998 = vshrl.u32 %v997, 7
        %v999 = vsub.s32 %v996, %v998
        %v1000 = vrot.slane %v993, %v999
        %v1001 = vcombine.low %v976, %v984
        %v1002 = vcombine.high %v976, %v984
        %v1004 = vunpack.c.l.s4 1934713408
        %v1005 = vunpack.c.0.s8 %v1004
        %v1006 = vlaneseq
        %v1007 = vshrl.u32 %v1006, 7
        %v1008 = vsub.s32 %v1005, %v1007
        %v1009 = vrot.slane %v1001, %v1008
        %v1011 = vunpack.c.l.s4 1934713408
        %v1012 = vunpack.c.0.s8 %v1011
        %v1013 = vlaneseq
        %v1014 = vshrl.u32 %v1013, 7
        %v1015 = vsub.s32 %v1012, %v1014
        %v1016 = vrot.slane %v1002, %v1015
        %v1017 = vcombine.low %v992, %v1000
        %v1018 = vcombine.high %v992, %v1000
        %v1020 = vunpack.c.l.s4 1934713408
        %v1021 = vunpack.c.0.s8 %v1020
        %v1022 = vlaneseq
        %v1023 = vshrl.u32 %v1022, 7
        %v1024 = vsub.s32 %v1021, %v1023
        %v1025 = vrot.slane %v1017, %v1024
        %v1027 = vunpack.c.l.s4 1934713408
        %v1028 = vunpack.c.0.s8 %v1027
        %v1029 = vlaneseq
        %v1030 = vshrl.u32 %v1029, 7
        %v1031 = vsub.s32 %v1028, %v1030
        %v1032 = vrot.slane %v1018, %v1031
        %v1033 = vcombine.low %v1009, %v1025
        %v1034 = vcombine.high %v1009, %v1025
        %v1035 = vcombine.low %v1016, %v1032
        %v1036 = vcombine.high %v1016, %v1032
        %1037 = vrot.lane.b32.xlu0 %v737, 96
        %v1038 = vpop.permute.xlu0 %1037
        %1039 = vrot.lane.b32.xlu0 %v742, 96
        %v1040 = vpop.permute.xlu0 %1039
        %1041 = vrot.lane.b32.xlu0 %v748, 96
        %v1042 = vpop.permute.xlu0 %1041
        %1043 = vrot.lane.b32.xlu0 %v750, 96
        %v1044 = vpop.permute.xlu0 %1043
        %1045 = vrot.lane.b32.xlu0 %v754, 96
        %v1046 = vpop.permute.xlu0 %1045
        %1047 = vrot.lane.b32.xlu0 %v756, 96
        %v1048 = vpop.permute.xlu0 %1047
        %1049 = vrot.lane.b32.xlu0 %v760, 96
        %v1050 = vpop.permute.xlu0 %1049
        %1051 = vrot.lane.b32.xlu0 %v762, 96
        %v1052 = vpop.permute.xlu0 %1051
        %v1061 = vcombine.low %v1038, %v1046
        %v1062 = vcombine.high %v1038, %v1046
        %v1064 = vunpack.c.l.s4 1983009808
        %v1065 = vunpack.c.0.s8 %v1064
        %v1066 = vlaneseq
        %v1067 = vshrl.u32 %v1066, 7
        %v1068 = vsub.s32 %v1065, %v1067
        %v1069 = vrot.slane %v1061, %v1068
        %v1071 = vunpack.c.l.s4 1983009808
        %v1072 = vunpack.c.0.s8 %v1071
        %v1073 = vlaneseq
        %v1074 = vshrl.u32 %v1073, 7
        %v1075 = vsub.s32 %v1072, %v1074
        %v1076 = vrot.slane %v1062, %v1075
        %v1077 = vcombine.low %v1042, %v1050
        %v1078 = vcombine.high %v1042, %v1050
        %v1080 = vunpack.c.l.s4 1983009808
        %v1081 = vunpack.c.0.s8 %v1080
        %v1082 = vlaneseq
        %v1083 = vshrl.u32 %v1082, 7
        %v1084 = vsub.s32 %v1081, %v1083
        %v1085 = vrot.slane %v1077, %v1084
        %v1087 = vunpack.c.l.s4 1983009808
        %v1088 = vunpack.c.0.s8 %v1087
        %v1089 = vlaneseq
        %v1090 = vshrl.u32 %v1089, 7
        %v1091 = vsub.s32 %v1088, %v1090
        %v1092 = vrot.slane %v1078, %v1091
        %v1093 = vcombine.low %v1069, %v1085
        %v1094 = vcombine.high %v1069, %v1085
        %v1096 = vunpack.c.l.s4 1934713408
        %v1097 = vunpack.c.0.s8 %v1096
        %v1098 = vlaneseq
        %v1099 = vshrl.u32 %v1098, 7
        %v1100 = vsub.s32 %v1097, %v1099
        %v1101 = vrot.slane %v1093, %v1100
        %v1103 = vunpack.c.l.s4 1934713408
        %v1104 = vunpack.c.0.s8 %v1103
        %v1105 = vlaneseq
        %v1106 = vshrl.u32 %v1105, 7
        %v1107 = vsub.s32 %v1104, %v1106
        %v1108 = vrot.slane %v1094, %v1107
        %v1109 = vcombine.low %v1076, %v1092
        %v1110 = vcombine.high %v1076, %v1092
        %v1112 = vunpack.c.l.s4 1934713408
        %v1113 = vunpack.c.0.s8 %v1112
        %v1114 = vlaneseq
        %v1115 = vshrl.u32 %v1114, 7
        %v1116 = vsub.s32 %v1113, %v1115
        %v1117 = vrot.slane %v1109, %v1116
        %v1119 = vunpack.c.l.s4 1934713408
        %v1120 = vunpack.c.0.s8 %v1119
        %v1121 = vlaneseq
        %v1122 = vshrl.u32 %v1121, 7
        %v1123 = vsub.s32 %v1120, %v1122
        %v1124 = vrot.slane %v1110, %v1123
        %v1125 = vcombine.high %v1101, 0.0
        %v1126 = vcombine.high %v1108, 0.0
        %v1127 = vcombine.high %v1117, 0.0
        %v1128 = vcombine.high %v1124, 0.0
        %v1129 = vcombine.low %v1040, %v1048
        %v1130 = vcombine.high %v1040, %v1048
        %v1132 = vunpack.c.l.s4 1983009808
        %v1133 = vunpack.c.0.s8 %v1132
        %v1134 = vlaneseq
        %v1135 = vshrl.u32 %v1134, 7
        %v1136 = vsub.s32 %v1133, %v1135
        %v1137 = vrot.slane %v1129, %v1136
        %v1139 = vunpack.c.l.s4 1983009808
        %v1140 = vunpack.c.0.s8 %v1139
        %v1141 = vlaneseq
        %v1142 = vshrl.u32 %v1141, 7
        %v1143 = vsub.s32 %v1140, %v1142
        %v1144 = vrot.slane %v1130, %v1143
        %v1145 = vcombine.low %v1044, %v1052
        %v1146 = vcombine.high %v1044, %v1052
        %v1148 = vunpack.c.l.s4 1983009808
        %v1149 = vunpack.c.0.s8 %v1148
        %v1150 = vlaneseq
        %v1151 = vshrl.u32 %v1150, 7
        %v1152 = vsub.s32 %v1149, %v1151
        %v1153 = vrot.slane %v1145, %v1152
        %v1155 = vunpack.c.l.s4 1983009808
        %v1156 = vunpack.c.0.s8 %v1155
        %v1157 = vlaneseq
        %v1158 = vshrl.u32 %v1157, 7
        %v1159 = vsub.s32 %v1156, %v1158
        %v1160 = vrot.slane %v1146, %v1159
        %v1161 = vcombine.low %v1137, %v1153
        %v1162 = vcombine.high %v1137, %v1153
        %v1164 = vunpack.c.l.s4 1934713408
        %v1165 = vunpack.c.0.s8 %v1164
        %v1166 = vlaneseq
        %v1167 = vshrl.u32 %v1166, 7
        %v1168 = vsub.s32 %v1165, %v1167
        %v1169 = vrot.slane %v1161, %v1168
        %v1171 = vunpack.c.l.s4 1934713408
        %v1172 = vunpack.c.0.s8 %v1171
        %v1173 = vlaneseq
        %v1174 = vshrl.u32 %v1173, 7
        %v1175 = vsub.s32 %v1172, %v1174
        %v1176 = vrot.slane %v1162, %v1175
        %v1177 = vcombine.low %v1144, %v1160
        %v1178 = vcombine.high %v1144, %v1160
        %v1180 = vunpack.c.l.s4 1934713408
        %v1181 = vunpack.c.0.s8 %v1180
        %v1182 = vlaneseq
        %v1183 = vshrl.u32 %v1182, 7
        %v1184 = vsub.s32 %v1181, %v1183
        %v1185 = vrot.slane %v1177, %v1184
        %v1187 = vunpack.c.l.s4 1934713408
        %v1188 = vunpack.c.0.s8 %v1187
        %v1189 = vlaneseq
        %v1190 = vshrl.u32 %v1189, 7
        %v1191 = vsub.s32 %v1188, %v1190
        %v1192 = vrot.slane %v1178, %v1191
        %v1193 = vcombine.high %v1169, 0.0
        %v1194 = vcombine.high %v1176, 0.0
        %v1195 = vcombine.high %v1185, 0.0
        %v1196 = vcombine.high %v1192, 0.0
        %v1197 = vcombine.low %v1101, %v1108
        %v1199 = vunpack.c.l.s4 1983009808
        %v1200 = vunpack.c.0.s8 %v1199
        %v1201 = vlaneseq
        %v1202 = vshrl.u32 %v1201, 7
        %v1203 = vsub.s32 %v1200, %v1202
        %v1204 = vrot.slane %v1197, %v1203
        %v1205 = vcombine.low %v1125, %v1126
        %v1207 = vunpack.c.l.s4 1983009808
        %v1208 = vunpack.c.0.s8 %v1207
        %v1209 = vlaneseq
        %v1210 = vshrl.u32 %v1209, 7
        %v1211 = vsub.s32 %v1208, %v1210
        %v1212 = vrot.slane %v1205, %v1211
        %v1213 = vcombine.low %v1117, %v1124
        %v1215 = vunpack.c.l.s4 1983009808
        %v1216 = vunpack.c.0.s8 %v1215
        %v1217 = vlaneseq
        %v1218 = vshrl.u32 %v1217, 7
        %v1219 = vsub.s32 %v1216, %v1218
        %v1220 = vrot.slane %v1213, %v1219
        %v1221 = vcombine.low %v1127, %v1128
        %v1223 = vunpack.c.l.s4 1983009808
        %v1224 = vunpack.c.0.s8 %v1223
        %v1225 = vlaneseq
        %v1226 = vshrl.u32 %v1225, 7
        %v1227 = vsub.s32 %v1224, %v1226
        %v1228 = vrot.slane %v1221, %v1227
        %v1229 = vcombine.low %v1204, %v1212
        %v1230 = vcombine.high %v1204, %v1212
        %v1232 = vunpack.c.l.s4 1934713408
        %v1233 = vunpack.c.0.s8 %v1232
        %v1234 = vlaneseq
        %v1235 = vshrl.u32 %v1234, 7
        %v1236 = vsub.s32 %v1233, %v1235
        %v1237 = vrot.slane %v1229, %v1236
        %v1239 = vunpack.c.l.s4 1934713408
        %v1240 = vunpack.c.0.s8 %v1239
        %v1241 = vlaneseq
        %v1242 = vshrl.u32 %v1241, 7
        %v1243 = vsub.s32 %v1240, %v1242
        %v1244 = vrot.slane %v1230, %v1243
        %v1245 = vcombine.low %v1220, %v1228
        %v1246 = vcombine.high %v1220, %v1228
        %v1248 = vunpack.c.l.s4 1934713408
        %v1249 = vunpack.c.0.s8 %v1248
        %v1250 = vlaneseq
        %v1251 = vshrl.u32 %v1250, 7
        %v1252 = vsub.s32 %v1249, %v1251
        %v1253 = vrot.slane %v1245, %v1252
        %v1255 = vunpack.c.l.s4 1934713408
        %v1256 = vunpack.c.0.s8 %v1255
        %v1257 = vlaneseq
        %v1258 = vshrl.u32 %v1257, 7
        %v1259 = vsub.s32 %v1256, %v1258
        %v1260 = vrot.slane %v1246, %v1259
        %v1261 = vcombine.low %v1237, %v1253
        %v1262 = vcombine.high %v1237, %v1253
        %v1263 = vcombine.low %v1244, %v1260
        %v1264 = vcombine.high %v1244, %v1260
        %v1265 = vcombine.low %v1169, %v1176
        %v1267 = vunpack.c.l.s4 1983009808
        %v1268 = vunpack.c.0.s8 %v1267
        %v1269 = vlaneseq
        %v1270 = vshrl.u32 %v1269, 7
        %v1271 = vsub.s32 %v1268, %v1270
        %v1272 = vrot.slane %v1265, %v1271
        %v1273 = vcombine.low %v1193, %v1194
        %v1275 = vunpack.c.l.s4 1983009808
        %v1276 = vunpack.c.0.s8 %v1275
        %v1277 = vlaneseq
        %v1278 = vshrl.u32 %v1277, 7
        %v1279 = vsub.s32 %v1276, %v1278
        %v1280 = vrot.slane %v1273, %v1279
        %v1281 = vcombine.low %v1185, %v1192
        %v1283 = vunpack.c.l.s4 1983009808
        %v1284 = vunpack.c.0.s8 %v1283
        %v1285 = vlaneseq
        %v1286 = vshrl.u32 %v1285, 7
        %v1287 = vsub.s32 %v1284, %v1286
        %v1288 = vrot.slane %v1281, %v1287
        %v1289 = vcombine.low %v1195, %v1196
        %v1291 = vunpack.c.l.s4 1983009808
        %v1292 = vunpack.c.0.s8 %v1291
        %v1293 = vlaneseq
        %v1294 = vshrl.u32 %v1293, 7
        %v1295 = vsub.s32 %v1292, %v1294
        %v1296 = vrot.slane %v1289, %v1295
        %v1297 = vcombine.low %v1272, %v1280
        %v1298 = vcombine.high %v1272, %v1280
        %v1300 = vunpack.c.l.s4 1934713408
        %v1301 = vunpack.c.0.s8 %v1300
        %v1302 = vlaneseq
        %v1303 = vshrl.u32 %v1302, 7
        %v1304 = vsub.s32 %v1301, %v1303
        %v1305 = vrot.slane %v1297, %v1304
        %v1307 = vunpack.c.l.s4 1934713408
        %v1308 = vunpack.c.0.s8 %v1307
        %v1309 = vlaneseq
        %v1310 = vshrl.u32 %v1309, 7
        %v1311 = vsub.s32 %v1308, %v1310
        %v1312 = vrot.slane %v1298, %v1311
        %v1313 = vcombine.low %v1288, %v1296
        %v1314 = vcombine.high %v1288, %v1296
        %v1316 = vunpack.c.l.s4 1934713408
        %v1317 = vunpack.c.0.s8 %v1316
        %v1318 = vlaneseq
        %v1319 = vshrl.u32 %v1318, 7
        %v1320 = vsub.s32 %v1317, %v1319
        %v1321 = vrot.slane %v1313, %v1320
        %v1323 = vunpack.c.l.s4 1934713408
        %v1324 = vunpack.c.0.s8 %v1323
        %v1325 = vlaneseq
        %v1326 = vshrl.u32 %v1325, 7
        %v1327 = vsub.s32 %v1324, %v1326
        %v1328 = vrot.slane %v1314, %v1327
        %v1329 = vcombine.low %v1305, %v1321
        %v1330 = vcombine.high %v1305, %v1321
        %v1331 = vcombine.low %v1312, %v1328
        %v1332 = vcombine.high %v1312, %v1328
        %1333 = vrot.lane.b32.xlu0 %v737, 64
        %v1334 = vpop.permute.xlu0 %1333
        %1335 = vrot.lane.b32.xlu0 %v742, 64
        %v1336 = vpop.permute.xlu0 %1335
        %1337 = vrot.lane.b32.xlu0 %v748, 64
        %v1338 = vpop.permute.xlu0 %1337
        %1339 = vrot.lane.b32.xlu0 %v750, 64
        %v1340 = vpop.permute.xlu0 %1339
        %1341 = vrot.lane.b32.xlu0 %v754, 64
        %v1342 = vpop.permute.xlu0 %1341
        %1343 = vrot.lane.b32.xlu0 %v756, 64
        %v1344 = vpop.permute.xlu0 %1343
        %1345 = vrot.lane.b32.xlu0 %v760, 64
        %v1346 = vpop.permute.xlu0 %1345
        %1347 = vrot.lane.b32.xlu0 %v762, 64
        %v1348 = vpop.permute.xlu0 %1347
        %v1357 = vcombine.low %v1334, %v1342
        %v1358 = vcombine.high %v1334, %v1342
        %v1360 = vunpack.c.l.s4 1983009808
        %v1361 = vunpack.c.0.s8 %v1360
        %v1362 = vlaneseq
        %v1363 = vshrl.u32 %v1362, 7
        %v1364 = vsub.s32 %v1361, %v1363
        %v1365 = vrot.slane %v1357, %v1364
        %v1367 = vunpack.c.l.s4 1983009808
        %v1368 = vunpack.c.0.s8 %v1367
        %v1369 = vlaneseq
        %v1370 = vshrl.u32 %v1369, 7
        %v1371 = vsub.s32 %v1368, %v1370
        %v1372 = vrot.slane %v1358, %v1371
        %v1373 = vcombine.low %v1338, %v1346
        %v1374 = vcombine.high %v1338, %v1346
        %v1376 = vunpack.c.l.s4 1983009808
        %v1377 = vunpack.c.0.s8 %v1376
        %v1378 = vlaneseq
        %v1379 = vshrl.u32 %v1378, 7
        %v1380 = vsub.s32 %v1377, %v1379
        %v1381 = vrot.slane %v1373, %v1380
        %v1383 = vunpack.c.l.s4 1983009808
        %v1384 = vunpack.c.0.s8 %v1383
        %v1385 = vlaneseq
        %v1386 = vshrl.u32 %v1385, 7
        %v1387 = vsub.s32 %v1384, %v1386
        %v1388 = vrot.slane %v1374, %v1387
        %v1389 = vcombine.low %v1365, %v1381
        %v1390 = vcombine.high %v1365, %v1381
        %v1392 = vunpack.c.l.s4 1934713408
        %v1393 = vunpack.c.0.s8 %v1392
        %v1394 = vlaneseq
        %v1395 = vshrl.u32 %v1394, 7
        %v1396 = vsub.s32 %v1393, %v1395
        %v1397 = vrot.slane %v1389, %v1396
        %v1399 = vunpack.c.l.s4 1934713408
        %v1400 = vunpack.c.0.s8 %v1399
        %v1401 = vlaneseq
        %v1402 = vshrl.u32 %v1401, 7
        %v1403 = vsub.s32 %v1400, %v1402
        %v1404 = vrot.slane %v1390, %v1403
        %v1405 = vcombine.low %v1372, %v1388
        %v1406 = vcombine.high %v1372, %v1388
        %v1408 = vunpack.c.l.s4 1934713408
        %v1409 = vunpack.c.0.s8 %v1408
        %v1410 = vlaneseq
        %v1411 = vshrl.u32 %v1410, 7
        %v1412 = vsub.s32 %v1409, %v1411
        %v1413 = vrot.slane %v1405, %v1412
        %v1415 = vunpack.c.l.s4 1934713408
        %v1416 = vunpack.c.0.s8 %v1415
        %v1417 = vlaneseq
        %v1418 = vshrl.u32 %v1417, 7
        %v1419 = vsub.s32 %v1416, %v1418
        %v1420 = vrot.slane %v1406, %v1419
        %v1421 = vcombine.high %v1397, 0.0
        %v1422 = vcombine.high %v1404, 0.0
        %v1423 = vcombine.high %v1413, 0.0
        %v1424 = vcombine.high %v1420, 0.0
        %v1425 = vcombine.low %v1336, %v1344
        %v1426 = vcombine.high %v1336, %v1344
        %v1428 = vunpack.c.l.s4 1983009808
        %v1429 = vunpack.c.0.s8 %v1428
        %v1430 = vlaneseq
        %v1431 = vshrl.u32 %v1430, 7
        %v1432 = vsub.s32 %v1429, %v1431
        %v1433 = vrot.slane %v1425, %v1432
        %v1435 = vunpack.c.l.s4 1983009808
        %v1436 = vunpack.c.0.s8 %v1435
        %v1437 = vlaneseq
        %v1438 = vshrl.u32 %v1437, 7
        %v1439 = vsub.s32 %v1436, %v1438
        %v1440 = vrot.slane %v1426, %v1439
        %v1441 = vcombine.low %v1340, %v1348
        %v1442 = vcombine.high %v1340, %v1348
        %v1444 = vunpack.c.l.s4 1983009808
        %v1445 = vunpack.c.0.s8 %v1444
        %v1446 = vlaneseq
        %v1447 = vshrl.u32 %v1446, 7
        %v1448 = vsub.s32 %v1445, %v1447
        %v1449 = vrot.slane %v1441, %v1448
        %v1451 = vunpack.c.l.s4 1983009808
        %v1452 = vunpack.c.0.s8 %v1451
        %v1453 = vlaneseq
        %v1454 = vshrl.u32 %v1453, 7
        %v1455 = vsub.s32 %v1452, %v1454
        %v1456 = vrot.slane %v1442, %v1455
        %v1457 = vcombine.low %v1433, %v1449
        %v1458 = vcombine.high %v1433, %v1449
        %v1460 = vunpack.c.l.s4 1934713408
        %v1461 = vunpack.c.0.s8 %v1460
        %v1462 = vlaneseq
        %v1463 = vshrl.u32 %v1462, 7
        %v1464 = vsub.s32 %v1461, %v1463
        %v1465 = vrot.slane %v1457, %v1464
        %v1467 = vunpack.c.l.s4 1934713408
        %v1468 = vunpack.c.0.s8 %v1467
        %v1469 = vlaneseq
        %v1470 = vshrl.u32 %v1469, 7
        %v1471 = vsub.s32 %v1468, %v1470
        %v1472 = vrot.slane %v1458, %v1471
        %v1473 = vcombine.low %v1440, %v1456
        %v1474 = vcombine.high %v1440, %v1456
        %v1476 = vunpack.c.l.s4 1934713408
        %v1477 = vunpack.c.0.s8 %v1476
        %v1478 = vlaneseq
        %v1479 = vshrl.u32 %v1478, 7
        %v1480 = vsub.s32 %v1477, %v1479
        %v1481 = vrot.slane %v1473, %v1480
        %v1483 = vunpack.c.l.s4 1934713408
        %v1484 = vunpack.c.0.s8 %v1483
        %v1485 = vlaneseq
        %v1486 = vshrl.u32 %v1485, 7
        %v1487 = vsub.s32 %v1484, %v1486
        %v1488 = vrot.slane %v1474, %v1487
        %v1489 = vcombine.high %v1465, 0.0
        %v1490 = vcombine.high %v1472, 0.0
        %v1491 = vcombine.high %v1481, 0.0
        %v1492 = vcombine.high %v1488, 0.0
        %v1493 = vcombine.low %v1397, %v1404
        %v1495 = vunpack.c.l.s4 1983009808
        %v1496 = vunpack.c.0.s8 %v1495
        %v1497 = vlaneseq
        %v1498 = vshrl.u32 %v1497, 7
        %v1499 = vsub.s32 %v1496, %v1498
        %v1500 = vrot.slane %v1493, %v1499
        %v1501 = vcombine.low %v1421, %v1422
        %v1503 = vunpack.c.l.s4 1983009808
        %v1504 = vunpack.c.0.s8 %v1503
        %v1505 = vlaneseq
        %v1506 = vshrl.u32 %v1505, 7
        %v1507 = vsub.s32 %v1504, %v1506
        %v1508 = vrot.slane %v1501, %v1507
        %v1509 = vcombine.low %v1413, %v1420
        %v1511 = vunpack.c.l.s4 1983009808
        %v1512 = vunpack.c.0.s8 %v1511
        %v1513 = vlaneseq
        %v1514 = vshrl.u32 %v1513, 7
        %v1515 = vsub.s32 %v1512, %v1514
        %v1516 = vrot.slane %v1509, %v1515
        %v1517 = vcombine.low %v1423, %v1424
        %v1519 = vunpack.c.l.s4 1983009808
        %v1520 = vunpack.c.0.s8 %v1519
        %v1521 = vlaneseq
        %v1522 = vshrl.u32 %v1521, 7
        %v1523 = vsub.s32 %v1520, %v1522
        %v1524 = vrot.slane %v1517, %v1523
        %v1525 = vcombine.low %v1500, %v1508
        %v1526 = vcombine.high %v1500, %v1508
        %v1528 = vunpack.c.l.s4 1934713408
        %v1529 = vunpack.c.0.s8 %v1528
        %v1530 = vlaneseq
        %v1531 = vshrl.u32 %v1530, 7
        %v1532 = vsub.s32 %v1529, %v1531
        %v1533 = vrot.slane %v1525, %v1532
        %v1535 = vunpack.c.l.s4 1934713408
        %v1536 = vunpack.c.0.s8 %v1535
        %v1537 = vlaneseq
        %v1538 = vshrl.u32 %v1537, 7
        %v1539 = vsub.s32 %v1536, %v1538
        %v1540 = vrot.slane %v1526, %v1539
        %v1541 = vcombine.low %v1516, %v1524
        %v1542 = vcombine.high %v1516, %v1524
        %v1544 = vunpack.c.l.s4 1934713408
        %v1545 = vunpack.c.0.s8 %v1544
        %v1546 = vlaneseq
        %v1547 = vshrl.u32 %v1546, 7
        %v1548 = vsub.s32 %v1545, %v1547
        %v1549 = vrot.slane %v1541, %v1548
        %v1551 = vunpack.c.l.s4 1934713408
        %v1552 = vunpack.c.0.s8 %v1551
        %v1553 = vlaneseq
        %v1554 = vshrl.u32 %v1553, 7
        %v1555 = vsub.s32 %v1552, %v1554
        %v1556 = vrot.slane %v1542, %v1555
        %v1557 = vcombine.low %v1533, %v1549
        %v1558 = vcombine.high %v1533, %v1549
        %v1559 = vcombine.low %v1540, %v1556
        %v1560 = vcombine.high %v1540, %v1556
        %v1561 = vcombine.low %v1465, %v1472
        %v1563 = vunpack.c.l.s4 1983009808
        %v1564 = vunpack.c.0.s8 %v1563
        %v1565 = vlaneseq
        %v1566 = vshrl.u32 %v1565, 7
        %v1567 = vsub.s32 %v1564, %v1566
        %v1568 = vrot.slane %v1561, %v1567
        %v1569 = vcombine.low %v1489, %v1490
        %v1571 = vunpack.c.l.s4 1983009808
        %v1572 = vunpack.c.0.s8 %v1571
        %v1573 = vlaneseq
        %v1574 = vshrl.u32 %v1573, 7
        %v1575 = vsub.s32 %v1572, %v1574
        %v1576 = vrot.slane %v1569, %v1575
        %v1577 = vcombine.low %v1481, %v1488
        %v1579 = vunpack.c.l.s4 1983009808
        %v1580 = vunpack.c.0.s8 %v1579
        %v1581 = vlaneseq
        %v1582 = vshrl.u32 %v1581, 7
        %v1583 = vsub.s32 %v1580, %v1582
        %v1584 = vrot.slane %v1577, %v1583
        %v1585 = vcombine.low %v1491, %v1492
        %v1587 = vunpack.c.l.s4 1983009808
        %v1588 = vunpack.c.0.s8 %v1587
        %v1589 = vlaneseq
        %v1590 = vshrl.u32 %v1589, 7
        %v1591 = vsub.s32 %v1588, %v1590
        %v1592 = vrot.slane %v1585, %v1591
        %v1593 = vcombine.low %v1568, %v1576
        %v1594 = vcombine.high %v1568, %v1576
        %v1596 = vunpack.c.l.s4 1934713408
        %v1597 = vunpack.c.0.s8 %v1596
        %v1598 = vlaneseq
        %v1599 = vshrl.u32 %v1598, 7
        %v1600 = vsub.s32 %v1597, %v1599
        %v1601 = vrot.slane %v1593, %v1600
        %v1603 = vunpack.c.l.s4 1934713408
        %v1604 = vunpack.c.0.s8 %v1603
        %v1605 = vlaneseq
        %v1606 = vshrl.u32 %v1605, 7
        %v1607 = vsub.s32 %v1604, %v1606
        %v1608 = vrot.slane %v1594, %v1607
        %v1609 = vcombine.low %v1584, %v1592
        %v1610 = vcombine.high %v1584, %v1592
        %v1612 = vunpack.c.l.s4 1934713408
        %v1613 = vunpack.c.0.s8 %v1612
        %v1614 = vlaneseq
        %v1615 = vshrl.u32 %v1614, 7
        %v1616 = vsub.s32 %v1613, %v1615
        %v1617 = vrot.slane %v1609, %v1616
        %v1619 = vunpack.c.l.s4 1934713408
        %v1620 = vunpack.c.0.s8 %v1619
        %v1621 = vlaneseq
        %v1622 = vshrl.u32 %v1621, 7
        %v1623 = vsub.s32 %v1620, %v1622
        %v1624 = vrot.slane %v1610, %v1623
        %v1625 = vcombine.low %v1601, %v1617
        %v1626 = vcombine.high %v1601, %v1617
        %v1627 = vcombine.low %v1608, %v1624
        %v1628 = vcombine.high %v1608, %v1624
        %vm1629 = vcmask 64512
        %v1631 = vsel %vm1629, %v965, 0
        %v1634 = vsel %vm1629, %v1261, 0
        %1636 = vmatprep.subr.mxu0 0.0
        %1637 = vmatpush1.xpose.msra.mxu0 %v1634
        %1638 = vmatprep.subr.mxu0 0.0
        %1639 = vmatpush1.xpose.msra.mxu0 0.0
        %1640 = vmatprep.subr.mxu0 0.0
        %1641 = vmatpush1.xpose.msra.mxu0 0.0
        %1642 = vmatprep.subr.mxu0 0.0
        %1643 = vmatpush1.xpose.msra.mxu0 0.0
        %1644 = vmatprep.subr.mxu0 0.0
        %1645 = vmatpush1.xpose.msra.mxu0 0.0
        %1646 = vmatprep.subr.mxu0 0.0
        %1647 = vmatpush1.xpose.msra.mxu0 0.0
        %1648 = vmatprep.subr.mxu0 0.0
        %1649 = vmatpush1.xpose.msra.mxu0 0.0
        %1650 = vmatprep.subr.mxu0 0.0
        %1651 = vmatpush1.xpose.msra.mxu0 0.0
        %1652 = vmatprep.subr.mxu0 0.0
        %1653 = vmatpush1.xpose.msra.mxu0 0.0
        %1654 = vmatprep.subr.mxu0 0.0
        %1655 = vmatpush1.xpose.msra.mxu0 0.0
        %1656 = vmatprep.subr.mxu0 0.0
        %1657 = vmatpush1.xpose.msra.mxu0 0.0
        %1658 = vmatprep.subr.mxu0 0.0
        %1659 = vmatpush1.xpose.msra.mxu0 0.0
        %1660 = vmatprep.subr.mxu0 0.0
        %1661 = vmatpush1.xpose.msra.mxu0 0.0
        %1662 = vmatprep.subr.mxu0 0.0
        %1663 = vmatpush1.xpose.msra.mxu0 0.0
        %1664 = vmatprep.subr.mxu0 0.0
        %1665 = vmatpush1.xpose.msra.mxu0 0.0
        %1666 = vmatprep.subr.mxu0 0.0
        %1667 = vmatpush1.xpose.msra.mxu0 0.0
        %1668 = vmatprep.subr.mxu0 0.0
        %1669 = vmatpush1.xpose.msra.mxu0 0.0
        %1670 = vmatprep.subr.mxu0 0.0
        %1671 = vmatpush1.xpose.msra.mxu0 0.0
        %1672 = vmatprep.subr.mxu0 0.0
        %1673 = vmatpush1.xpose.msra.mxu0 0.0
        %1674 = vmatprep.subr.mxu0 0.0
        %1675 = vmatpush1.xpose.msra.mxu0 0.0
        %1676 = vmatprep.subr.mxu0 0.0
        %1677 = vmatpush1.xpose.msra.mxu0 0.0
        %1678 = vmatprep.subr.mxu0 0.0
        %1679 = vmatpush1.xpose.msra.mxu0 0.0
        %1680 = vmatprep.subr.mxu0 0.0
        %1681 = vmatpush1.xpose.msra.mxu0 0.0
        %1682 = vmatprep.subr.mxu0 0.0
        %1683 = vmatpush1.xpose.msra.mxu0 0.0
        %1684 = vmatprep.subr.mxu0 0.0
        %1685 = vmatpush1.xpose.msra.mxu0 0.0
        %1686 = vmatprep.subr.mxu0 0.0
        %1687 = vmatpush1.xpose.msra.mxu0 0.0
        %1688 = vmatprep.subr.mxu0 0.0
        %1689 = vmatpush1.xpose.msra.mxu0 0.0
        %1690 = vmatprep.subr.mxu0 0.0
        %1691 = vmatpush1.xpose.msra.mxu0 0.0
        %1692 = vmatprep.subr.mxu0 0.0
        %1693 = vmatpush1.xpose.msra.mxu0 0.0
        %1694 = vmatprep.subr.mxu0 0.0
        %1695 = vmatpush1.xpose.msra.mxu0 0.0
        %1696 = vmatprep.subr.mxu0 0.0
        %1697 = vmatpush1.xpose.msra.mxu0 0.0
        %1698 = vmatprep.subr.mxu0 0.0
        %1699 = vmatpush1.xpose.msra.mxu0 0.0
        %1700 = vmatprep.mubr.f32.mxu0 0.0
        %1701 = vmatmul.mubr.f32.gmra.mrb[0].mxu0 %v1631
        %v1702 = vpop.f32.mrb[0].mxu0
        %v1703 = vadd.f32 0.0, %v1702
        %v1704 = vpop.f32.mrb[0].mxu0
        %1705 = vdwg.mxu0
        %v1707 = vsel %vm1629, %v1033, 0
        %v1710 = vsel %vm1629, %v1329, 0
        %1712 = vmatprep.subr.mxu0 0.0
        %1713 = vmatpush1.xpose.msra.mxu0 %v1710
        %1714 = vmatprep.subr.mxu0 0.0
        %1715 = vmatpush1.xpose.msra.mxu0 0.0
        %1716 = vmatprep.subr.mxu0 0.0
        %1717 = vmatpush1.xpose.msra.mxu0 0.0
        %1718 = vmatprep.subr.mxu0 0.0
        %1719 = vmatpush1.xpose.msra.mxu0 0.0
        %1720 = vmatprep.subr.mxu0 0.0
        %1721 = vmatpush1.xpose.msra.mxu0 0.0
        %1722 = vmatprep.subr.mxu0 0.0
        %1723 = vmatpush1.xpose.msra.mxu0 0.0
        %1724 = vmatprep.subr.mxu0 0.0
        %1725 = vmatpush1.xpose.msra.mxu0 0.0
        %1726 = vmatprep.subr.mxu0 0.0
        %1727 = vmatpush1.xpose.msra.mxu0 0.0
        %1728 = vmatprep.subr.mxu0 0.0
        %1729 = vmatpush1.xpose.msra.mxu0 0.0
        %1730 = vmatprep.subr.mxu0 0.0
        %1731 = vmatpush1.xpose.msra.mxu0 0.0
        %1732 = vmatprep.subr.mxu0 0.0
        %1733 = vmatpush1.xpose.msra.mxu0 0.0
        %1734 = vmatprep.subr.mxu0 0.0
        %1735 = vmatpush1.xpose.msra.mxu0 0.0
        %1736 = vmatprep.subr.mxu0 0.0
        %1737 = vmatpush1.xpose.msra.mxu0 0.0
        %1738 = vmatprep.subr.mxu0 0.0
        %1739 = vmatpush1.xpose.msra.mxu0 0.0
        %1740 = vmatprep.subr.mxu0 0.0
        %1741 = vmatpush1.xpose.msra.mxu0 0.0
        %1742 = vmatprep.subr.mxu0 0.0
        %1743 = vmatpush1.xpose.msra.mxu0 0.0
        %1744 = vmatprep.subr.mxu0 0.0
        %1745 = vmatpush1.xpose.msra.mxu0 0.0
        %1746 = vmatprep.subr.mxu0 0.0
        %1747 = vmatpush1.xpose.msra.mxu0 0.0
        %1748 = vmatprep.subr.mxu0 0.0
        %1749 = vmatpush1.xpose.msra.mxu0 0.0
        %1750 = vmatprep.subr.mxu0 0.0
        %1751 = vmatpush1.xpose.msra.mxu0 0.0
        %1752 = vmatprep.subr.mxu0 0.0
        %1753 = vmatpush1.xpose.msra.mxu0 0.0
        %1754 = vmatprep.subr.mxu0 0.0
        %1755 = vmatpush1.xpose.msra.mxu0 0.0
        %1756 = vmatprep.subr.mxu0 0.0
        %1757 = vmatpush1.xpose.msra.mxu0 0.0
        %1758 = vmatprep.subr.mxu0 0.0
        %1759 = vmatpush1.xpose.msra.mxu0 0.0
        %1760 = vmatprep.subr.mxu0 0.0
        %1761 = vmatpush1.xpose.msra.mxu0 0.0
        %1762 = vmatprep.subr.mxu0 0.0
        %1763 = vmatpush1.xpose.msra.mxu0 0.0
        %1764 = vmatprep.subr.mxu0 0.0
        %1765 = vmatpush1.xpose.msra.mxu0 0.0
        %1766 = vmatprep.subr.mxu0 0.0
        %1767 = vmatpush1.xpose.msra.mxu0 0.0
        %1768 = vmatprep.subr.mxu0 0.0
        %1769 = vmatpush1.xpose.msra.mxu0 0.0
        %1770 = vmatprep.subr.mxu0 0.0
        %1771 = vmatpush1.xpose.msra.mxu0 0.0
        %1772 = vmatprep.subr.mxu0 0.0
        %1773 = vmatpush1.xpose.msra.mxu0 0.0
        %1774 = vmatprep.subr.mxu0 0.0
        %1775 = vmatpush1.xpose.msra.mxu0 0.0
        %1776 = vmatprep.mubr.f32.mxu0 0.0
        %1777 = vmatmul.mubr.f32.gmra.mrb[0].mxu0 %v1707
        %v1778 = vpop.f32.mrb[0].mxu0
        %v1779 = vadd.f32 0.0, %v1778
        %v1780 = vpop.f32.mrb[0].mxu0
        %1781 = vdwg.mxu0
        %v1783 = vsel %vm1629, %v966, 0
        %v1786 = vsel %vm1629, %v1262, 0
        %1788 = vmatprep.subr.mxu0 0.0
        %1789 = vmatpush1.xpose.msra.mxu0 %v1786
        %1790 = vmatprep.subr.mxu0 0.0
        %1791 = vmatpush1.xpose.msra.mxu0 0.0
        %1792 = vmatprep.subr.mxu0 0.0
        %1793 = vmatpush1.xpose.msra.mxu0 0.0
        %1794 = vmatprep.subr.mxu0 0.0
        %1795 = vmatpush1.xpose.msra.mxu0 0.0
        %1796 = vmatprep.subr.mxu0 0.0
        %1797 = vmatpush1.xpose.msra.mxu0 0.0
        %1798 = vmatprep.subr.mxu0 0.0
        %1799 = vmatpush1.xpose.msra.mxu0 0.0
        %1800 = vmatprep.subr.mxu0 0.0
        %1801 = vmatpush1.xpose.msra.mxu0 0.0
        %1802 = vmatprep.subr.mxu0 0.0
        %1803 = vmatpush1.xpose.msra.mxu0 0.0
        %1804 = vmatprep.subr.mxu0 0.0
        %1805 = vmatpush1.xpose.msra.mxu0 0.0
        %1806 = vmatprep.subr.mxu0 0.0
        %1807 = vmatpush1.xpose.msra.mxu0 0.0
        %1808 = vmatprep.subr.mxu0 0.0
        %1809 = vmatpush1.xpose.msra.mxu0 0.0
        %1810 = vmatprep.subr.mxu0 0.0
        %1811 = vmatpush1.xpose.msra.mxu0 0.0
        %1812 = vmatprep.subr.mxu0 0.0
        %1813 = vmatpush1.xpose.msra.mxu0 0.0
        %1814 = vmatprep.subr.mxu0 0.0
        %1815 = vmatpush1.xpose.msra.mxu0 0.0
        %1816 = vmatprep.subr.mxu0 0.0
        %1817 = vmatpush1.xpose.msra.mxu0 0.0
        %1818 = vmatprep.subr.mxu0 0.0
        %1819 = vmatpush1.xpose.msra.mxu0 0.0
        %1820 = vmatprep.subr.mxu0 0.0
        %1821 = vmatpush1.xpose.msra.mxu0 0.0
        %1822 = vmatprep.subr.mxu0 0.0
        %1823 = vmatpush1.xpose.msra.mxu0 0.0
        %1824 = vmatprep.subr.mxu0 0.0
        %1825 = vmatpush1.xpose.msra.mxu0 0.0
        %1826 = vmatprep.subr.mxu0 0.0
        %1827 = vmatpush1.xpose.msra.mxu0 0.0
        %1828 = vmatprep.subr.mxu0 0.0
        %1829 = vmatpush1.xpose.msra.mxu0 0.0
        %1830 = vmatprep.subr.mxu0 0.0
        %1831 = vmatpush1.xpose.msra.mxu0 0.0
        %1832 = vmatprep.subr.mxu0 0.0
        %1833 = vmatpush1.xpose.msra.mxu0 0.0
        %1834 = vmatprep.subr.mxu0 0.0
        %1835 = vmatpush1.xpose.msra.mxu0 0.0
        %1836 = vmatprep.subr.mxu0 0.0
        %1837 = vmatpush1.xpose.msra.mxu0 0.0
        %1838 = vmatprep.subr.mxu0 0.0
        %1839 = vmatpush1.xpose.msra.mxu0 0.0
        %1840 = vmatprep.subr.mxu0 0.0
        %1841 = vmatpush1.xpose.msra.mxu0 0.0
        %1842 = vmatprep.subr.mxu0 0.0
        %1843 = vmatpush1.xpose.msra.mxu0 0.0
        %1844 = vmatprep.subr.mxu0 0.0
        %1845 = vmatpush1.xpose.msra.mxu0 0.0
        %1846 = vmatprep.subr.mxu0 0.0
        %1847 = vmatpush1.xpose.msra.mxu0 0.0
        %1848 = vmatprep.subr.mxu0 0.0
        %1849 = vmatpush1.xpose.msra.mxu0 0.0
        %1850 = vmatprep.subr.mxu0 0.0
        %1851 = vmatpush1.xpose.msra.mxu0 0.0
        %1852 = vmatprep.mubr.f32.mxu0 0.0
        %1853 = vmatmul.mubr.f32.gmra.mrb[0].mxu0 %v1783
        %v1854 = vpop.f32.mrb[0].mxu0
        %v1855 = vadd.f32 0.0, %v1854
        %v1856 = vpop.f32.mrb[0].mxu0
        %1857 = vdwg.mxu0
        %v1859 = vsel %vm1629, %v1034, 0
        %v1862 = vsel %vm1629, %v1330, 0
        %1864 = vmatprep.subr.mxu0 0.0
        %1865 = vmatpush1.xpose.msra.mxu0 %v1862
        %1866 = vmatprep.subr.mxu0 0.0
        %1867 = vmatpush1.xpose.msra.mxu0 0.0
        %1868 = vmatprep.subr.mxu0 0.0
        %1869 = vmatpush1.xpose.msra.mxu0 0.0
        %1870 = vmatprep.subr.mxu0 0.0
        %1871 = vmatpush1.xpose.msra.mxu0 0.0
        %1872 = vmatprep.subr.mxu0 0.0
        %1873 = vmatpush1.xpose.msra.mxu0 0.0
        %1874 = vmatprep.subr.mxu0 0.0
        %1875 = vmatpush1.xpose.msra.mxu0 0.0
        %1876 = vmatprep.subr.mxu0 0.0
        %1877 = vmatpush1.xpose.msra.mxu0 0.0
        %1878 = vmatprep.subr.mxu0 0.0
        %1879 = vmatpush1.xpose.msra.mxu0 0.0
        %1880 = vmatprep.subr.mxu0 0.0
        %1881 = vmatpush1.xpose.msra.mxu0 0.0
        %1882 = vmatprep.subr.mxu0 0.0
        %1883 = vmatpush1.xpose.msra.mxu0 0.0
        %1884 = vmatprep.subr.mxu0 0.0
        %1885 = vmatpush1.xpose.msra.mxu0 0.0
        %1886 = vmatprep.subr.mxu0 0.0
        %1887 = vmatpush1.xpose.msra.mxu0 0.0
        %1888 = vmatprep.subr.mxu0 0.0
        %1889 = vmatpush1.xpose.msra.mxu0 0.0
        %1890 = vmatprep.subr.mxu0 0.0
        %1891 = vmatpush1.xpose.msra.mxu0 0.0
        %1892 = vmatprep.subr.mxu0 0.0
        %1893 = vmatpush1.xpose.msra.mxu0 0.0
        %1894 = vmatprep.subr.mxu0 0.0
        %1895 = vmatpush1.xpose.msra.mxu0 0.0
        %1896 = vmatprep.subr.mxu0 0.0
        %1897 = vmatpush1.xpose.msra.mxu0 0.0
        %1898 = vmatprep.subr.mxu0 0.0
        %1899 = vmatpush1.xpose.msra.mxu0 0.0
        %1900 = vmatprep.subr.mxu0 0.0
        %1901 = vmatpush1.xpose.msra.mxu0 0.0
        %1902 = vmatprep.subr.mxu0 0.0
        %1903 = vmatpush1.xpose.msra.mxu0 0.0
        %1904 = vmatprep.subr.mxu0 0.0
        %1905 = vmatpush1.xpose.msra.mxu0 0.0
        %1906 = vmatprep.subr.mxu0 0.0
        %1907 = vmatpush1.xpose.msra.mxu0 0.0
        %1908 = vmatprep.subr.mxu0 0.0
        %1909 = vmatpush1.xpose.msra.mxu0 0.0
        %1910 = vmatprep.subr.mxu0 0.0
        %1911 = vmatpush1.xpose.msra.mxu0 0.0
        %1912 = vmatprep.subr.mxu0 0.0
        %1913 = vmatpush1.xpose.msra.mxu0 0.0
        %1914 = vmatprep.subr.mxu0 0.0
        %1915 = vmatpush1.xpose.msra.mxu0 0.0
        %1916 = vmatprep.subr.mxu0 0.0
        %1917 = vmatpush1.xpose.msra.mxu0 0.0
        %1918 = vmatprep.subr.mxu0 0.0
        %1919 = vmatpush1.xpose.msra.mxu0 0.0
        %1920 = vmatprep.subr.mxu0 0.0
        %1921 = vmatpush1.xpose.msra.mxu0 0.0
        %1922 = vmatprep.subr.mxu0 0.0
        %1923 = vmatpush1.xpose.msra.mxu0 0.0
        %1924 = vmatprep.subr.mxu0 0.0
        %1925 = vmatpush1.xpose.msra.mxu0 0.0
        %1926 = vmatprep.subr.mxu0 0.0
        %1927 = vmatpush1.xpose.msra.mxu0 0.0
        %1928 = vmatprep.mubr.f32.mxu0 0.0
        %1929 = vmatmul.mubr.f32.gmra.mrb[0].mxu0 %v1859
        %v1930 = vpop.f32.mrb[0].mxu0
        %v1931 = vadd.f32 0.0, %v1930
        %v1932 = vpop.f32.mrb[0].mxu0
        %1933 = vdwg.mxu0
        %v1935 = vsel %vm1629, %v967, 0
        %v1938 = vsel %vm1629, %v1263, 0
        %1940 = vmatprep.subr.mxu0 0.0
        %1941 = vmatpush1.xpose.msra.mxu0 %v1938
        %1942 = vmatprep.subr.mxu0 0.0
        %1943 = vmatpush1.xpose.msra.mxu0 0.0
        %1944 = vmatprep.subr.mxu0 0.0
        %1945 = vmatpush1.xpose.msra.mxu0 0.0
        %1946 = vmatprep.subr.mxu0 0.0
        %1947 = vmatpush1.xpose.msra.mxu0 0.0
        %1948 = vmatprep.subr.mxu0 0.0
        %1949 = vmatpush1.xpose.msra.mxu0 0.0
        %1950 = vmatprep.subr.mxu0 0.0
        %1951 = vmatpush1.xpose.msra.mxu0 0.0
        %1952 = vmatprep.subr.mxu0 0.0
        %1953 = vmatpush1.xpose.msra.mxu0 0.0
        %1954 = vmatprep.subr.mxu0 0.0
        %1955 = vmatpush1.xpose.msra.mxu0 0.0
        %1956 = vmatprep.subr.mxu0 0.0
        %1957 = vmatpush1.xpose.msra.mxu0 0.0
        %1958 = vmatprep.subr.mxu0 0.0
        %1959 = vmatpush1.xpose.msra.mxu0 0.0
        %1960 = vmatprep.subr.mxu0 0.0
        %1961 = vmatpush1.xpose.msra.mxu0 0.0
        %1962 = vmatprep.subr.mxu0 0.0
        %1963 = vmatpush1.xpose.msra.mxu0 0.0
        %1964 = vmatprep.subr.mxu0 0.0
        %1965 = vmatpush1.xpose.msra.mxu0 0.0
        %1966 = vmatprep.subr.mxu0 0.0
        %1967 = vmatpush1.xpose.msra.mxu0 0.0
        %1968 = vmatprep.subr.mxu0 0.0
        %1969 = vmatpush1.xpose.msra.mxu0 0.0
        %1970 = vmatprep.subr.mxu0 0.0
        %1971 = vmatpush1.xpose.msra.mxu0 0.0
        %1972 = vmatprep.subr.mxu0 0.0
        %1973 = vmatpush1.xpose.msra.mxu0 0.0
        %1974 = vmatprep.subr.mxu0 0.0
        %1975 = vmatpush1.xpose.msra.mxu0 0.0
        %1976 = vmatprep.subr.mxu0 0.0
        %1977 = vmatpush1.xpose.msra.mxu0 0.0
        %1978 = vmatprep.subr.mxu0 0.0
        %1979 = vmatpush1.xpose.msra.mxu0 0.0
        %1980 = vmatprep.subr.mxu0 0.0
        %1981 = vmatpush1.xpose.msra.mxu0 0.0
        %1982 = vmatprep.subr.mxu0 0.0
        %1983 = vmatpush1.xpose.msra.mxu0 0.0
        %1984 = vmatprep.subr.mxu0 0.0
        %1985 = vmatpush1.xpose.msra.mxu0 0.0
        %1986 = vmatprep.subr.mxu0 0.0
        %1987 = vmatpush1.xpose.msra.mxu0 0.0
        %1988 = vmatprep.subr.mxu0 0.0
        %1989 = vmatpush1.xpose.msra.mxu0 0.0
        %1990 = vmatprep.subr.mxu0 0.0
        %1991 = vmatpush1.xpose.msra.mxu0 0.0
        %1992 = vmatprep.subr.mxu0 0.0
        %1993 = vmatpush1.xpose.msra.mxu0 0.0
        %1994 = vmatprep.subr.mxu0 0.0
        %1995 = vmatpush1.xpose.msra.mxu0 0.0
        %1996 = vmatprep.subr.mxu0 0.0
        %1997 = vmatpush1.xpose.msra.mxu0 0.0
        %1998 = vmatprep.subr.mxu0 0.0
        %1999 = vmatpush1.xpose.msra.mxu0 0.0
        %2000 = vmatprep.subr.mxu0 0.0
        %2001 = vmatpush1.xpose.msra.mxu0 0.0
        %2002 = vmatprep.subr.mxu0 0.0
        %2003 = vmatpush1.xpose.msra.mxu0 0.0
        %2004 = vmatprep.mubr.f32.mxu0 0.0
        %2005 = vmatmul.mubr.f32.gmra.mrb[0].mxu0 %v1935
        %v2006 = vpop.f32.mrb[0].mxu0
        %v2007 = vadd.f32 0.0, %v2006
        %v2008 = vpop.f32.mrb[0].mxu0
        %2009 = vdwg.mxu0
        %v2011 = vsel %vm1629, %v1035, 0
        %v2014 = vsel %vm1629, %v1331, 0
        %2016 = vmatprep.subr.mxu0 0.0
        %2017 = vmatpush1.xpose.msra.mxu0 %v2014
        %2018 = vmatprep.subr.mxu0 0.0
        %2019 = vmatpush1.xpose.msra.mxu0 0.0
        %2020 = vmatprep.subr.mxu0 0.0
        %2021 = vmatpush1.xpose.msra.mxu0 0.0
        %2022 = vmatprep.subr.mxu0 0.0
        %2023 = vmatpush1.xpose.msra.mxu0 0.0
        %2024 = vmatprep.subr.mxu0 0.0
        %2025 = vmatpush1.xpose.msra.mxu0 0.0
        %2026 = vmatprep.subr.mxu0 0.0
        %2027 = vmatpush1.xpose.msra.mxu0 0.0
        %2028 = vmatprep.subr.mxu0 0.0
        %2029 = vmatpush1.xpose.msra.mxu0 0.0
        %2030 = vmatprep.subr.mxu0 0.0
        %2031 = vmatpush1.xpose.msra.mxu0 0.0
        %2032 = vmatprep.subr.mxu0 0.0
        %2033 = vmatpush1.xpose.msra.mxu0 0.0
        %2034 = vmatprep.subr.mxu0 0.0
        %2035 = vmatpush1.xpose.msra.mxu0 0.0
        %2036 = vmatprep.subr.mxu0 0.0
        %2037 = vmatpush1.xpose.msra.mxu0 0.0
        %2038 = vmatprep.subr.mxu0 0.0
        %2039 = vmatpush1.xpose.msra.mxu0 0.0
        %2040 = vmatprep.subr.mxu0 0.0
        %2041 = vmatpush1.xpose.msra.mxu0 0.0
        %2042 = vmatprep.subr.mxu0 0.0
        %2043 = vmatpush1.xpose.msra.mxu0 0.0
        %2044 = vmatprep.subr.mxu0 0.0
        %2045 = vmatpush1.xpose.msra.mxu0 0.0
        %2046 = vmatprep.subr.mxu0 0.0
        %2047 = vmatpush1.xpose.msra.mxu0 0.0
        %2048 = vmatprep.subr.mxu0 0.0
        %2049 = vmatpush1.xpose.msra.mxu0 0.0
        %2050 = vmatprep.subr.mxu0 0.0
        %2051 = vmatpush1.xpose.msra.mxu0 0.0
        %2052 = vmatprep.subr.mxu0 0.0
        %2053 = vmatpush1.xpose.msra.mxu0 0.0
        %2054 = vmatprep.subr.mxu0 0.0
        %2055 = vmatpush1.xpose.msra.mxu0 0.0
        %2056 = vmatprep.subr.mxu0 0.0
        %2057 = vmatpush1.xpose.msra.mxu0 0.0
        %2058 = vmatprep.subr.mxu0 0.0
        %2059 = vmatpush1.xpose.msra.mxu0 0.0
        %2060 = vmatprep.subr.mxu0 0.0
        %2061 = vmatpush1.xpose.msra.mxu0 0.0
        %2062 = vmatprep.subr.mxu0 0.0
        %2063 = vmatpush1.xpose.msra.mxu0 0.0
        %2064 = vmatprep.subr.mxu0 0.0
        %2065 = vmatpush1.xpose.msra.mxu0 0.0
        %2066 = vmatprep.subr.mxu0 0.0
        %2067 = vmatpush1.xpose.msra.mxu0 0.0
        %2068 = vmatprep.subr.mxu0 0.0
        %2069 = vmatpush1.xpose.msra.mxu0 0.0
        %2070 = vmatprep.subr.mxu0 0.0
        %2071 = vmatpush1.xpose.msra.mxu0 0.0
        %2072 = vmatprep.subr.mxu0 0.0
        %2073 = vmatpush1.xpose.msra.mxu0 0.0
        %2074 = vmatprep.subr.mxu0 0.0
        %2075 = vmatpush1.xpose.msra.mxu0 0.0
        %2076 = vmatprep.subr.mxu0 0.0
        %2077 = vmatpush1.xpose.msra.mxu0 0.0
        %2078 = vmatprep.subr.mxu0 0.0
        %2079 = vmatpush1.xpose.msra.mxu0 0.0
        %2080 = vmatprep.mubr.f32.mxu0 0.0
        %2081 = vmatmul.mubr.f32.gmra.mrb[0].mxu0 %v2011
        %v2082 = vpop.f32.mrb[0].mxu0
        %v2083 = vadd.f32 0.0, %v2082
        %v2084 = vpop.f32.mrb[0].mxu0
        %2085 = vdwg.mxu0
        %v2087 = vsel %vm1629, %v968, 0
        %v2090 = vsel %vm1629, %v1264, 0
        %2092 = vmatprep.subr.mxu0 0.0
        %2093 = vmatpush1.xpose.msra.mxu0 %v2090
        %2094 = vmatprep.subr.mxu0 0.0
        %2095 = vmatpush1.xpose.msra.mxu0 0.0
        %2096 = vmatprep.subr.mxu0 0.0
        %2097 = vmatpush1.xpose.msra.mxu0 0.0
        %2098 = vmatprep.subr.mxu0 0.0
        %2099 = vmatpush1.xpose.msra.mxu0 0.0
        %2100 = vmatprep.subr.mxu0 0.0
        %2101 = vmatpush1.xpose.msra.mxu0 0.0
        %2102 = vmatprep.subr.mxu0 0.0
        %2103 = vmatpush1.xpose.msra.mxu0 0.0
        %2104 = vmatprep.subr.mxu0 0.0
        %2105 = vmatpush1.xpose.msra.mxu0 0.0
        %2106 = vmatprep.subr.mxu0 0.0
        %2107 = vmatpush1.xpose.msra.mxu0 0.0
        %2108 = vmatprep.subr.mxu0 0.0
        %2109 = vmatpush1.xpose.msra.mxu0 0.0
        %2110 = vmatprep.subr.mxu0 0.0
        %2111 = vmatpush1.xpose.msra.mxu0 0.0
        %2112 = vmatprep.subr.mxu0 0.0
        %2113 = vmatpush1.xpose.msra.mxu0 0.0
        %2114 = vmatprep.subr.mxu0 0.0
        %2115 = vmatpush1.xpose.msra.mxu0 0.0
        %2116 = vmatprep.subr.mxu0 0.0
        %2117 = vmatpush1.xpose.msra.mxu0 0.0
        %2118 = vmatprep.subr.mxu0 0.0
        %2119 = vmatpush1.xpose.msra.mxu0 0.0
        %2120 = vmatprep.subr.mxu0 0.0
        %2121 = vmatpush1.xpose.msra.mxu0 0.0
        %2122 = vmatprep.subr.mxu0 0.0
        %2123 = vmatpush1.xpose.msra.mxu0 0.0
        %2124 = vmatprep.subr.mxu0 0.0
        %2125 = vmatpush1.xpose.msra.mxu0 0.0
        %2126 = vmatprep.subr.mxu0 0.0
        %2127 = vmatpush1.xpose.msra.mxu0 0.0
        %2128 = vmatprep.subr.mxu0 0.0
        %2129 = vmatpush1.xpose.msra.mxu0 0.0
        %2130 = vmatprep.subr.mxu0 0.0
        %2131 = vmatpush1.xpose.msra.mxu0 0.0
        %2132 = vmatprep.subr.mxu0 0.0
        %2133 = vmatpush1.xpose.msra.mxu0 0.0
        %2134 = vmatprep.subr.mxu0 0.0
        %2135 = vmatpush1.xpose.msra.mxu0 0.0
        %2136 = vmatprep.subr.mxu0 0.0
        %2137 = vmatpush1.xpose.msra.mxu0 0.0
        %2138 = vmatprep.subr.mxu0 0.0
        %2139 = vmatpush1.xpose.msra.mxu0 0.0
        %2140 = vmatprep.subr.mxu0 0.0
        %2141 = vmatpush1.xpose.msra.mxu0 0.0
        %2142 = vmatprep.subr.mxu0 0.0
        %2143 = vmatpush1.xpose.msra.mxu0 0.0
        %2144 = vmatprep.subr.mxu0 0.0
        %2145 = vmatpush1.xpose.msra.mxu0 0.0
        %2146 = vmatprep.subr.mxu0 0.0
        %2147 = vmatpush1.xpose.msra.mxu0 0.0
        %2148 = vmatprep.subr.mxu0 0.0
        %2149 = vmatpush1.xpose.msra.mxu0 0.0
        %2150 = vmatprep.subr.mxu0 0.0
        %2151 = vmatpush1.xpose.msra.mxu0 0.0
        %2152 = vmatprep.subr.mxu0 0.0
        %2153 = vmatpush1.xpose.msra.mxu0 0.0
        %2154 = vmatprep.subr.mxu0 0.0
        %2155 = vmatpush1.xpose.msra.mxu0 0.0
        %2156 = vmatprep.mubr.f32.mxu0 0.0
        %2157 = vmatmul.mubr.f32.gmra.mrb[0].mxu0 %v2087
        %v2158 = vpop.f32.mrb[0].mxu0
        %v2159 = vadd.f32 0.0, %v2158
        %v2160 = vpop.f32.mrb[0].mxu0
        %2161 = vdwg.mxu0
        %v2163 = vsel %vm1629, %v1036, 0
        %v2166 = vsel %vm1629, %v1332, 0
        %2168 = vmatprep.subr.mxu0 0.0
        %2169 = vmatpush1.xpose.msra.mxu0 %v2166
        %2170 = vmatprep.subr.mxu0 0.0
        %2171 = vmatpush1.xpose.msra.mxu0 0.0
        %2172 = vmatprep.subr.mxu0 0.0
        %2173 = vmatpush1.xpose.msra.mxu0 0.0
        %2174 = vmatprep.subr.mxu0 0.0
        %2175 = vmatpush1.xpose.msra.mxu0 0.0
        %2176 = vmatprep.subr.mxu0 0.0
        %2177 = vmatpush1.xpose.msra.mxu0 0.0
        %2178 = vmatprep.subr.mxu0 0.0
        %2179 = vmatpush1.xpose.msra.mxu0 0.0
        %2180 = vmatprep.subr.mxu0 0.0
        %2181 = vmatpush1.xpose.msra.mxu0 0.0
        %2182 = vmatprep.subr.mxu0 0.0
        %2183 = vmatpush1.xpose.msra.mxu0 0.0
        %2184 = vmatprep.subr.mxu0 0.0
        %2185 = vmatpush1.xpose.msra.mxu0 0.0
        %2186 = vmatprep.subr.mxu0 0.0
        %2187 = vmatpush1.xpose.msra.mxu0 0.0
        %2188 = vmatprep.subr.mxu0 0.0
        %2189 = vmatpush1.xpose.msra.mxu0 0.0
        %2190 = vmatprep.subr.mxu0 0.0
        %2191 = vmatpush1.xpose.msra.mxu0 0.0
        %2192 = vmatprep.subr.mxu0 0.0
        %2193 = vmatpush1.xpose.msra.mxu0 0.0
        %2194 = vmatprep.subr.mxu0 0.0
        %2195 = vmatpush1.xpose.msra.mxu0 0.0
        %2196 = vmatprep.subr.mxu0 0.0
        %2197 = vmatpush1.xpose.msra.mxu0 0.0
        %2198 = vmatprep.subr.mxu0 0.0
        %2199 = vmatpush1.xpose.msra.mxu0 0.0
        %2200 = vmatprep.subr.mxu0 0.0
        %2201 = vmatpush1.xpose.msra.mxu0 0.0
        %2202 = vmatprep.subr.mxu0 0.0
        %2203 = vmatpush1.xpose.msra.mxu0 0.0
        %2204 = vmatprep.subr.mxu0 0.0
        %2205 = vmatpush1.xpose.msra.mxu0 0.0
        %2206 = vmatprep.subr.mxu0 0.0
        %2207 = vmatpush1.xpose.msra.mxu0 0.0
        %2208 = vmatprep.subr.mxu0 0.0
        %2209 = vmatpush1.xpose.msra.mxu0 0.0
        %2210 = vmatprep.subr.mxu0 0.0
        %2211 = vmatpush1.xpose.msra.mxu0 0.0
        %2212 = vmatprep.subr.mxu0 0.0
        %2213 = vmatpush1.xpose.msra.mxu0 0.0
        %2214 = vmatprep.subr.mxu0 0.0
        %2215 = vmatpush1.xpose.msra.mxu0 0.0
        %2216 = vmatprep.subr.mxu0 0.0
        %2217 = vmatpush1.xpose.msra.mxu0 0.0
        %2218 = vmatprep.subr.mxu0 0.0
        %2219 = vmatpush1.xpose.msra.mxu0 0.0
        %2220 = vmatprep.subr.mxu0 0.0
        %2221 = vmatpush1.xpose.msra.mxu0 0.0
        %2222 = vmatprep.subr.mxu0 0.0
        %2223 = vmatpush1.xpose.msra.mxu0 0.0
        %2224 = vmatprep.subr.mxu0 0.0
        %2225 = vmatpush1.xpose.msra.mxu0 0.0
        %2226 = vmatprep.subr.mxu0 0.0
        %2227 = vmatpush1.xpose.msra.mxu0 0.0
        %2228 = vmatprep.subr.mxu0 0.0
        %2229 = vmatpush1.xpose.msra.mxu0 0.0
        %2230 = vmatprep.subr.mxu0 0.0
        %2231 = vmatpush1.xpose.msra.mxu0 0.0
        %2232 = vmatprep.mubr.f32.mxu0 0.0
        %2233 = vmatmul.mubr.f32.gmra.mrb[0].mxu0 %v2163
        %v2234 = vpop.f32.mrb[0].mxu0
        %v2235 = vadd.f32 0.0, %v2234
        %v2236 = vpop.f32.mrb[0].mxu0
        %2237 = vdwg.mxu0
        %v2238 = vmul.f32 %v1703, 0.35355338
        %v2239 = vmul.f32 %v1779, 0.35355338
        %v2240 = vmul.f32 %v1855, 0.35355338
        %v2241 = vmul.f32 %v1931, 0.35355338
        %v2242 = vmul.f32 %v2007, 0.35355338
        %v2243 = vmul.f32 %v2083, 0.35355338
        %v2244 = vmul.f32 %v2159, 0.35355338
        %v2245 = vmul.f32 %v2235, 0.35355338
        %v2246 = vsel %vm1629, %v2238, -inf
        %2247 = vmax.xlane.f32.xlu0 %v2246
        %v2248 = vpop.xlane.xlu0 %2247
        %v2249 = vsel %vm1629, %v2239, -inf
        %2250 = vmax.xlane.f32.xlu0 %v2249
        %v2251 = vpop.xlane.xlu0 %2250
        %v2252 = vsel %vm1629, %v2240, -inf
        %2253 = vmax.xlane.f32.xlu0 %v2252
        %v2254 = vpop.xlane.xlu0 %2253
        %v2255 = vsel %vm1629, %v2241, -inf
        %2256 = vmax.xlane.f32.xlu0 %v2255
        %v2257 = vpop.xlane.xlu0 %2256
        %v2258 = vsel %vm1629, %v2242, -inf
        %2259 = vmax.xlane.f32.xlu0 %v2258
        %v2260 = vpop.xlane.xlu0 %2259
        %v2261 = vsel %vm1629, %v2243, -inf
        %2262 = vmax.xlane.f32.xlu0 %v2261
        %v2263 = vpop.xlane.xlu0 %2262
        %v2264 = vsel %vm1629, %v2244, -inf
        %2265 = vmax.xlane.f32.xlu0 %v2264
        %v2266 = vpop.xlane.xlu0 %2265
        %v2267 = vsel %vm1629, %v2245, -inf
        %2268 = vmax.xlane.f32.xlu0 %v2267
        %v2269 = vpop.xlane.xlu0 %2268
        %v2270 = vsub.f32 %v2238, %v2248
        %v2271 = vsub.f32 %v2239, %v2251
        %v2272 = vsub.f32 %v2240, %v2254
        %v2273 = vsub.f32 %v2241, %v2257
        %v2274 = vsub.f32 %v2242, %v2260
        %v2275 = vsub.f32 %v2243, %v2263
        %v2276 = vsub.f32 %v2244, %v2266
        %v2277 = vsub.f32 %v2245, %v2269
        %v2278 = vmul.f32 %v2270, 1.442695
        %v2279 = vpow.pop %v2278
        %v2280 = vmul.f32 %v2271, 1.442695
        %v2281 = vpow.pop %v2280
        %v2282 = vmul.f32 %v2272, 1.442695
        %v2283 = vpow.pop %v2282
        %v2284 = vmul.f32 %v2273, 1.442695
        %v2285 = vpow.pop %v2284
        %v2286 = vmul.f32 %v2274, 1.442695
        %v2287 = vpow.pop %v2286
        %v2288 = vmul.f32 %v2275, 1.442695
        %v2289 = vpow.pop %v2288
        %v2290 = vmul.f32 %v2276, 1.442695
        %v2291 = vpow.pop %v2290
        %v2292 = vmul.f32 %v2277, 1.442695
        %v2293 = vpow.pop %v2292
        %v2294 = vsel %vm1629, %v2279, 0.0
        %2295 = vadd.xlane.f32.xlu0 %v2294
        %v2296 = vpop.xlane.xlu0 %2295
        %v2297 = vsel %vm1629, %v2281, 0.0
        %2298 = vadd.xlane.f32.xlu0 %v2297
        %v2299 = vpop.xlane.xlu0 %2298
        %v2300 = vsel %vm1629, %v2283, 0.0
        %2301 = vadd.xlane.f32.xlu0 %v2300
        %v2302 = vpop.xlane.xlu0 %2301
        %v2303 = vsel %vm1629, %v2285, 0.0
        %2304 = vadd.xlane.f32.xlu0 %v2303
        %v2305 = vpop.xlane.xlu0 %2304
        %v2306 = vsel %vm1629, %v2287, 0.0
        %2307 = vadd.xlane.f32.xlu0 %v2306
        %v2308 = vpop.xlane.xlu0 %2307
        %v2309 = vsel %vm1629, %v2289, 0.0
        %2310 = vadd.xlane.f32.xlu0 %v2309
        %v2311 = vpop.xlane.xlu0 %2310
        %v2312 = vsel %vm1629, %v2291, 0.0
        %2313 = vadd.xlane.f32.xlu0 %v2312
        %v2314 = vpop.xlane.xlu0 %2313
        %v2315 = vsel %vm1629, %v2293, 0.0
        %2316 = vadd.xlane.f32.xlu0 %v2315
        %v2317 = vpop.xlane.xlu0 %2316
        %v2318 = vrcp.pop %v2296
        %v2319 = vrcp.pop %v2299
        %v2320 = vrcp.pop %v2302
        %v2321 = vrcp.pop %v2305
        %v2322 = vrcp.pop %v2308
        %v2323 = vrcp.pop %v2311
        %v2324 = vrcp.pop %v2314
        %v2325 = vrcp.pop %v2317
        %v2326 = vmul.f32 %v2296, %v2318
        %v2327 = vmul.f32 %v2299, %v2319
        %v2328 = vmul.f32 %v2302, %v2320
        %v2329 = vmul.f32 %v2305, %v2321
        %v2330 = vmul.f32 %v2308, %v2322
        %v2331 = vmul.f32 %v2311, %v2323
        %v2332 = vmul.f32 %v2314, %v2324
        %v2333 = vmul.f32 %v2317, %v2325
        %v2334 = vsub.f32 2.0, %v2326
        %v2335 = vsub.f32 2.0, %v2327
        %v2336 = vsub.f32 2.0, %v2328
        %v2337 = vsub.f32 2.0, %v2329
        %v2338 = vsub.f32 2.0, %v2330
        %v2339 = vsub.f32 2.0, %v2331
        %v2340 = vsub.f32 2.0, %v2332
        %v2341 = vsub.f32 2.0, %v2333
        %v2342 = vmul.f32 %v2318, %v2334
        %v2343 = vmul.f32 %v2319, %v2335
        %v2344 = vmul.f32 %v2320, %v2336
        %v2345 = vmul.f32 %v2321, %v2337
        %v2346 = vmul.f32 %v2322, %v2338
        %v2347 = vmul.f32 %v2323, %v2339
        %v2348 = vmul.f32 %v2324, %v2340
        %v2349 = vmul.f32 %v2325, %v2341
        %v2350 = vmul.f32 %v2279, %v2342
        %v2351 = vmul.f32 %v2281, %v2343
        %v2352 = vmul.f32 %v2283, %v2344
        %v2353 = vmul.f32 %v2285, %v2345
        %v2354 = vmul.f32 %v2287, %v2346
        %v2355 = vmul.f32 %v2289, %v2347
        %v2356 = vmul.f32 %v2291, %v2348
        %v2357 = vmul.f32 %v2293, %v2349
        %v2359 = vsel %vm1629, %v2350, 0
        %2361 = vmatprep.subr.mxu0 0.0
        %2362 = vmatpush1.msra.mxu0 %v1557
        %2363 = vmatprep.subr.mxu0 0.0
        %2364 = vmatpush1.msra.mxu0 0.0
        %2365 = vmatprep.subr.mxu0 0.0
        %2366 = vmatpush1.msra.mxu0 0.0
        %2367 = vmatprep.subr.mxu0 0.0
        %2368 = vmatpush1.msra.mxu0 0.0
        %2369 = vmatprep.subr.mxu0 0.0
        %2370 = vmatpush1.msra.mxu0 0.0
        %2371 = vmatprep.subr.mxu0 0.0
        %2372 = vmatpush1.msra.mxu0 0.0
        %2373 = vmatprep.subr.mxu0 0.0
        %2374 = vmatpush1.msra.mxu0 0.0
        %2375 = vmatprep.subr.mxu0 0.0
        %2376 = vmatpush1.msra.mxu0 0.0
        %2377 = vmatprep.subr.mxu0 0.0
        %2378 = vmatpush1.msra.mxu0 0.0
        %2379 = vmatprep.subr.mxu0 0.0
        %2380 = vmatpush1.msra.mxu0 0.0
        %2381 = vmatprep.subr.mxu0 0.0
        %2382 = vmatpush1.msra.mxu0 0.0
        %2383 = vmatprep.subr.mxu0 0.0
        %2384 = vmatpush1.msra.mxu0 0.0
        %2385 = vmatprep.subr.mxu0 0.0
        %2386 = vmatpush1.msra.mxu0 0.0
        %2387 = vmatprep.subr.mxu0 0.0
        %2388 = vmatpush1.msra.mxu0 0.0
        %2389 = vmatprep.subr.mxu0 0.0
        %2390 = vmatpush1.msra.mxu0 0.0
        %2391 = vmatprep.subr.mxu0 0.0
        %2392 = vmatpush1.msra.mxu0 0.0
        %2393 = vmatprep.subr.mxu0 0.0
        %2394 = vmatpush1.msra.mxu0 0.0
        %2395 = vmatprep.subr.mxu0 0.0
        %2396 = vmatpush1.msra.mxu0 0.0
        %2397 = vmatprep.subr.mxu0 0.0
        %2398 = vmatpush1.msra.mxu0 0.0
        %2399 = vmatprep.subr.mxu0 0.0
        %2400 = vmatpush1.msra.mxu0 0.0
        %2401 = vmatprep.subr.mxu0 0.0
        %2402 = vmatpush1.msra.mxu0 0.0
        %2403 = vmatprep.subr.mxu0 0.0
        %2404 = vmatpush1.msra.mxu0 0.0
        %2405 = vmatprep.subr.mxu0 0.0
        %2406 = vmatpush1.msra.mxu0 0.0
        %2407 = vmatprep.subr.mxu0 0.0
        %2408 = vmatpush1.msra.mxu0 0.0
        %2409 = vmatprep.subr.mxu0 0.0
        %2410 = vmatpush1.msra.mxu0 0.0
        %2411 = vmatprep.subr.mxu0 0.0
        %2412 = vmatpush1.msra.mxu0 0.0
        %2413 = vmatprep.subr.mxu0 0.0
        %2414 = vmatpush1.msra.mxu0 0.0
        %2415 = vmatprep.subr.mxu0 0.0
        %2416 = vmatpush1.msra.mxu0 0.0
        %2417 = vmatprep.subr.mxu0 0.0
        %2418 = vmatpush1.msra.mxu0 0.0
        %2419 = vmatprep.subr.mxu0 0.0
        %2420 = vmatpush1.msra.mxu0 0.0
        %2421 = vmatprep.subr.mxu0 0.0
        %2422 = vmatpush1.msra.mxu0 0.0
        %2423 = vmatprep.subr.mxu0 0.0
        %2424 = vmatpush1.msra.mxu0 0.0
        %2425 = vmatprep.mubr.f32.mxu0 0.0
        %2426 = vmatmul.mubr.f32.gmra.mrb[0].mxu0 %v2359
        %v2427 = vpop.f32.mrb[0].mxu0
        %v2428 = vadd.f32 0.0, %v2427
        %v2429 = vpop.f32.mrb[0].mxu0
        %2430 = vdwg.mxu0
        %v2432 = vsel %vm1629, %v2351, 0
        %2434 = vmatprep.subr.mxu0 0.0
        %2435 = vmatpush1.msra.mxu0 %v1625
        %2436 = vmatprep.subr.mxu0 0.0
        %2437 = vmatpush1.msra.mxu0 0.0
        %2438 = vmatprep.subr.mxu0 0.0
        %2439 = vmatpush1.msra.mxu0 0.0
        %2440 = vmatprep.subr.mxu0 0.0
        %2441 = vmatpush1.msra.mxu0 0.0
        %2442 = vmatprep.subr.mxu0 0.0
        %2443 = vmatpush1.msra.mxu0 0.0
        %2444 = vmatprep.subr.mxu0 0.0
        %2445 = vmatpush1.msra.mxu0 0.0
        %2446 = vmatprep.subr.mxu0 0.0
        %2447 = vmatpush1.msra.mxu0 0.0
        %2448 = vmatprep.subr.mxu0 0.0
        %2449 = vmatpush1.msra.mxu0 0.0
        %2450 = vmatprep.subr.mxu0 0.0
        %2451 = vmatpush1.msra.mxu0 0.0
        %2452 = vmatprep.subr.mxu0 0.0
        %2453 = vmatpush1.msra.mxu0 0.0
        %2454 = vmatprep.subr.mxu0 0.0
        %2455 = vmatpush1.msra.mxu0 0.0
        %2456 = vmatprep.subr.mxu0 0.0
        %2457 = vmatpush1.msra.mxu0 0.0
        %2458 = vmatprep.subr.mxu0 0.0
        %2459 = vmatpush1.msra.mxu0 0.0
        %2460 = vmatprep.subr.mxu0 0.0
        %2461 = vmatpush1.msra.mxu0 0.0
        %2462 = vmatprep.subr.mxu0 0.0
        %2463 = vmatpush1.msra.mxu0 0.0
        %2464 = vmatprep.subr.mxu0 0.0
        %2465 = vmatpush1.msra.mxu0 0.0
        %2466 = vmatprep.subr.mxu0 0.0
        %2467 = vmatpush1.msra.mxu0 0.0
        %2468 = vmatprep.subr.mxu0 0.0
        %2469 = vmatpush1.msra.mxu0 0.0
        %2470 = vmatprep.subr.mxu0 0.0
        %2471 = vmatpush1.msra.mxu0 0.0
        %2472 = vmatprep.subr.mxu0 0.0
        %2473 = vmatpush1.msra.mxu0 0.0
        %2474 = vmatprep.subr.mxu0 0.0
        %2475 = vmatpush1.msra.mxu0 0.0
        %2476 = vmatprep.subr.mxu0 0.0
        %2477 = vmatpush1.msra.mxu0 0.0
        %2478 = vmatprep.subr.mxu0 0.0
        %2479 = vmatpush1.msra.mxu0 0.0
        %2480 = vmatprep.subr.mxu0 0.0
        %2481 = vmatpush1.msra.mxu0 0.0
        %2482 = vmatprep.subr.mxu0 0.0
        %2483 = vmatpush1.msra.mxu0 0.0
        %2484 = vmatprep.subr.mxu0 0.0
        %2485 = vmatpush1.msra.mxu0 0.0
        %2486 = vmatprep.subr.mxu0 0.0
        %2487 = vmatpush1.msra.mxu0 0.0
        %2488 = vmatprep.subr.mxu0 0.0
        %2489 = vmatpush1.msra.mxu0 0.0
        %2490 = vmatprep.subr.mxu0 0.0
        %2491 = vmatpush1.msra.mxu0 0.0
        %2492 = vmatprep.subr.mxu0 0.0
        %2493 = vmatpush1.msra.mxu0 0.0
        %2494 = vmatprep.subr.mxu0 0.0
        %2495 = vmatpush1.msra.mxu0 0.0
        %2496 = vmatprep.subr.mxu0 0.0
        %2497 = vmatpush1.msra.mxu0 0.0
        %2498 = vmatprep.mubr.f32.mxu0 0.0
        %2499 = vmatmul.mubr.f32.gmra.mrb[0].mxu0 %v2432
        %v2500 = vpop.f32.mrb[0].mxu0
        %v2501 = vadd.f32 0.0, %v2500
        %v2502 = vpop.f32.mrb[0].mxu0
        %2503 = vdwg.mxu0
        %v2505 = vsel %vm1629, %v2352, 0
        %2507 = vmatprep.subr.mxu0 0.0
        %2508 = vmatpush1.msra.mxu0 %v1558
        %2509 = vmatprep.subr.mxu0 0.0
        %2510 = vmatpush1.msra.mxu0 0.0
        %2511 = vmatprep.subr.mxu0 0.0
        %2512 = vmatpush1.msra.mxu0 0.0
        %2513 = vmatprep.subr.mxu0 0.0
        %2514 = vmatpush1.msra.mxu0 0.0
        %2515 = vmatprep.subr.mxu0 0.0
        %2516 = vmatpush1.msra.mxu0 0.0
        %2517 = vmatprep.subr.mxu0 0.0
        %2518 = vmatpush1.msra.mxu0 0.0
        %2519 = vmatprep.subr.mxu0 0.0
        %2520 = vmatpush1.msra.mxu0 0.0
        %2521 = vmatprep.subr.mxu0 0.0
        %2522 = vmatpush1.msra.mxu0 0.0
        %2523 = vmatprep.subr.mxu0 0.0
        %2524 = vmatpush1.msra.mxu0 0.0
        %2525 = vmatprep.subr.mxu0 0.0
        %2526 = vmatpush1.msra.mxu0 0.0
        %2527 = vmatprep.subr.mxu0 0.0
        %2528 = vmatpush1.msra.mxu0 0.0
        %2529 = vmatprep.subr.mxu0 0.0
        %2530 = vmatpush1.msra.mxu0 0.0
        %2531 = vmatprep.subr.mxu0 0.0
        %2532 = vmatpush1.msra.mxu0 0.0
        %2533 = vmatprep.subr.mxu0 0.0
        %2534 = vmatpush1.msra.mxu0 0.0
        %2535 = vmatprep.subr.mxu0 0.0
        %2536 = vmatpush1.msra.mxu0 0.0
        %2537 = vmatprep.subr.mxu0 0.0
        %2538 = vmatpush1.msra.mxu0 0.0
        %2539 = vmatprep.subr.mxu0 0.0
        %2540 = vmatpush1.msra.mxu0 0.0
        %2541 = vmatprep.subr.mxu0 0.0
        %2542 = vmatpush1.msra.mxu0 0.0
        %2543 = vmatprep.subr.mxu0 0.0
        %2544 = vmatpush1.msra.mxu0 0.0
        %2545 = vmatprep.subr.mxu0 0.0
        %2546 = vmatpush1.msra.mxu0 0.0
        %2547 = vmatprep.subr.mxu0 0.0
        %2548 = vmatpush1.msra.mxu0 0.0
        %2549 = vmatprep.subr.mxu0 0.0
        %2550 = vmatpush1.msra.mxu0 0.0
        %2551 = vmatprep.subr.mxu0 0.0
        %2552 = vmatpush1.msra.mxu0 0.0
        %2553 = vmatprep.subr.mxu0 0.0
        %2554 = vmatpush1.msra.mxu0 0.0
        %2555 = vmatprep.subr.mxu0 0.0
        %2556 = vmatpush1.msra.mxu0 0.0
        %2557 = vmatprep.subr.mxu0 0.0
        %2558 = vmatpush1.msra.mxu0 0.0
        %2559 = vmatprep.subr.mxu0 0.0
        %2560 = vmatpush1.msra.mxu0 0.0
        %2561 = vmatprep.subr.mxu0 0.0
        %2562 = vmatpush1.msra.mxu0 0.0
        %2563 = vmatprep.subr.mxu0 0.0
        %2564 = vmatpush1.msra.mxu0 0.0
        %2565 = vmatprep.subr.mxu0 0.0
        %2566 = vmatpush1.msra.mxu0 0.0
        %2567 = vmatprep.subr.mxu0 0.0
        %2568 = vmatpush1.msra.mxu0 0.0
        %2569 = vmatprep.subr.mxu0 0.0
        %2570 = vmatpush1.msra.mxu0 0.0
        %2571 = vmatprep.mubr.f32.mxu0 0.0
        %2572 = vmatmul.mubr.f32.gmra.mrb[0].mxu0 %v2505
        %v2573 = vpop.f32.mrb[0].mxu0
        %v2574 = vadd.f32 0.0, %v2573
        %v2575 = vpop.f32.mrb[0].mxu0
        %2576 = vdwg.mxu0
        %v2578 = vsel %vm1629, %v2353, 0
        %2580 = vmatprep.subr.mxu0 0.0
        %2581 = vmatpush1.msra.mxu0 %v1626
        %2582 = vmatprep.subr.mxu0 0.0
        %2583 = vmatpush1.msra.mxu0 0.0
        %2584 = vmatprep.subr.mxu0 0.0
        %2585 = vmatpush1.msra.mxu0 0.0
        %2586 = vmatprep.subr.mxu0 0.0
        %2587 = vmatpush1.msra.mxu0 0.0
        %2588 = vmatprep.subr.mxu0 0.0
        %2589 = vmatpush1.msra.mxu0 0.0
        %2590 = vmatprep.subr.mxu0 0.0
        %2591 = vmatpush1.msra.mxu0 0.0
        %2592 = vmatprep.subr.mxu0 0.0
        %2593 = vmatpush1.msra.mxu0 0.0
        %2594 = vmatprep.subr.mxu0 0.0
        %2595 = vmatpush1.msra.mxu0 0.0
        %2596 = vmatprep.subr.mxu0 0.0
        %2597 = vmatpush1.msra.mxu0 0.0
        %2598 = vmatprep.subr.mxu0 0.0
        %2599 = vmatpush1.msra.mxu0 0.0
        %2600 = vmatprep.subr.mxu0 0.0
        %2601 = vmatpush1.msra.mxu0 0.0
        %2602 = vmatprep.subr.mxu0 0.0
        %2603 = vmatpush1.msra.mxu0 0.0
        %2604 = vmatprep.subr.mxu0 0.0
        %2605 = vmatpush1.msra.mxu0 0.0
        %2606 = vmatprep.subr.mxu0 0.0
        %2607 = vmatpush1.msra.mxu0 0.0
        %2608 = vmatprep.subr.mxu0 0.0
        %2609 = vmatpush1.msra.mxu0 0.0
        %2610 = vmatprep.subr.mxu0 0.0
        %2611 = vmatpush1.msra.mxu0 0.0
        %2612 = vmatprep.subr.mxu0 0.0
        %2613 = vmatpush1.msra.mxu0 0.0
        %2614 = vmatprep.subr.mxu0 0.0
        %2615 = vmatpush1.msra.mxu0 0.0
        %2616 = vmatprep.subr.mxu0 0.0
        %2617 = vmatpush1.msra.mxu0 0.0
        %2618 = vmatprep.subr.mxu0 0.0
        %2619 = vmatpush1.msra.mxu0 0.0
        %2620 = vmatprep.subr.mxu0 0.0
        %2621 = vmatpush1.msra.mxu0 0.0
        %2622 = vmatprep.subr.mxu0 0.0
        %2623 = vmatpush1.msra.mxu0 0.0
        %2624 = vmatprep.subr.mxu0 0.0
        %2625 = vmatpush1.msra.mxu0 0.0
        %2626 = vmatprep.subr.mxu0 0.0
        %2627 = vmatpush1.msra.mxu0 0.0
        %2628 = vmatprep.subr.mxu0 0.0
        %2629 = vmatpush1.msra.mxu0 0.0
        %2630 = vmatprep.subr.mxu0 0.0
        %2631 = vmatpush1.msra.mxu0 0.0
        %2632 = vmatprep.subr.mxu0 0.0
        %2633 = vmatpush1.msra.mxu0 0.0
        %2634 = vmatprep.subr.mxu0 0.0
        %2635 = vmatpush1.msra.mxu0 0.0
        %2636 = vmatprep.subr.mxu0 0.0
        %2637 = vmatpush1.msra.mxu0 0.0
        %2638 = vmatprep.subr.mxu0 0.0
        %2639 = vmatpush1.msra.mxu0 0.0
        %2640 = vmatprep.subr.mxu0 0.0
        %2641 = vmatpush1.msra.mxu0 0.0
        %2642 = vmatprep.subr.mxu0 0.0
        %2643 = vmatpush1.msra.mxu0 0.0
        %2644 = vmatprep.mubr.f32.mxu0 0.0
        %2645 = vmatmul.mubr.f32.gmra.mrb[0].mxu0 %v2578
        %v2646 = vpop.f32.mrb[0].mxu0
        %v2647 = vadd.f32 0.0, %v2646
        %v2648 = vpop.f32.mrb[0].mxu0
        %2649 = vdwg.mxu0
        %v2651 = vsel %vm1629, %v2354, 0
        %2653 = vmatprep.subr.mxu0 0.0
        %2654 = vmatpush1.msra.mxu0 %v1559
        %2655 = vmatprep.subr.mxu0 0.0
        %2656 = vmatpush1.msra.mxu0 0.0
        %2657 = vmatprep.subr.mxu0 0.0
        %2658 = vmatpush1.msra.mxu0 0.0
        %2659 = vmatprep.subr.mxu0 0.0
        %2660 = vmatpush1.msra.mxu0 0.0
        %2661 = vmatprep.subr.mxu0 0.0
        %2662 = vmatpush1.msra.mxu0 0.0
        %2663 = vmatprep.subr.mxu0 0.0
        %2664 = vmatpush1.msra.mxu0 0.0
        %2665 = vmatprep.subr.mxu0 0.0
        %2666 = vmatpush1.msra.mxu0 0.0
        %2667 = vmatprep.subr.mxu0 0.0
        %2668 = vmatpush1.msra.mxu0 0.0
        %2669 = vmatprep.subr.mxu0 0.0
        %2670 = vmatpush1.msra.mxu0 0.0
        %2671 = vmatprep.subr.mxu0 0.0
        %2672 = vmatpush1.msra.mxu0 0.0
        %2673 = vmatprep.subr.mxu0 0.0
        %2674 = vmatpush1.msra.mxu0 0.0
        %2675 = vmatprep.subr.mxu0 0.0
        %2676 = vmatpush1.msra.mxu0 0.0
        %2677 = vmatprep.subr.mxu0 0.0
        %2678 = vmatpush1.msra.mxu0 0.0
        %2679 = vmatprep.subr.mxu0 0.0
        %2680 = vmatpush1.msra.mxu0 0.0
        %2681 = vmatprep.subr.mxu0 0.0
        %2682 = vmatpush1.msra.mxu0 0.0
        %2683 = vmatprep.subr.mxu0 0.0
        %2684 = vmatpush1.msra.mxu0 0.0
        %2685 = vmatprep.subr.mxu0 0.0
        %2686 = vmatpush1.msra.mxu0 0.0
        %2687 = vmatprep.subr.mxu0 0.0
        %2688 = vmatpush1.msra.mxu0 0.0
        %2689 = vmatprep.subr.mxu0 0.0
        %2690 = vmatpush1.msra.mxu0 0.0
        %2691 = vmatprep.subr.mxu0 0.0
        %2692 = vmatpush1.msra.mxu0 0.0
        %2693 = vmatprep.subr.mxu0 0.0
        %2694 = vmatpush1.msra.mxu0 0.0
        %2695 = vmatprep.subr.mxu0 0.0
        %2696 = vmatpush1.msra.mxu0 0.0
        %2697 = vmatprep.subr.mxu0 0.0
        %2698 = vmatpush1.msra.mxu0 0.0
        %2699 = vmatprep.subr.mxu0 0.0
        %2700 = vmatpush1.msra.mxu0 0.0
        %2701 = vmatprep.subr.mxu0 0.0
        %2702 = vmatpush1.msra.mxu0 0.0
        %2703 = vmatprep.subr.mxu0 0.0
        %2704 = vmatpush1.msra.mxu0 0.0
        %2705 = vmatprep.subr.mxu0 0.0
        %2706 = vmatpush1.msra.mxu0 0.0
        %2707 = vmatprep.subr.mxu0 0.0
        %2708 = vmatpush1.msra.mxu0 0.0
        %2709 = vmatprep.subr.mxu0 0.0
        %2710 = vmatpush1.msra.mxu0 0.0
        %2711 = vmatprep.subr.mxu0 0.0
        %2712 = vmatpush1.msra.mxu0 0.0
        %2713 = vmatprep.subr.mxu0 0.0
        %2714 = vmatpush1.msra.mxu0 0.0
        %2715 = vmatprep.subr.mxu0 0.0
        %2716 = vmatpush1.msra.mxu0 0.0
        %2717 = vmatprep.mubr.f32.mxu0 0.0
        %2718 = vmatmul.mubr.f32.gmra.mrb[0].mxu0 %v2651
        %v2719 = vpop.f32.mrb[0].mxu0
        %v2720 = vadd.f32 0.0, %v2719
        %v2721 = vpop.f32.mrb[0].mxu0
        %2722 = vdwg.mxu0
        %v2724 = vsel %vm1629, %v2355, 0
        %2726 = vmatprep.subr.mxu0 0.0
        %2727 = vmatpush1.msra.mxu0 %v1627
        %2728 = vmatprep.subr.mxu0 0.0
        %2729 = vmatpush1.msra.mxu0 0.0
        %2730 = vmatprep.subr.mxu0 0.0
        %2731 = vmatpush1.msra.mxu0 0.0
        %2732 = vmatprep.subr.mxu0 0.0
        %2733 = vmatpush1.msra.mxu0 0.0
        %2734 = vmatprep.subr.mxu0 0.0
        %2735 = vmatpush1.msra.mxu0 0.0
        %2736 = vmatprep.subr.mxu0 0.0
        %2737 = vmatpush1.msra.mxu0 0.0
        %2738 = vmatprep.subr.mxu0 0.0
        %2739 = vmatpush1.msra.mxu0 0.0
        %2740 = vmatprep.subr.mxu0 0.0
        %2741 = vmatpush1.msra.mxu0 0.0
        %2742 = vmatprep.subr.mxu0 0.0
        %2743 = vmatpush1.msra.mxu0 0.0
        %2744 = vmatprep.subr.mxu0 0.0
        %2745 = vmatpush1.msra.mxu0 0.0
        %2746 = vmatprep.subr.mxu0 0.0
        %2747 = vmatpush1.msra.mxu0 0.0
        %2748 = vmatprep.subr.mxu0 0.0
        %2749 = vmatpush1.msra.mxu0 0.0
        %2750 = vmatprep.subr.mxu0 0.0
        %2751 = vmatpush1.msra.mxu0 0.0
        %2752 = vmatprep.subr.mxu0 0.0
        %2753 = vmatpush1.msra.mxu0 0.0
        %2754 = vmatprep.subr.mxu0 0.0
        %2755 = vmatpush1.msra.mxu0 0.0
        %2756 = vmatprep.subr.mxu0 0.0
        %2757 = vmatpush1.msra.mxu0 0.0
        %2758 = vmatprep.subr.mxu0 0.0
        %2759 = vmatpush1.msra.mxu0 0.0
        %2760 = vmatprep.subr.mxu0 0.0
        %2761 = vmatpush1.msra.mxu0 0.0
        %2762 = vmatprep.subr.mxu0 0.0
        %2763 = vmatpush1.msra.mxu0 0.0
        %2764 = vmatprep.subr.mxu0 0.0
        %2765 = vmatpush1.msra.mxu0 0.0
        %2766 = vmatprep.subr.mxu0 0.0
        %2767 = vmatpush1.msra.mxu0 0.0
        %2768 = vmatprep.subr.mxu0 0.0
        %2769 = vmatpush1.msra.mxu0 0.0
        %2770 = vmatprep.subr.mxu0 0.0
        %2771 = vmatpush1.msra.mxu0 0.0
        %2772 = vmatprep.subr.mxu0 0.0
        %2773 = vmatpush1.msra.mxu0 0.0
        %2774 = vmatprep.subr.mxu0 0.0
        %2775 = vmatpush1.msra.mxu0 0.0
        %2776 = vmatprep.subr.mxu0 0.0
        %2777 = vmatpush1.msra.mxu0 0.0
        %2778 = vmatprep.subr.mxu0 0.0
        %2779 = vmatpush1.msra.mxu0 0.0
        %2780 = vmatprep.subr.mxu0 0.0
        %2781 = vmatpush1.msra.mxu0 0.0
        %2782 = vmatprep.subr.mxu0 0.0
        %2783 = vmatpush1.msra.mxu0 0.0
        %2784 = vmatprep.subr.mxu0 0.0
        %2785 = vmatpush1.msra.mxu0 0.0
        %2786 = vmatprep.subr.mxu0 0.0
        %2787 = vmatpush1.msra.mxu0 0.0
        %2788 = vmatprep.subr.mxu0 0.0
        %2789 = vmatpush1.msra.mxu0 0.0
        %2790 = vmatprep.mubr.f32.mxu0 0.0
        %2791 = vmatmul.mubr.f32.gmra.mrb[0].mxu0 %v2724
        %v2792 = vpop.f32.mrb[0].mxu0
        %v2793 = vadd.f32 0.0, %v2792
        %v2794 = vpop.f32.mrb[0].mxu0
        %2795 = vdwg.mxu0
        %v2797 = vsel %vm1629, %v2356, 0
        %2799 = vmatprep.subr.mxu0 0.0
        %2800 = vmatpush1.msra.mxu0 %v1560
        %2801 = vmatprep.subr.mxu0 0.0
        %2802 = vmatpush1.msra.mxu0 0.0
        %2803 = vmatprep.subr.mxu0 0.0
        %2804 = vmatpush1.msra.mxu0 0.0
        %2805 = vmatprep.subr.mxu0 0.0
        %2806 = vmatpush1.msra.mxu0 0.0
        %2807 = vmatprep.subr.mxu0 0.0
        %2808 = vmatpush1.msra.mxu0 0.0
        %2809 = vmatprep.subr.mxu0 0.0
        %2810 = vmatpush1.msra.mxu0 0.0
        %2811 = vmatprep.subr.mxu0 0.0
        %2812 = vmatpush1.msra.mxu0 0.0
        %2813 = vmatprep.subr.mxu0 0.0
        %2814 = vmatpush1.msra.mxu0 0.0
        %2815 = vmatprep.subr.mxu0 0.0
        %2816 = vmatpush1.msra.mxu0 0.0
        %2817 = vmatprep.subr.mxu0 0.0
        %2818 = vmatpush1.msra.mxu0 0.0
        %2819 = vmatprep.subr.mxu0 0.0
        %2820 = vmatpush1.msra.mxu0 0.0
        %2821 = vmatprep.subr.mxu0 0.0
        %2822 = vmatpush1.msra.mxu0 0.0
        %2823 = vmatprep.subr.mxu0 0.0
        %2824 = vmatpush1.msra.mxu0 0.0
        %2825 = vmatprep.subr.mxu0 0.0
        %2826 = vmatpush1.msra.mxu0 0.0
        %2827 = vmatprep.subr.mxu0 0.0
        %2828 = vmatpush1.msra.mxu0 0.0
        %2829 = vmatprep.subr.mxu0 0.0
        %2830 = vmatpush1.msra.mxu0 0.0
        %2831 = vmatprep.subr.mxu0 0.0
        %2832 = vmatpush1.msra.mxu0 0.0
        %2833 = vmatprep.subr.mxu0 0.0
        %2834 = vmatpush1.msra.mxu0 0.0
        %2835 = vmatprep.subr.mxu0 0.0
        %2836 = vmatpush1.msra.mxu0 0.0
        %2837 = vmatprep.subr.mxu0 0.0
        %2838 = vmatpush1.msra.mxu0 0.0
        %2839 = vmatprep.subr.mxu0 0.0
        %2840 = vmatpush1.msra.mxu0 0.0
        %2841 = vmatprep.subr.mxu0 0.0
        %2842 = vmatpush1.msra.mxu0 0.0
        %2843 = vmatprep.subr.mxu0 0.0
        %2844 = vmatpush1.msra.mxu0 0.0
        %2845 = vmatprep.subr.mxu0 0.0
        %2846 = vmatpush1.msra.mxu0 0.0
        %2847 = vmatprep.subr.mxu0 0.0
        %2848 = vmatpush1.msra.mxu0 0.0
        %2849 = vmatprep.subr.mxu0 0.0
        %2850 = vmatpush1.msra.mxu0 0.0
        %2851 = vmatprep.subr.mxu0 0.0
        %2852 = vmatpush1.msra.mxu0 0.0
        %2853 = vmatprep.subr.mxu0 0.0
        %2854 = vmatpush1.msra.mxu0 0.0
        %2855 = vmatprep.subr.mxu0 0.0
        %2856 = vmatpush1.msra.mxu0 0.0
        %2857 = vmatprep.subr.mxu0 0.0
        %2858 = vmatpush1.msra.mxu0 0.0
        %2859 = vmatprep.subr.mxu0 0.0
        %2860 = vmatpush1.msra.mxu0 0.0
        %2861 = vmatprep.subr.mxu0 0.0
        %2862 = vmatpush1.msra.mxu0 0.0
        %2863 = vmatprep.mubr.f32.mxu0 0.0
        %2864 = vmatmul.mubr.f32.gmra.mrb[0].mxu0 %v2797
        %v2865 = vpop.f32.mrb[0].mxu0
        %v2866 = vadd.f32 0.0, %v2865
        %v2867 = vpop.f32.mrb[0].mxu0
        %2868 = vdwg.mxu0
        %v2870 = vsel %vm1629, %v2357, 0
        %2872 = vmatprep.subr.mxu0 0.0
        %2873 = vmatpush1.msra.mxu0 %v1628
        %2874 = vmatprep.subr.mxu0 0.0
        %2875 = vmatpush1.msra.mxu0 0.0
        %2876 = vmatprep.subr.mxu0 0.0
        %2877 = vmatpush1.msra.mxu0 0.0
        %2878 = vmatprep.subr.mxu0 0.0
        %2879 = vmatpush1.msra.mxu0 0.0
        %2880 = vmatprep.subr.mxu0 0.0
        %2881 = vmatpush1.msra.mxu0 0.0
        %2882 = vmatprep.subr.mxu0 0.0
        %2883 = vmatpush1.msra.mxu0 0.0
        %2884 = vmatprep.subr.mxu0 0.0
        %2885 = vmatpush1.msra.mxu0 0.0
        %2886 = vmatprep.subr.mxu0 0.0
        %2887 = vmatpush1.msra.mxu0 0.0
        %2888 = vmatprep.subr.mxu0 0.0
        %2889 = vmatpush1.msra.mxu0 0.0
        %2890 = vmatprep.subr.mxu0 0.0
        %2891 = vmatpush1.msra.mxu0 0.0
        %2892 = vmatprep.subr.mxu0 0.0
        %2893 = vmatpush1.msra.mxu0 0.0
        %2894 = vmatprep.subr.mxu0 0.0
        %2895 = vmatpush1.msra.mxu0 0.0
        %2896 = vmatprep.subr.mxu0 0.0
        %2897 = vmatpush1.msra.mxu0 0.0
        %2898 = vmatprep.subr.mxu0 0.0
        %2899 = vmatpush1.msra.mxu0 0.0
        %2900 = vmatprep.subr.mxu0 0.0
        %2901 = vmatpush1.msra.mxu0 0.0
        %2902 = vmatprep.subr.mxu0 0.0
        %2903 = vmatpush1.msra.mxu0 0.0
        %2904 = vmatprep.subr.mxu0 0.0
        %2905 = vmatpush1.msra.mxu0 0.0
        %2906 = vmatprep.subr.mxu0 0.0
        %2907 = vmatpush1.msra.mxu0 0.0
        %2908 = vmatprep.subr.mxu0 0.0
        %2909 = vmatpush1.msra.mxu0 0.0
        %2910 = vmatprep.subr.mxu0 0.0
        %2911 = vmatpush1.msra.mxu0 0.0
        %2912 = vmatprep.subr.mxu0 0.0
        %2913 = vmatpush1.msra.mxu0 0.0
        %2914 = vmatprep.subr.mxu0 0.0
        %2915 = vmatpush1.msra.mxu0 0.0
        %2916 = vmatprep.subr.mxu0 0.0
        %2917 = vmatpush1.msra.mxu0 0.0
        %2918 = vmatprep.subr.mxu0 0.0
        %2919 = vmatpush1.msra.mxu0 0.0
        %2920 = vmatprep.subr.mxu0 0.0
        %2921 = vmatpush1.msra.mxu0 0.0
        %2922 = vmatprep.subr.mxu0 0.0
        %2923 = vmatpush1.msra.mxu0 0.0
        %2924 = vmatprep.subr.mxu0 0.0
        %2925 = vmatpush1.msra.mxu0 0.0
        %2926 = vmatprep.subr.mxu0 0.0
        %2927 = vmatpush1.msra.mxu0 0.0
        %2928 = vmatprep.subr.mxu0 0.0
        %2929 = vmatpush1.msra.mxu0 0.0
        %2930 = vmatprep.subr.mxu0 0.0
        %2931 = vmatpush1.msra.mxu0 0.0
        %2932 = vmatprep.subr.mxu0 0.0
        %2933 = vmatpush1.msra.mxu0 0.0
        %2934 = vmatprep.subr.mxu0 0.0
        %2935 = vmatpush1.msra.mxu0 0.0
        %2936 = vmatprep.mubr.f32.mxu0 0.0
        %2937 = vmatmul.mubr.f32.gmra.mrb[0].mxu0 %v2870
        %v2938 = vpop.f32.mrb[0].mxu0
        %v2939 = vadd.f32 0.0, %v2938
        %v2940 = vpop.f32.mrb[0].mxu0
        %2941 = vdwg.mxu0
        %v2942 = vcombine.low %v2428, %v2720
        %v2943 = vcombine.high %v2428, %v2720
        %v2945 = vunpack.c.l.s4 1983009808
        %v2946 = vunpack.c.0.s8 %v2945
        %v2947 = vlaneseq
        %v2948 = vshrl.u32 %v2947, 7
        %v2949 = vsub.s32 %v2946, %v2948
        %v2950 = vrot.slane %v2942, %v2949
        %v2952 = vunpack.c.l.s4 1983009808
        %v2953 = vunpack.c.0.s8 %v2952
        %v2954 = vlaneseq
        %v2955 = vshrl.u32 %v2954, 7
        %v2956 = vsub.s32 %v2953, %v2955
        %v2957 = vrot.slane %v2943, %v2956
        %v2958 = vcombine.low %v2574, %v2866
        %v2959 = vcombine.high %v2574, %v2866
        %v2961 = vunpack.c.l.s4 1983009808
        %v2962 = vunpack.c.0.s8 %v2961
        %v2963 = vlaneseq
        %v2964 = vshrl.u32 %v2963, 7
        %v2965 = vsub.s32 %v2962, %v2964
        %v2966 = vrot.slane %v2958, %v2965
        %v2968 = vunpack.c.l.s4 1983009808
        %v2969 = vunpack.c.0.s8 %v2968
        %v2970 = vlaneseq
        %v2971 = vshrl.u32 %v2970, 7
        %v2972 = vsub.s32 %v2969, %v2971
        %v2973 = vrot.slane %v2959, %v2972
        %v2974 = vcombine.low %v2950, %v2966
        %v2975 = vcombine.high %v2950, %v2966
        %v2977 = vunpack.c.l.s4 1934713408
        %v2978 = vunpack.c.0.s8 %v2977
        %v2979 = vlaneseq
        %v2980 = vshrl.u32 %v2979, 7
        %v2981 = vsub.s32 %v2978, %v2980
        %v2982 = vrot.slane %v2974, %v2981
        %v2984 = vunpack.c.l.s4 1934713408
        %v2985 = vunpack.c.0.s8 %v2984
        %v2986 = vlaneseq
        %v2987 = vshrl.u32 %v2986, 7
        %v2988 = vsub.s32 %v2985, %v2987
        %v2989 = vrot.slane %v2975, %v2988
        %v2990 = vcombine.low %v2957, %v2973
        %v2991 = vcombine.high %v2957, %v2973
        %v2993 = vunpack.c.l.s4 1934713408
        %v2994 = vunpack.c.0.s8 %v2993
        %v2995 = vlaneseq
        %v2996 = vshrl.u32 %v2995, 7
        %v2997 = vsub.s32 %v2994, %v2996
        %v2998 = vrot.slane %v2990, %v2997
        %v3000 = vunpack.c.l.s4 1934713408
        %v3001 = vunpack.c.0.s8 %v3000
        %v3002 = vlaneseq
        %v3003 = vshrl.u32 %v3002, 7
        %v3004 = vsub.s32 %v3001, %v3003
        %v3005 = vrot.slane %v2991, %v3004
        %v3006 = vcombine.high %v2982, 0.0
        %v3007 = vcombine.high %v2989, 0.0
        %v3008 = vcombine.high %v2998, 0.0
        %v3009 = vcombine.high %v3005, 0.0
        %v3010 = vcombine.low %v2501, %v2793
        %v3011 = vcombine.high %v2501, %v2793
        %v3013 = vunpack.c.l.s4 1983009808
        %v3014 = vunpack.c.0.s8 %v3013
        %v3015 = vlaneseq
        %v3016 = vshrl.u32 %v3015, 7
        %v3017 = vsub.s32 %v3014, %v3016
        %v3018 = vrot.slane %v3010, %v3017
        %v3020 = vunpack.c.l.s4 1983009808
        %v3021 = vunpack.c.0.s8 %v3020
        %v3022 = vlaneseq
        %v3023 = vshrl.u32 %v3022, 7
        %v3024 = vsub.s32 %v3021, %v3023
        %v3025 = vrot.slane %v3011, %v3024
        %v3026 = vcombine.low %v2647, %v2939
        %v3027 = vcombine.high %v2647, %v2939
        %v3029 = vunpack.c.l.s4 1983009808
        %v3030 = vunpack.c.0.s8 %v3029
        %v3031 = vlaneseq
        %v3032 = vshrl.u32 %v3031, 7
        %v3033 = vsub.s32 %v3030, %v3032
        %v3034 = vrot.slane %v3026, %v3033
        %v3036 = vunpack.c.l.s4 1983009808
        %v3037 = vunpack.c.0.s8 %v3036
        %v3038 = vlaneseq
        %v3039 = vshrl.u32 %v3038, 7
        %v3040 = vsub.s32 %v3037, %v3039
        %v3041 = vrot.slane %v3027, %v3040
        %v3042 = vcombine.low %v3018, %v3034
        %v3043 = vcombine.high %v3018, %v3034
        %v3045 = vunpack.c.l.s4 1934713408
        %v3046 = vunpack.c.0.s8 %v3045
        %v3047 = vlaneseq
        %v3048 = vshrl.u32 %v3047, 7
        %v3049 = vsub.s32 %v3046, %v3048
        %v3050 = vrot.slane %v3042, %v3049
        %v3052 = vunpack.c.l.s4 1934713408
        %v3053 = vunpack.c.0.s8 %v3052
        %v3054 = vlaneseq
        %v3055 = vshrl.u32 %v3054, 7
        %v3056 = vsub.s32 %v3053, %v3055
        %v3057 = vrot.slane %v3043, %v3056
        %v3058 = vcombine.low %v3025, %v3041
        %v3059 = vcombine.high %v3025, %v3041
        %v3061 = vunpack.c.l.s4 1934713408
        %v3062 = vunpack.c.0.s8 %v3061
        %v3063 = vlaneseq
        %v3064 = vshrl.u32 %v3063, 7
        %v3065 = vsub.s32 %v3062, %v3064
        %v3066 = vrot.slane %v3058, %v3065
        %v3068 = vunpack.c.l.s4 1934713408
        %v3069 = vunpack.c.0.s8 %v3068
        %v3070 = vlaneseq
        %v3071 = vshrl.u32 %v3070, 7
        %v3072 = vsub.s32 %v3069, %v3071
        %v3073 = vrot.slane %v3059, %v3072
        %v3074 = vcombine.high %v3050, 0.0
        %v3075 = vcombine.high %v3057, 0.0
        %v3076 = vcombine.high %v3066, 0.0
        %v3077 = vcombine.high %v3073, 0.0
        %v3078 = vcombine.low %v2982, %v2989
        %v3080 = vunpack.c.l.s4 1983009808
        %v3081 = vunpack.c.0.s8 %v3080
        %v3082 = vlaneseq
        %v3083 = vshrl.u32 %v3082, 7
        %v3084 = vsub.s32 %v3081, %v3083
        %v3085 = vrot.slane %v3078, %v3084
        %v3086 = vcombine.low %v3006, %v3007
        %v3088 = vunpack.c.l.s4 1983009808
        %v3089 = vunpack.c.0.s8 %v3088
        %v3090 = vlaneseq
        %v3091 = vshrl.u32 %v3090, 7
        %v3092 = vsub.s32 %v3089, %v3091
        %v3093 = vrot.slane %v3086, %v3092
        %v3094 = vcombine.low %v2998, %v3005
        %v3096 = vunpack.c.l.s4 1983009808
        %v3097 = vunpack.c.0.s8 %v3096
        %v3098 = vlaneseq
        %v3099 = vshrl.u32 %v3098, 7
        %v3100 = vsub.s32 %v3097, %v3099
        %v3101 = vrot.slane %v3094, %v3100
        %v3102 = vcombine.low %v3008, %v3009
        %v3104 = vunpack.c.l.s4 1983009808
        %v3105 = vunpack.c.0.s8 %v3104
        %v3106 = vlaneseq
        %v3107 = vshrl.u32 %v3106, 7
        %v3108 = vsub.s32 %v3105, %v3107
        %v3109 = vrot.slane %v3102, %v3108
        %v3110 = vcombine.low %v3085, %v3093
        %v3111 = vcombine.high %v3085, %v3093
        %v3113 = vunpack.c.l.s4 1934713408
        %v3114 = vunpack.c.0.s8 %v3113
        %v3115 = vlaneseq
        %v3116 = vshrl.u32 %v3115, 7
        %v3117 = vsub.s32 %v3114, %v3116
        %v3118 = vrot.slane %v3110, %v3117
        %v3120 = vunpack.c.l.s4 1934713408
        %v3121 = vunpack.c.0.s8 %v3120
        %v3122 = vlaneseq
        %v3123 = vshrl.u32 %v3122, 7
        %v3124 = vsub.s32 %v3121, %v3123
        %v3125 = vrot.slane %v3111, %v3124
        %v3126 = vcombine.low %v3101, %v3109
        %v3127 = vcombine.high %v3101, %v3109
        %v3129 = vunpack.c.l.s4 1934713408
        %v3130 = vunpack.c.0.s8 %v3129
        %v3131 = vlaneseq
        %v3132 = vshrl.u32 %v3131, 7
        %v3133 = vsub.s32 %v3130, %v3132
        %v3134 = vrot.slane %v3126, %v3133
        %v3136 = vunpack.c.l.s4 1934713408
        %v3137 = vunpack.c.0.s8 %v3136
        %v3138 = vlaneseq
        %v3139 = vshrl.u32 %v3138, 7
        %v3140 = vsub.s32 %v3137, %v3139
        %v3141 = vrot.slane %v3127, %v3140
        %v3142 = vcombine.low %v3118, %v3134
        %v3143 = vcombine.high %v3118, %v3134
        %v3144 = vcombine.low %v3125, %v3141
        %v3145 = vcombine.high %v3125, %v3141
        %v3146 = vcombine.low %v3050, %v3057
        %v3148 = vunpack.c.l.s4 1983009808
        %v3149 = vunpack.c.0.s8 %v3148
        %v3150 = vlaneseq
        %v3151 = vshrl.u32 %v3150, 7
        %v3152 = vsub.s32 %v3149, %v3151
        %v3153 = vrot.slane %v3146, %v3152
        %v3154 = vcombine.low %v3074, %v3075
        %v3156 = vunpack.c.l.s4 1983009808
        %v3157 = vunpack.c.0.s8 %v3156
        %v3158 = vlaneseq
        %v3159 = vshrl.u32 %v3158, 7
        %v3160 = vsub.s32 %v3157, %v3159
        %v3161 = vrot.slane %v3154, %v3160
        %v3162 = vcombine.low %v3066, %v3073
        %v3164 = vunpack.c.l.s4 1983009808
        %v3165 = vunpack.c.0.s8 %v3164
        %v3166 = vlaneseq
        %v3167 = vshrl.u32 %v3166, 7
        %v3168 = vsub.s32 %v3165, %v3167
        %v3169 = vrot.slane %v3162, %v3168
        %v3170 = vcombine.low %v3076, %v3077
        %v3172 = vunpack.c.l.s4 1983009808
        %v3173 = vunpack.c.0.s8 %v3172
        %v3174 = vlaneseq
        %v3175 = vshrl.u32 %v3174, 7
        %v3176 = vsub.s32 %v3173, %v3175
        %v3177 = vrot.slane %v3170, %v3176
        %v3178 = vcombine.low %v3153, %v3161
        %v3179 = vcombine.high %v3153, %v3161
        %v3181 = vunpack.c.l.s4 1934713408
        %v3182 = vunpack.c.0.s8 %v3181
        %v3183 = vlaneseq
        %v3184 = vshrl.u32 %v3183, 7
        %v3185 = vsub.s32 %v3182, %v3184
        %v3186 = vrot.slane %v3178, %v3185
        %v3188 = vunpack.c.l.s4 1934713408
        %v3189 = vunpack.c.0.s8 %v3188
        %v3190 = vlaneseq
        %v3191 = vshrl.u32 %v3190, 7
        %v3192 = vsub.s32 %v3189, %v3191
        %v3193 = vrot.slane %v3179, %v3192
        %v3194 = vcombine.low %v3169, %v3177
        %v3195 = vcombine.high %v3169, %v3177
        %v3197 = vunpack.c.l.s4 1934713408
        %v3198 = vunpack.c.0.s8 %v3197
        %v3199 = vlaneseq
        %v3200 = vshrl.u32 %v3199, 7
        %v3201 = vsub.s32 %v3198, %v3200
        %v3202 = vrot.slane %v3194, %v3201
        %v3204 = vunpack.c.l.s4 1934713408
        %v3205 = vunpack.c.0.s8 %v3204
        %v3206 = vlaneseq
        %v3207 = vshrl.u32 %v3206, 7
        %v3208 = vsub.s32 %v3205, %v3207
        %v3209 = vrot.slane %v3195, %v3208
        %v3210 = vcombine.low %v3186, %v3202
        %v3211 = vcombine.high %v3186, %v3202
        %v3212 = vcombine.low %v3193, %v3209
        %v3213 = vcombine.high %v3193, %v3209
        %3216 = vrot.lane.b32.xlu0 %v3143, 8
        %v3217 = vpop.permute.xlu0 %3216
        %3218 = vrot.lane.b32.xlu0 %v3211, 8
        %v3219 = vpop.permute.xlu0 %3218
        %3224 = vrot.lane.b32.xlu0 %v3144, 16
        %v3225 = vpop.permute.xlu0 %3224
        %3226 = vrot.lane.b32.xlu0 %v3212, 16
        %v3227 = vpop.permute.xlu0 %3226
        %3232 = vrot.lane.b32.xlu0 %v3145, 24
        %v3233 = vpop.permute.xlu0 %3232
        %3234 = vrot.lane.b32.xlu0 %v3213, 24
        %v3235 = vpop.permute.xlu0 %3234
        %v3238 = vsel %vm1629, %v3142, %v3217
        %v3239 = vsel %vm1629, %v3210, %v3219
        %vm3240 = vcmask 130048
        %v3241 = vsel %vm3240, %v3238, %v3225
        %v3242 = vsel %vm3240, %v3239, %v3227
        %vm3243 = vcmask 195584
        %v3244 = vsel %vm3243, %v3241, %v3233
        %v3245 = vsel %vm3243, %v3242, %v3235
        %v3246 = vld [vmem:[%s608] sm:$0xff]
        %v3247 = vld [vmem:[%s608 + $0x8] sm:$0xff]
        %v3248 = vld [vmem:[%s608 + $0x10] sm:$0xff]
        %v3249 = vld [vmem:[%s608 + $0x18] sm:$0xff]
        %v3250 = vld [vmem:[%s611] sm:$0x1]
        %v3252 = vlaneseq
        %v3253 = vshrl.u32 %v3252, 7
        %v3254 = vsub.s32 0, %v3253
        %v3255 = vrot.slane %v3250, %v3254
        %v3258 = vsel %vm663, %v3244, 0
        %v3261 = vsel %vm663, %v3245, 0
        %3263 = vmatprep.subr.mxu0 0.0
        %3264 = vmatpush1.msra.mxu0 %v3246
        %3265 = vmatprep.subr.mxu0 0.0
        %3266 = vmatpush1.msra.mxu0 %v3247
        %3267 = vmatprep.subr.mxu0 0.0
        %3268 = vmatpush1.msra.mxu0 %v3248
        %3269 = vmatprep.subr.mxu0 0.0
        %3270 = vmatpush1.msra.mxu0 %v3249
        %3271 = vmatprep.subr.mxu0 0.0
        %3272 = vmatpush1.msra.mxu0 0.0
        %3273 = vmatprep.subr.mxu0 0.0
        %3274 = vmatpush1.msra.mxu0 0.0
        %3275 = vmatprep.subr.mxu0 0.0
        %3276 = vmatpush1.msra.mxu0 0.0
        %3277 = vmatprep.subr.mxu0 0.0
        %3278 = vmatpush1.msra.mxu0 0.0
        %3279 = vmatprep.subr.mxu0 0.0
        %3280 = vmatpush1.msra.mxu0 0.0
        %3281 = vmatprep.subr.mxu0 0.0
        %3282 = vmatpush1.msra.mxu0 0.0
        %3283 = vmatprep.subr.mxu0 0.0
        %3284 = vmatpush1.msra.mxu0 0.0
        %3285 = vmatprep.subr.mxu0 0.0
        %3286 = vmatpush1.msra.mxu0 0.0
        %3287 = vmatprep.subr.mxu0 0.0
        %3288 = vmatpush1.msra.mxu0 0.0
        %3289 = vmatprep.subr.mxu0 0.0
        %3290 = vmatpush1.msra.mxu0 0.0
        %3291 = vmatprep.subr.mxu0 0.0
        %3292 = vmatpush1.msra.mxu0 0.0
        %3293 = vmatprep.subr.mxu0 0.0
        %3294 = vmatpush1.msra.mxu0 0.0
        %3295 = vmatprep.subr.mxu0 0.0
        %3296 = vmatpush1.msra.mxu0 0.0
        %3297 = vmatprep.subr.mxu0 0.0
        %3298 = vmatpush1.msra.mxu0 0.0
        %3299 = vmatprep.subr.mxu0 0.0
        %3300 = vmatpush1.msra.mxu0 0.0
        %3301 = vmatprep.subr.mxu0 0.0
        %3302 = vmatpush1.msra.mxu0 0.0
        %3303 = vmatprep.subr.mxu0 0.0
        %3304 = vmatpush1.msra.mxu0 0.0
        %3305 = vmatprep.subr.mxu0 0.0
        %3306 = vmatpush1.msra.mxu0 0.0
        %3307 = vmatprep.subr.mxu0 0.0
        %3308 = vmatpush1.msra.mxu0 0.0
        %3309 = vmatprep.subr.mxu0 0.0
        %3310 = vmatpush1.msra.mxu0 0.0
        %3311 = vmatprep.subr.mxu0 0.0
        %3312 = vmatpush1.msra.mxu0 0.0
        %3313 = vmatprep.subr.mxu0 0.0
        %3314 = vmatpush1.msra.mxu0 0.0
        %3315 = vmatprep.subr.mxu0 0.0
        %3316 = vmatpush1.msra.mxu0 0.0
        %3317 = vmatprep.subr.mxu0 0.0
        %3318 = vmatpush1.msra.mxu0 0.0
        %3319 = vmatprep.subr.mxu0 0.0
        %3320 = vmatpush1.msra.mxu0 0.0
        %3321 = vmatprep.subr.mxu0 0.0
        %3322 = vmatpush1.msra.mxu0 0.0
        %3323 = vmatprep.subr.mxu0 0.0
        %3324 = vmatpush1.msra.mxu0 0.0
        %3325 = vmatprep.subr.mxu0 0.0
        %3326 = vmatpush1.msra.mxu0 0.0
        %3327 = vmatprep.mubr.f32.mxu0 0.0
        %3328 = vmatmul.mubr.f32.gmra.mrb[0].mxu0 %v3258
        %v3329 = vpop.f32.mrb[0].mxu0
        %v3330 = vadd.f32 %v3255, %v3329
        %v3331 = vpop.f32.mrb[0].mxu0
        %3332 = vmatprep.mubr.f32.mxu0 0.0
        %3333 = vmatmul.mubr.f32.gmra.mrb[0].mxu0 %v3261
        %v3334 = vpop.f32.mrb[0].mxu0
        %v3335 = vadd.f32 %v3255, %v3334
        %v3336 = vpop.f32.mrb[0].mxu0
        %3337 = vdwg.mxu0
        %v3338 = vadd.f32 %v650, %v3330
        %v3339 = vadd.f32 %v651, %v3335
        %v3340 = vsel %vm663, %v3338, 0.0
        %3341 = vadd.xlane.f32.xlu0 %v3340
        %v3342 = vpop.xlane.xlu0 %3341
        %v3343 = vsel %vm663, %v3339, 0.0
        %3344 = vadd.xlane.f32.xlu0 %v3343
        %v3345 = vpop.xlane.xlu0 %3344
        %v3346 = vrcp.pop 32.0
        %v3347 = vmul.f32 %v3342, %v3346
        %v3348 = vmul.f32 %v3345, %v3346
        %v3349 = vsub.f32 %v3338, %v3347
        %v3350 = vsub.f32 %v3339, %v3348
        %v3351 = vmul.f32 %v3349, %v3349
        %v3352 = vmul.f32 %v3350, %v3350
        %v3353 = vsel %vm663, %v3351, 0.0
        %3354 = vadd.xlane.f32.xlu0 %v3353
        %v3355 = vpop.xlane.xlu0 %3354
        %v3356 = vsel %vm663, %v3352, 0.0
        %3357 = vadd.xlane.f32.xlu0 %v3356
        %v3358 = vpop.xlane.xlu0 %3357
        %v3359 = vmul.f32 %v3355, %v3346
        %v3360 = vmul.f32 %v3358, %v3346
        %v3361 = vadd.f32 %v3359, 1e-05
        %v3362 = vadd.f32 %v3360, 1e-05
        %v3363 = vrsqrt.pop %v3361
        %v3364 = vrsqrt.pop %v3362
        %v3365 = vmul.f32 %v3349, %v3363
        %v3366 = vmul.f32 %v3350, %v3364
        %v3367 = vld [vmem:[%s614] sm:$0x1]
        %v3369 = vlaneseq
        %v3370 = vshrl.u32 %v3369, 7
        %v3371 = vsub.s32 0, %v3370
        %v3372 = vrot.slane %v3367, %v3371
        %v3374 = vmul.f32 %v3365, %v3372
        %v3375 = vmul.f32 %v3366, %v3372
        %v3376 = vld [vmem:[%s617] sm:$0x1]
        %v3378 = vlaneseq
        %v3379 = vshrl.u32 %v3378, 7
        %v3380 = vsub.s32 0, %v3379
        %v3381 = vrot.slane %v3376, %v3380
        %v3383 = vadd.f32 %v3374, %v3381
        %v3384 = vadd.f32 %v3375, %v3381
        %v3385 = vld [vmem:[%s622] sm:$0xff]
        %v3386 = vld [vmem:[%s622 + $0x8] sm:$0xff]
        %v3387 = vld [vmem:[%s622 + $0x10] sm:$0xff]
        %v3388 = vld [vmem:[%s622 + $0x18] sm:$0xff]
        %v3389 = vld [vmem:[%s625] sm:$0x1]
        %v3391 = vlaneseq
        %v3392 = vshrl.u32 %v3391, 7
        %v3393 = vsub.s32 0, %v3392
        %v3394 = vrot.slane %v3389, %v3393
        %v3397 = vsel %vm663, %v3383, 0
        %v3400 = vsel %vm663, %v3384, 0
        %3402 = vmatprep.subr.mxu0 0.0
        %3403 = vmatpush1.msra.mxu0 %v3385
        %3404 = vmatprep.subr.mxu0 0.0
        %3405 = vmatpush1.msra.mxu0 %v3386
        %3406 = vmatprep.subr.mxu0 0.0
        %3407 = vmatpush1.msra.mxu0 %v3387
        %3408 = vmatprep.subr.mxu0 0.0
        %3409 = vmatpush1.msra.mxu0 %v3388
        %3410 = vmatprep.subr.mxu0 0.0
        %3411 = vmatpush1.msra.mxu0 0.0
        %3412 = vmatprep.subr.mxu0 0.0
        %3413 = vmatpush1.msra.mxu0 0.0
        %3414 = vmatprep.subr.mxu0 0.0
        %3415 = vmatpush1.msra.mxu0 0.0
        %3416 = vmatprep.subr.mxu0 0.0
        %3417 = vmatpush1.msra.mxu0 0.0
        %3418 = vmatprep.subr.mxu0 0.0
        %3419 = vmatpush1.msra.mxu0 0.0
        %3420 = vmatprep.subr.mxu0 0.0
        %3421 = vmatpush1.msra.mxu0 0.0
        %3422 = vmatprep.subr.mxu0 0.0
        %3423 = vmatpush1.msra.mxu0 0.0
        %3424 = vmatprep.subr.mxu0 0.0
        %3425 = vmatpush1.msra.mxu0 0.0
        %3426 = vmatprep.subr.mxu0 0.0
        %3427 = vmatpush1.msra.mxu0 0.0
        %3428 = vmatprep.subr.mxu0 0.0
        %3429 = vmatpush1.msra.mxu0 0.0
        %3430 = vmatprep.subr.mxu0 0.0
        %3431 = vmatpush1.msra.mxu0 0.0
        %3432 = vmatprep.subr.mxu0 0.0
        %3433 = vmatpush1.msra.mxu0 0.0
        %3434 = vmatprep.subr.mxu0 0.0
        %3435 = vmatpush1.msra.mxu0 0.0
        %3436 = vmatprep.subr.mxu0 0.0
        %3437 = vmatpush1.msra.mxu0 0.0
        %3438 = vmatprep.subr.mxu0 0.0
        %3439 = vmatpush1.msra.mxu0 0.0
        %3440 = vmatprep.subr.mxu0 0.0
        %3441 = vmatpush1.msra.mxu0 0.0
        %3442 = vmatprep.subr.mxu0 0.0
        %3443 = vmatpush1.msra.mxu0 0.0
        %3444 = vmatprep.subr.mxu0 0.0
        %3445 = vmatpush1.msra.mxu0 0.0
        %3446 = vmatprep.subr.mxu0 0.0
        %3447 = vmatpush1.msra.mxu0 0.0
        %3448 = vmatprep.subr.mxu0 0.0
        %3449 = vmatpush1.msra.mxu0 0.0
        %3450 = vmatprep.subr.mxu0 0.0
        %3451 = vmatpush1.msra.mxu0 0.0
        %3452 = vmatprep.subr.mxu0 0.0
        %3453 = vmatpush1.msra.mxu0 0.0
        %3454 = vmatprep.subr.mxu0 0.0
        %3455 = vmatpush1.msra.mxu0 0.0
        %3456 = vmatprep.subr.mxu0 0.0
        %3457 = vmatpush1.msra.mxu0 0.0
        %3458 = vmatprep.subr.mxu0 0.0
        %3459 = vmatpush1.msra.mxu0 0.0
        %3460 = vmatprep.subr.mxu0 0.0
        %3461 = vmatpush1.msra.mxu0 0.0
        %3462 = vmatprep.subr.mxu0 0.0
        %3463 = vmatpush1.msra.mxu0 0.0
        %3464 = vmatprep.subr.mxu0 0.0
        %3465 = vmatpush1.msra.mxu0 0.0
        %3466 = vmatprep.mubr.f32.mxu0 0.0
        %3467 = vmatmul.mubr.f32.gmra.mrb[0].mxu0 %v3397
        %v3468 = vpop.f32.mrb[0].mxu0
        %v3469 = vadd.f32 %v3394, %v3468
        %v3470 = vpop.f32.mrb[0].mxu0
        %3471 = vmatprep.mubr.f32.mxu0 0.0
        %3472 = vmatmul.mubr.f32.gmra.mrb[0].mxu0 %v3400
        %v3473 = vpop.f32.mrb[0].mxu0
        %v3474 = vadd.f32 %v3394, %v3473
        %v3475 = vpop.f32.mrb[0].mxu0
        %3476 = vdwg.mxu0
        %v3477 = vmax.f32 %v3469, 0.0
        %v3478 = vmax.f32 %v3474, 0.0
        %v3479 = vld [vmem:[%s630] sm:$0xff]
        %v3480 = vld [vmem:[%s630 + $0x8] sm:$0xff]
        %v3481 = vld [vmem:[%s630 + $0x10] sm:$0xff]
        %v3482 = vld [vmem:[%s630 + $0x18] sm:$0xff]
        %v3483 = vld [vmem:[%s630 + $0x20] sm:$0xff]
        %v3484 = vld [vmem:[%s630 + $0x28] sm:$0xff]
        %v3485 = vld [vmem:[%s630 + $0x30] sm:$0xff]
        %v3486 = vld [vmem:[%s630 + $0x38] sm:$0xff]
        %v3487 = vld [vmem:[%s633] sm:$0x1]
        %v3489 = vlaneseq
        %v3490 = vshrl.u32 %v3489, 7
        %v3491 = vsub.s32 0, %v3490
        %v3492 = vrot.slane %v3487, %v3491
        %vm3494 = vcmask 523264
        %v3496 = vsel %vm3494, %v3477, 0
        %v3499 = vsel %vm3494, %v3478, 0
        %3501 = vmatprep.subr.mxu0 0.0
        %3502 = vmatpush1.msra.mxu0 %v3479
        %3503 = vmatprep.subr.mxu0 0.0
        %3504 = vmatpush1.msra.mxu0 %v3480
        %3505 = vmatprep.subr.mxu0 0.0
        %3506 = vmatpush1.msra.mxu0 %v3481
        %3507 = vmatprep.subr.mxu0 0.0
        %3508 = vmatpush1.msra.mxu0 %v3482
        %3509 = vmatprep.subr.mxu0 0.0
        %3510 = vmatpush1.msra.mxu0 %v3483
        %3511 = vmatprep.subr.mxu0 0.0
        %3512 = vmatpush1.msra.mxu0 %v3484
        %3513 = vmatprep.subr.mxu0 0.0
        %3514 = vmatpush1.msra.mxu0 %v3485
        %3515 = vmatprep.subr.mxu0 0.0
        %3516 = vmatpush1.msra.mxu0 %v3486
        %3517 = vmatprep.subr.mxu0 0.0
        %3518 = vmatpush1.msra.mxu0 0.0
        %3519 = vmatprep.subr.mxu0 0.0
        %3520 = vmatpush1.msra.mxu0 0.0
        %3521 = vmatprep.subr.mxu0 0.0
        %3522 = vmatpush1.msra.mxu0 0.0
        %3523 = vmatprep.subr.mxu0 0.0
        %3524 = vmatpush1.msra.mxu0 0.0
        %3525 = vmatprep.subr.mxu0 0.0
        %3526 = vmatpush1.msra.mxu0 0.0
        %3527 = vmatprep.subr.mxu0 0.0
        %3528 = vmatpush1.msra.mxu0 0.0
        %3529 = vmatprep.subr.mxu0 0.0
        %3530 = vmatpush1.msra.mxu0 0.0
        %3531 = vmatprep.subr.mxu0 0.0
        %3532 = vmatpush1.msra.mxu0 0.0
        %3533 = vmatprep.subr.mxu0 0.0
        %3534 = vmatpush1.msra.mxu0 0.0
        %3535 = vmatprep.subr.mxu0 0.0
        %3536 = vmatpush1.msra.mxu0 0.0
        %3537 = vmatprep.subr.mxu0 0.0
        %3538 = vmatpush1.msra.mxu0 0.0
        %3539 = vmatprep.subr.mxu0 0.0
        %3540 = vmatpush1.msra.mxu0 0.0
        %3541 = vmatprep.subr.mxu0 0.0
        %3542 = vmatpush1.msra.mxu0 0.0
        %3543 = vmatprep.subr.mxu0 0.0
        %3544 = vmatpush1.msra.mxu0 0.0
        %3545 = vmatprep.subr.mxu0 0.0
        %3546 = vmatpush1.msra.mxu0 0.0
        %3547 = vmatprep.subr.mxu0 0.0
        %3548 = vmatpush1.msra.mxu0 0.0
        %3549 = vmatprep.subr.mxu0 0.0
        %3550 = vmatpush1.msra.mxu0 0.0
        %3551 = vmatprep.subr.mxu0 0.0
        %3552 = vmatpush1.msra.mxu0 0.0
        %3553 = vmatprep.subr.mxu0 0.0
        %3554 = vmatpush1.msra.mxu0 0.0
        %3555 = vmatprep.subr.mxu0 0.0
        %3556 = vmatpush1.msra.mxu0 0.0
        %3557 = vmatprep.subr.mxu0 0.0
        %3558 = vmatpush1.msra.mxu0 0.0
        %3559 = vmatprep.subr.mxu0 0.0
        %3560 = vmatpush1.msra.mxu0 0.0
        %3561 = vmatprep.subr.mxu0 0.0
        %3562 = vmatpush1.msra.mxu0 0.0
        %3563 = vmatprep.subr.mxu0 0.0
        %3564 = vmatpush1.msra.mxu0 0.0
        %3565 = vmatprep.mubr.f32.mxu0 0.0
        %3566 = vmatmul.mubr.f32.gmra.mrb[0].mxu0 %v3496
        %v3567 = vpop.f32.mrb[0].mxu0
        %v3568 = vadd.f32 %v3492, %v3567
        %v3569 = vpop.f32.mrb[0].mxu0
        %3570 = vmatprep.mubr.f32.mxu0 0.0
        %3571 = vmatmul.mubr.f32.gmra.mrb[0].mxu0 %v3499
        %v3572 = vpop.f32.mrb[0].mxu0
        %v3573 = vadd.f32 %v3492, %v3572
        %v3574 = vpop.f32.mrb[0].mxu0
        %3575 = vdwg.mxu0
        %v3576 = vadd.f32 %v3383, %v3568
        %v3577 = vadd.f32 %v3384, %v3573
        %v3578 = vsel %vm663, %v3576, 0.0
        %3579 = vadd.xlane.f32.xlu0 %v3578
        %v3580 = vpop.xlane.xlu0 %3579
        %v3581 = vsel %vm663, %v3577, 0.0
        %3582 = vadd.xlane.f32.xlu0 %v3581
        %v3583 = vpop.xlane.xlu0 %3582
        %v3584 = vmul.f32 %v3580, %v3346
        %v3585 = vmul.f32 %v3583, %v3346
        %v3586 = vsub.f32 %v3576, %v3584
        %v3587 = vsub.f32 %v3577, %v3585
        %v3588 = vmul.f32 %v3586, %v3586
        %v3589 = vmul.f32 %v3587, %v3587
        %v3590 = vsel %vm663, %v3588, 0.0
        %3591 = vadd.xlane.f32.xlu0 %v3590
        %v3592 = vpop.xlane.xlu0 %3591
        %v3593 = vsel %vm663, %v3589, 0.0
        %3594 = vadd.xlane.f32.xlu0 %v3593
        %v3595 = vpop.xlane.xlu0 %3594
        %v3596 = vmul.f32 %v3592, %v3346
        %v3597 = vmul.f32 %v3595, %v3346
        %v3598 = vadd.f32 %v3596, 1e-05
        %v3599 = vadd.f32 %v3597, 1e-05
        %v3600 = vrsqrt.pop %v3598
        %v3601 = vrsqrt.pop %v3599
        %v3602 = vmul.f32 %v3586, %v3600
        %v3603 = vmul.f32 %v3587, %v3601
        %v3604 = vld [vmem:[%s636] sm:$0x1]
        %v3606 = vlaneseq
        %v3607 = vshrl.u32 %v3606, 7
        %v3608 = vsub.s32 0, %v3607
        %v3609 = vrot.slane %v3604, %v3608
        %v3611 = vmul.f32 %v3602, %v3609
        %v3612 = vmul.f32 %v3603, %v3609
        %v3613 = vld [vmem:[%s639] sm:$0x1]
        %v3615 = vlaneseq
        %v3616 = vshrl.u32 %v3615, 7
        %v3617 = vsub.s32 0, %v3616
        %v3618 = vrot.slane %v3613, %v3617
        %v3620 = vadd.f32 %v3611, %v3618
        %v3621 = vadd.f32 %v3612, %v3618
        %3622 = vst.msk [vmem:[#allocation2] sm:$0xff] %vm663, %v3620
        %3623 = vst.msk [vmem:[#allocation2 + $0x8] sm:$0xff] %vm663, %v3621
        %p3624 = scmp.eq.s32.totalorder %s31, 1
        // Predicated region
        $region81: #{tpu_custom_call.1} parent=71 // pred_check
          %p3625 = pneg %p3624
        $region82: #{tpu_custom_call.1} parent=71 // pred_check_branch
          %3627 = sbr.rel (%p3625) target = $region84
        $region83: #{tpu_custom_call.1} parent=71 // pred_region
          %3628 = vst.msk [vmem:[#allocation6] sm:$0xff] %vm663, %v3620
          %3629 = vst.msk [vmem:[#allocation6 + $0x8] sm:$0xff] %vm663, %v3621
        $region84: #{tpu_custom_call.1} parent=71 // pred_fallthru
          _
        // Predicated region
        $region85: #{tpu_custom_call.1} parent=71 // pred_check
          %p3630 = pneg %p394
        $region86: #{tpu_custom_call.1} parent=71 // pred_check_branch
          %3632 = sbr.rel (%p3630) target = $region88
        $region87: #{tpu_custom_call.1} parent=71 // pred_region
          %s3633 = smul.u32 2, %s30
          %s3635 = ssub.s32 256, 256
          %3636 = vsyncadd [#allocation5], %s3635
          %s3637 = smul.addr %s3633, 128
          %s3638 = scalar_lea.hbm %s13, %s3637
          %s3639 = sshll.u32 [#allocation6], 4
          %s3640 = int_to_ptr.vmem [resolvable:$true] %s3639
          %3645 = dma.vmem_to_hbm [thread:$0]  %s3640, 256, %s3638, [#allocation5], 128, 128, 8
        $region88: #{tpu_custom_call.1} parent=71 // pred_fallthru
          _
        // Predicated region
        $region89: #{tpu_custom_call.1} parent=71 // pred_check
          %p3646 = pneg %p394
        $region90: #{tpu_custom_call.1} parent=71 // pred_check_branch
          %3648 = sbr.rel (%p3646) target = $region92
        $region91: #{tpu_custom_call.1} parent=71 // pred_region
          %3649 = dma.done [#allocation5], 256
        $region92: #{tpu_custom_call.1} parent=71 // pred_fallthru
          _
      $region72: #{tpu_custom_call.1} parent=5 // pred_fallthru
        _
      %p3650 = scmp.le.s32.totalorder 2, %s21
      // Predicated region
      $region93: #{tpu_custom_call.1} parent=5 // pred_check
        %p3651 = pneg %p3650
      $region94: #{tpu_custom_call.1} parent=5 // pred_check_branch
        %3653 = sbr.rel (%p3651) target = $region96
      $region95: #{tpu_custom_call.1} parent=5 // pred_region
        %s3654 = ssub.s32 %s21, 2
      $region96: #{tpu_custom_call.1} parent=5 // pred_fallthru
        _
    $region6: #{tpu_custom_call.1} parent=1 // loop_footer
      %s25 = sadd.s32 1, %s21
    $region7: #{tpu_custom_call.1} parent=1 // loop_footer_branch
      %20 = sbr.rel target = $region3
    $region8: #{tpu_custom_call.1} parent=1 // loop_exit
      _
    %3655 = vsyncpa [#allocation4], 1
    %s3656 = scalar_lea.sflag [#allocation4], 1
    %3657 = vsyncpa %s3656, 1
    %3658 = vsyncpa [#allocation5], 1
    %s3659 = scalar_lea.sflag [#allocation5], 1
    %3660 = vsyncpa %s3659, 1

</llo_original>
